<compile_context>
chip_gen: v6e
topology: v6e:2x2x1
jax: 0.10.0
libtpu: 0.0.40
codegen_flags: <defaults>
</compile_context>

<pallas_src>
import functools
import math

import jax
import jax.numpy as jnp
from jax import lax
from jax.experimental import pallas as pl
from jax.experimental.pallas import tpu as pltpu

_ROW_TILE = 256   # anchor rows per block   (sublane axis, multiple of 8)
_COL_TILE = 512   # contrast cols per block (lane axis, multiple of 128)
_LANES = 128
_SUBLANES = 8


def _round_up(x, m):
    return ((x + m - 1) // m) * m


def _supcon_kernel(feat_row_ref, feat_col_ref, lab_row_ref, lab_col_ref,
                   pdot_out_ref, lden_out_ref, m_ref, l_ref, pdot_ref, *,
                   inv_temp, n_valid, tr, tc):
    ri = pl.program_id(0)
    ci = pl.program_id(1)

    @pl.when(ci == 0)
    def _init():
        m_ref[...] = jnp.full_like(m_ref, -jnp.inf)
        l_ref[...] = jnp.zeros_like(l_ref)
        pdot_ref[...] = jnp.zeros_like(pdot_ref)

    # (tr, tc) similarity tile: contract the feature dim of BOTH operands on
    # the MXU (no in-kernel transpose), f32 accumulation, scaled by 1/temp.
    s = lax.dot_general(
        feat_row_ref[...], feat_col_ref[...],
        dimension_numbers=(((1,), (1,)), ((), ())),
        preferred_element_type=jnp.float32) * inv_temp

    # labels: row labels vary along sublanes, col labels along lanes -> one
    # broadcast compare, no transpose.
    same_label = lab_row_ref[:, 0:1] == lab_col_ref[0:1, :]          # (tr, tc)

    # Online log-sum-exp update. The running max only needs to dominate every
    # kept logit (it cancels exactly in log_prob), so a select-free max over
    # the whole tile is both safe and cheapest.
    m_prev = m_ref[...]
    tile_max = jnp.max(s, axis=1, keepdims=True)
    m_new = jnp.maximum(m_prev, tile_max)
    alpha = jnp.exp(m_prev - m_new)
    p_all = jnp.exp(s - m_new)                                       # EUP slot
    m_ref[...] = m_new

    # Scalar conditions: does this tile touch the self-contrast diagonal or the
    # padded column tail?  Only then pay for index masks.
    row0 = ri * tr
    col0 = ci * tc
    has_diag = jnp.logical_and(row0 < col0 + tc, col0 < row0 + tr)
    has_pad = (col0 + tc) > n_valid
    needs_mask = jnp.logical_or(has_diag, has_pad)

    @pl.when(jnp.logical_not(needs_mask))
    def _fast():
        # interior tile: every column is a valid, non-diagonal contrast.
        l_ref[...] = alpha * l_ref[...] + jnp.sum(p_all, axis=1, keepdims=True)
        pdot_ref[...] += jnp.sum(jnp.where(same_label, s, 0.0),
                                 axis=1, keepdims=True)

    @pl.when(needs_mask)
    def _masked():
        # masks from broadcast-shaped iotas (one (tr,1) + one (1,tc) vector).
        row_ids = row0 + lax.broadcasted_iota(jnp.int32, (tr, 1), 0)
        col_ids = col0 + lax.broadcasted_iota(jnp.int32, (1, tc), 1)
        keep = (col_ids < n_valid) & (row_ids != col_ids)            # (tr, tc)
        l_ref[...] = alpha * l_ref[...] + jnp.sum(
            jnp.where(keep, p_all, 0.0), axis=1, keepdims=True)
        pdot_ref[...] += jnp.sum(jnp.where(same_label & keep, s, 0.0),
                                 axis=1, keepdims=True)

    @pl.when(ci == pl.num_programs(1) - 1)
    def _finalize():
        log_denom = m_ref[...] + jnp.log(l_ref[...])
        # lane-dense (tr, 128) output blocks -> unmasked stores.
        pdot_out_ref[...] = jnp.broadcast_to(pdot_ref[...], (tr, _LANES))
        lden_out_ref[...] = jnp.broadcast_to(log_denom, (tr, _LANES))


def supervised_loss(features, labels, *, temperature=0.07, contrast_mode='all',
                    base_temperature=0.07):
    assert contrast_mode == 'all'
    B, C, D = features.shape
    # TODO(synk): the torch module's mask.repeat(C,1)/scatter path only runs
    # correctly for contrast_count == 1; we reproduce exactly that config.
    assert C == 1, "reference torch module only runs for contrast_count == 1"
    N = B * C

    feat = features.reshape(N, D)            # keep input dtype (bf16 stays bf16)
    lab = jnp.asarray(labels, jnp.int32).reshape(-1)

    tr, tc = _ROW_TILE, _COL_TILE
    n_pad = _round_up(N, math.lcm(tr, tc))
    d_pad = _round_up(D, _LANES)

    feat_p = jnp.pad(feat, ((0, n_pad - N), (0, d_pad - D)))
    lab_p = jnp.pad(lab, (0, n_pad - N), constant_values=-1)
    lab_rows = jnp.broadcast_to(lab_p[:, None], (n_pad, _LANES))      # lane-repl.
    lab_cols = jnp.broadcast_to(lab_p[None, :], (_SUBLANES, n_pad))   # sublane-repl.

    grid = (n_pad // tr, n_pad // tc)

    kernel = functools.partial(
        _supcon_kernel,
        inv_temp=1.0 / float(temperature),
        n_valid=N, tr=tr, tc=tc)

    # VMEM budget: double-buffered tiles + f32 (tr,tc) temporaries, clamped to
    # 75% of this generation's VMEM capacity (v7x: 64 MiB, v5e/v6e: 128 MiB).
    feat_item = jnp.dtype(feat_p.dtype).itemsize
    est = (2 * (tr + tc) * d_pad * feat_item          # feature tiles (x2 buffers)
           + 2 * (tr * _LANES + _SUBLANES * tc) * 4   # label tiles
           + 2 * 2 * tr * _LANES * 4                  # two output tiles
           + 3 * tr * 4                               # accumulator scratch
           + 8 * tr * tc * 4)                         # (tr,tc) f32 temporaries
    vmem_cap = 128 * 1024 * 1024
    try:
        vmem_cap = int(pltpu.get_tpu_info().vmem_capacity_bytes)
    except Exception:
        pass
    vmem_limit = int(min(max(2 * est, 32 * 1024 * 1024), (3 * vmem_cap) // 4))

    pdot, logden = pl.pallas_call(
        kernel,
        out_shape=(jax.ShapeDtypeStruct((n_pad, _LANES), jnp.float32),
                   jax.ShapeDtypeStruct((n_pad, _LANES), jnp.float32)),
        grid=grid,
        in_specs=[
            pl.BlockSpec((tr, d_pad), lambda i, j: (i, 0)),       # anchor rows
            pl.BlockSpec((tc, d_pad), lambda i, j: (j, 0)),       # contrast rows
            pl.BlockSpec((tr, _LANES), lambda i, j: (i, 0)),      # row labels
            pl.BlockSpec((_SUBLANES, tc), lambda i, j: (0, j)),   # col labels
        ],
        out_specs=(pl.BlockSpec((tr, _LANES), lambda i, j: (i, 0)),
                   pl.BlockSpec((tr, _LANES), lambda i, j: (i, 0))),
        scratch_shapes=[
            pltpu.VMEM((tr, 1), jnp.float32),   # running max
            pltpu.VMEM((tr, 1), jnp.float32),   # running exp-sum
            pltpu.VMEM((tr, 1), jnp.float32),   # sum of positive logits
        ],
        compiler_params=pltpu.CompilerParams(
            dimension_semantics=("parallel", "arbitrary"),
            vmem_limit_bytes=vmem_limit),
    )(feat_p, feat_p, lab_rows, lab_cols)

    # pcnt_i depends only on labels (#other samples sharing label_i); computed
    # here so the divide is exact.  (The N x N int compare is negligible next
    # to the kernel's N x N x D matmul; an O(N) bincount would need a
    # label -> dense-id remap first.)
    same = lab[:, None] == lab[None, :]
    pcnt = (jnp.sum(same, axis=1) - 1).astype(jnp.float32)

    scale = float(temperature) / float(base_temperature)
    mean_log_prob_pos = pdot[:N, 0] / pcnt - logden[:N, 0]
    # anchors with zero positives yield inf/NaN, exactly like the torch ref.
    return jnp.mean(-scale * mean_log_prob_pos)


def _reference_loss(features, labels, temperature=0.07, base_temperature=0.07):
    # pure-JAX reference mirroring the torch forward (contrast_mode='all', C==1)
    B, C, D = features.shape
    feat = features.reshape(B * C, D).astype(jnp.float32)
    lab = jnp.asarray(labels, jnp.int32).reshape(-1)
    mask = (lab[:, None] == lab[None, :]).astype(jnp.float32)
    s = jnp.matmul(feat, feat.T, precision=lax.Precision.HIGHEST) / temperature
    logits = s - jnp.max(s, axis=1, keepdims=True)
    n = feat.shape[0]
    logits_mask = 1.0 - jnp.eye(n, dtype=jnp.float32)
    mask = mask * logits_mask
    exp_logits = jnp.exp(logits) * logits_mask
    log_prob = logits - jnp.log(jnp.sum(exp_logits, axis=1, keepdims=True))
    mean_log_prob_pos = jnp.sum(mask * log_prob, axis=1) / jnp.sum(mask, axis=1)
    loss = -(temperature / base_temperature) * mean_log_prob_pos
    return jnp.mean(loss)


if __name__ == "__main__":
    key = jax.random.PRNGKey(0)
    B, C, D = 8, 1, 32
    kf, _ = jax.random.split(key)
    features = jax.random.normal(kf, (B, C, D), dtype=jnp.float32)
    # L2-normalize features (typical for contrastive losses; keeps logits tame)
    features = features / jnp.linalg.norm(features, axis=-1, keepdims=True)
    # deterministic labels with at least one positive for every sample
    labels = jnp.array([0, 1, 0, 1, 2, 2, 0, 1], dtype=jnp.int32)

    loss = supervised_loss(features, labels)
    loss = jax.block_until_ready(loss)

    ref = _reference_loss(features, labels)
    assert jnp.allclose(loss, ref, rtol=1e-2, atol=1e-2), (loss, ref)
    print("KERNEL_OK")
</pallas_src>

<mosaic_0001>
module attributes {stable_mosaic.version = 11 : i64} {
  func.func @_supcon_kernel(%arg0: i32, %arg1: i32, %arg2: memref<256x128xf32, #tpu.memory_space<vmem>>, %arg3: memref<512x128xf32, #tpu.memory_space<vmem>>, %arg4: memref<256x128xi32, #tpu.memory_space<vmem>>, %arg5: memref<8x512xi32, #tpu.memory_space<vmem>>, %arg6: memref<256x128xf32, #tpu.memory_space<vmem>>, %arg7: memref<256x128xf32, #tpu.memory_space<vmem>>, %arg8: memref<256x1xf32, #tpu.memory_space<vmem>>, %arg9: memref<256x1xf32, #tpu.memory_space<vmem>>, %arg10: memref<256x1xf32, #tpu.memory_space<vmem>>) attributes {dimension_semantics = [#tpu.dimension_semantics<parallel>, #tpu.dimension_semantics<arbitrary>], iteration_bounds = array<i64: 2, 1>, scalar_prefetch = 0 : i64, scratch_operands = 3 : i64, tpu.core_type = #tpu.core_type<tc>, window_params = [{transform_indices = @transform_0, window_bounds = array<i64: 256, 128>}, {transform_indices = @transform_1, window_bounds = array<i64: 512, 128>}, {transform_indices = @transform_2, window_bounds = array<i64: 256, 128>}, {transform_indices = @transform_3, window_bounds = array<i64: 8, 512>}, {transform_indices = @transform_4, window_bounds = array<i64: 256, 128>}, {transform_indices = @transform_5, window_bounds = array<i64: 256, 128>}]} {
    %c0_i32 = arith.constant 0 : i32
    %0 = arith.cmpi eq, %arg1, %c0_i32 : i32
    %1 = arith.extui %0 : i1 to i32
    %c0_i32_0 = arith.constant 0 : i32
    %2 = arith.cmpi ne, %1, %c0_i32_0 : i32
    scf.if %2 {
      %cst_21 = arith.constant 0xFF800000 : f32
      %41 = vector.broadcast %cst_21 : f32 to vector<256x1xf32>
      %c0_22 = arith.constant 0 : index
      %c0_23 = arith.constant 0 : index
      %42 = vector.load %arg8[%c0_22, %c0_23] : memref<256x1xf32, #tpu.memory_space<vmem>>, vector<256x1xf32>
      tpu.vector_store %arg8[%c0_22, %c0_23], %41 {strides = array<i32>} : memref<256x1xf32, #tpu.memory_space<vmem>>, vector<256x1xf32>,
      %cst_24 = arith.constant 0.000000e+00 : f32
      %43 = vector.broadcast %cst_24 : f32 to vector<256x1xf32>
      %c0_25 = arith.constant 0 : index
      %c0_26 = arith.constant 0 : index
      %44 = vector.load %arg9[%c0_25, %c0_26] : memref<256x1xf32, #tpu.memory_space<vmem>>, vector<256x1xf32>
      tpu.vector_store %arg9[%c0_25, %c0_26], %43 {strides = array<i32>} : memref<256x1xf32, #tpu.memory_space<vmem>>, vector<256x1xf32>,
      %cst_27 = arith.constant 0.000000e+00 : f32
      %45 = vector.broadcast %cst_27 : f32 to vector<256x1xf32>
      %c0_28 = arith.constant 0 : index
      %c0_29 = arith.constant 0 : index
      %46 = vector.load %arg10[%c0_28, %c0_29] : memref<256x1xf32, #tpu.memory_space<vmem>>, vector<256x1xf32>
      tpu.vector_store %arg10[%c0_28, %c0_29], %45 {strides = array<i32>} : memref<256x1xf32, #tpu.memory_space<vmem>>, vector<256x1xf32>,
    } else {
    }
    %c0 = arith.constant 0 : index
    %c0_1 = arith.constant 0 : index
    %3 = vector.load %arg2[%c0, %c0_1] : memref<256x128xf32, #tpu.memory_space<vmem>>, vector<256x128xf32>
    %c0_2 = arith.constant 0 : index
    %c0_3 = arith.constant 0 : index
    %4 = vector.load %arg3[%c0_2, %c0_3] : memref<512x128xf32, #tpu.memory_space<vmem>>, vector<512x128xf32>
    %cst = arith.constant dense<0.000000e+00> : vector<256x512xf32>
    %5 = tpu.matmul %3, %4, %cst {dimension_numbers = #tpu.dot_dimension_numbers<[1], [1], [0], [0], [0, 0, 1, 0], [], []>} : vector<256x128xf32>, vector<512x128xf32>, vector<256x512xf32> -> vector<256x512xf32>
    %cst_4 = arith.constant 14.2857141 : f32
    %6 = vector.broadcast %cst_4 : f32 to vector<256x512xf32>
    %7 = arith.mulf %5, %6 : vector<256x512xf32>
    %c0_5 = arith.constant 0 : index
    %c0_6 = arith.constant 0 : index
    %8 = vector.load %arg4[%c0_5, %c0_6] : memref<256x128xi32, #tpu.memory_space<vmem>>, vector<256x1xi32>
    %c0_7 = arith.constant 0 : index
    %c0_8 = arith.constant 0 : index
    %9 = vector.load %arg5[%c0_7, %c0_8] : memref<8x512xi32, #tpu.memory_space<vmem>>, vector<1x512xi32>
    %10 = vector.broadcast %8 : vector<256x1xi32> to vector<256x512xi32>
    %11 = vector.broadcast %9 : vector<1x512xi32> to vector<256x512xi32>
    %12 = arith.cmpi eq, %10, %11 : vector<256x512xi32>
    %c0_9 = arith.constant 0 : index
    %c0_10 = arith.constant 0 : index
    %13 = vector.load %arg8[%c0_9, %c0_10] : memref<256x1xf32, #tpu.memory_space<vmem>>, vector<256x1xf32>
    %cst_11 = arith.constant dense<0xFF800000> : vector<256xf32>
    %14 = vector.multi_reduction <maximumf>, %7, %cst_11 [1] : vector<256x512xf32> to vector<256xf32>
    %15 = vector.shape_cast %14 : vector<256xf32> to vector<256x1xf32>
    %16 = arith.maximumf %13, %15 : vector<256x1xf32>
    %17 = arith.subf %13, %16 : vector<256x1xf32>
    %18 = math.exp %17 : vector<256x1xf32>
    %19 = vector.broadcast %16 : vector<256x1xf32> to vector<256x512xf32>
    %20 = arith.subf %7, %19 : vector<256x512xf32>
    %21 = math.exp %20 : vector<256x512xf32>
    %c0_12 = arith.constant 0 : index
    %c0_13 = arith.constant 0 : index
    %22 = vector.load %arg8[%c0_12, %c0_13] : memref<256x1xf32, #tpu.memory_space<vmem>>, vector<256x1xf32>
    tpu.vector_store %arg8[%c0_12, %c0_13], %16 {strides = array<i32>} : memref<256x1xf32, #tpu.memory_space<vmem>>, vector<256x1xf32>,
    %c256_i32 = arith.constant 256 : i32
    %23 = arith.muli %arg0, %c256_i32 : i32
    %c512_i32 = arith.constant 512 : i32
    %24 = arith.muli %arg1, %c512_i32 : i32
    %c512_i32_14 = arith.constant 512 : i32
    %25 = arith.addi %24, %c512_i32_14 : i32
    %26 = arith.cmpi slt, %23, %25 : i32
    %c256_i32_15 = arith.constant 256 : i32
    %27 = arith.addi %23, %c256_i32_15 : i32
    %28 = arith.cmpi slt, %24, %27 : i32
    %29 = arith.andi %26, %28 : i1
    %c512_i32_16 = arith.constant 512 : i32
    %30 = arith.addi %24, %c512_i32_16 : i32
    %c8_i32 = arith.constant 8 : i32
    %31 = arith.cmpi sgt, %30, %c8_i32 : i32
    %32 = arith.ori %29, %31 : i1
    %true = arith.constant true
    %33 = arith.xori %32, %true : i1
    %34 = arith.extui %33 : i1 to i32
    %c0_i32_17 = arith.constant 0 : i32
    %35 = arith.cmpi ne, %34, %c0_i32_17 : i32
    scf.if %35 {
      %c0_21 = arith.constant 0 : index
      %c0_22 = arith.constant 0 : index
      %41 = vector.load %arg9[%c0_21, %c0_22] : memref<256x1xf32, #tpu.memory_space<vmem>>, vector<256x1xf32>
      %42 = arith.mulf %18, %41 : vector<256x1xf32>
      %cst_23 = arith.constant dense<0.000000e+00> : vector<256xf32>
      %43 = vector.multi_reduction <add>, %21, %cst_23 [1] : vector<256x512xf32> to vector<256xf32>
      %44 = vector.shape_cast %43 : vector<256xf32> to vector<256x1xf32>
      %45 = arith.addf %42, %44 : vector<256x1xf32>
      %c0_24 = arith.constant 0 : index
      %c0_25 = arith.constant 0 : index
      %46 = vector.load %arg9[%c0_24, %c0_25] : memref<256x1xf32, #tpu.memory_space<vmem>>, vector<256x1xf32>
      tpu.vector_store %arg9[%c0_24, %c0_25], %45 {strides = array<i32>} : memref<256x1xf32, #tpu.memory_space<vmem>>, vector<256x1xf32>,
      %c0_26 = arith.constant 0 : index
      %c0_27 = arith.constant 0 : index
      %47 = vector.load %arg10[%c0_26, %c0_27] : memref<256x1xf32, #tpu.memory_space<vmem>>, vector<256x1xf32>
      %cst_28 = arith.constant 0.000000e+00 : f32
      %48 = vector.broadcast %cst_28 : f32 to vector<256x512xf32>
      %49 = arith.select %12, %7, %48 : vector<256x512xi1>, vector<256x512xf32>
      %cst_29 = arith.constant dense<0.000000e+00> : vector<256xf32>
      %50 = vector.multi_reduction <add>, %49, %cst_29 [1] : vector<256x512xf32> to vector<256xf32>
      %51 = vector.shape_cast %50 : vector<256xf32> to vector<256x1xf32>
      %52 = arith.addf %47, %51 : vector<256x1xf32>
      %c0_30 = arith.constant 0 : index
      %c0_31 = arith.constant 0 : index
      %53 = vector.load %arg10[%c0_30, %c0_31] : memref<256x1xf32, #tpu.memory_space<vmem>>, vector<256x1xf32>
      tpu.vector_store %arg10[%c0_30, %c0_31], %52 {strides = array<i32>} : memref<256x1xf32, #tpu.memory_space<vmem>>, vector<256x1xf32>,
    } else {
    }
    %36 = arith.extui %32 : i1 to i32
    %c0_i32_18 = arith.constant 0 : i32
    %37 = arith.cmpi ne, %36, %c0_i32_18 : i32
    scf.if %37 {
      %41 = tpu.iota {dimensions = array<i32: 0>} : vector<256x1xi32>
      %42 = vector.broadcast %23 : i32 to vector<256x1xi32>
      %43 = arith.addi %42, %41 : vector<256x1xi32>
      %44 = tpu.iota {dimensions = array<i32: 1>} : vector<1x512xi32>
      %45 = vector.broadcast %24 : i32 to vector<1x512xi32>
      %46 = arith.addi %45, %44 : vector<1x512xi32>
      %c8_i32_21 = arith.constant 8 : i32
      %47 = vector.broadcast %c8_i32_21 : i32 to vector<1x512xi32>
      %48 = arith.cmpi slt, %46, %47 : vector<1x512xi32>
      %49 = vector.broadcast %43 : vector<256x1xi32> to vector<256x512xi32>
      %50 = vector.broadcast %46 : vector<1x512xi32> to vector<256x512xi32>
      %51 = arith.cmpi ne, %49, %50 : vector<256x512xi32>
      %52 = vector.broadcast %48 : vector<1x512xi1> to vector<256x512xi1>
      %53 = arith.andi %52, %51 : vector<256x512xi1>
      %c0_22 = arith.constant 0 : index
      %c0_23 = arith.constant 0 : index
      %54 = vector.load %arg9[%c0_22, %c0_23] : memref<256x1xf32, #tpu.memory_space<vmem>>, vector<256x1xf32>
      %55 = arith.mulf %18, %54 : vector<256x1xf32>
      %cst_24 = arith.constant 0.000000e+00 : f32
      %56 = vector.broadcast %cst_24 : f32 to vector<256x512xf32>
      %57 = arith.select %53, %21, %56 : vector<256x512xi1>, vector<256x512xf32>
      %cst_25 = arith.constant dense<0.000000e+00> : vector<256xf32>
      %58 = vector.multi_reduction <add>, %57, %cst_25 [1] : vector<256x512xf32> to vector<256xf32>
      %59 = vector.shape_cast %58 : vector<256xf32> to vector<256x1xf32>
      %60 = arith.addf %55, %59 : vector<256x1xf32>
      %c0_26 = arith.constant 0 : index
      %c0_27 = arith.constant 0 : index
      %61 = vector.load %arg9[%c0_26, %c0_27] : memref<256x1xf32, #tpu.memory_space<vmem>>, vector<256x1xf32>
      tpu.vector_store %arg9[%c0_26, %c0_27], %60 {strides = array<i32>} : memref<256x1xf32, #tpu.memory_space<vmem>>, vector<256x1xf32>,
      %c0_28 = arith.constant 0 : index
      %c0_29 = arith.constant 0 : index
      %62 = vector.load %arg10[%c0_28, %c0_29] : memref<256x1xf32, #tpu.memory_space<vmem>>, vector<256x1xf32>
      %63 = arith.andi %12, %53 : vector<256x512xi1>
      %cst_30 = arith.constant 0.000000e+00 : f32
      %64 = vector.broadcast %cst_30 : f32 to vector<256x512xf32>
      %65 = arith.select %63, %7, %64 : vector<256x512xi1>, vector<256x512xf32>
      %cst_31 = arith.constant dense<0.000000e+00> : vector<256xf32>
      %66 = vector.multi_reduction <add>, %65, %cst_31 [1] : vector<256x512xf32> to vector<256xf32>
      %67 = vector.shape_cast %66 : vector<256xf32> to vector<256x1xf32>
      %68 = arith.addf %62, %67 : vector<256x1xf32>
      %c0_32 = arith.constant 0 : index
      %c0_33 = arith.constant 0 : index
      %69 = vector.load %arg10[%c0_32, %c0_33] : memref<256x1xf32, #tpu.memory_space<vmem>>, vector<256x1xf32>
      tpu.vector_store %arg10[%c0_32, %c0_33], %68 {strides = array<i32>} : memref<256x1xf32, #tpu.memory_space<vmem>>, vector<256x1xf32>,
    } else {
    }
    %c0_i32_19 = arith.constant 0 : i32
    %38 = arith.cmpi eq, %arg1, %c0_i32_19 : i32
    %39 = arith.extui %38 : i1 to i32
    %c0_i32_20 = arith.constant 0 : i32
    %40 = arith.cmpi ne, %39, %c0_i32_20 : i32
    scf.if %40 {
      %c0_21 = arith.constant 0 : index
      %c0_22 = arith.constant 0 : index
      %41 = vector.load %arg8[%c0_21, %c0_22] : memref<256x1xf32, #tpu.memory_space<vmem>>, vector<256x1xf32>
      %c0_23 = arith.constant 0 : index
      %c0_24 = arith.constant 0 : index
      %42 = vector.load %arg9[%c0_23, %c0_24] : memref<256x1xf32, #tpu.memory_space<vmem>>, vector<256x1xf32>
      %43 = math.log %42 : vector<256x1xf32>
      %44 = arith.addf %41, %43 : vector<256x1xf32>
      %c0_25 = arith.constant 0 : index
      %c0_26 = arith.constant 0 : index
      %45 = vector.load %arg10[%c0_25, %c0_26] : memref<256x1xf32, #tpu.memory_space<vmem>>, vector<256x1xf32>
      %46 = vector.shape_cast %45 : vector<256x1xf32> to vector<256x1xf32>
      %47 = vector.broadcast %46 : vector<256x1xf32> to vector<256x128xf32>
      %c0_27 = arith.constant 0 : index
      %c0_28 = arith.constant 0 : index
      %48 = vector.load %arg6[%c0_27, %c0_28] : memref<256x128xf32, #tpu.memory_space<vmem>>, vector<256x128xf32>
      tpu.vector_store %arg6[%c0_27, %c0_28], %47 {strides = array<i32>} : memref<256x128xf32, #tpu.memory_space<vmem>>, vector<256x128xf32>,
      %49 = vector.shape_cast %44 : vector<256x1xf32> to vector<256x1xf32>
      %50 = vector.broadcast %49 : vector<256x1xf32> to vector<256x128xf32>
      %c0_29 = arith.constant 0 : index
      %c0_30 = arith.constant 0 : index
      %51 = vector.load %arg7[%c0_29, %c0_30] : memref<256x128xf32, #tpu.memory_space<vmem>>, vector<256x128xf32>
      tpu.vector_store %arg7[%c0_29, %c0_30], %50 {strides = array<i32>} : memref<256x128xf32, #tpu.memory_space<vmem>>, vector<256x128xf32>,
    } else {
    }
    return
  }
  func.func @transform_0(%arg0: i32, %arg1: i32) -> (i32, i32) {
    %c0_i32 = arith.constant 0 : i32
    %c0_i32_0 = arith.constant 0 : i32
    return %arg0, %c0_i32 : i32, i32
  }
  func.func @transform_1(%arg0: i32, %arg1: i32) -> (i32, i32) {
    %c0_i32 = arith.constant 0 : i32
    %c0_i32_0 = arith.constant 0 : i32
    return %arg1, %c0_i32 : i32, i32
  }
  func.func @transform_2(%arg0: i32, %arg1: i32) -> (i32, i32) {
    %c0_i32 = arith.constant 0 : i32
    %c0_i32_0 = arith.constant 0 : i32
    return %arg0, %c0_i32 : i32, i32
  }
  func.func @transform_3(%arg0: i32, %arg1: i32) -> (i32, i32) {
    %c0_i32 = arith.constant 0 : i32
    %c0_i32_0 = arith.constant 0 : i32
    return %c0_i32, %arg1 : i32, i32
  }
  func.func @transform_4(%arg0: i32, %arg1: i32) -> (i32, i32) {
    %c0_i32 = arith.constant 0 : i32
    %c0_i32_0 = arith.constant 0 : i32
    return %arg0, %c0_i32 : i32, i32
  }
  func.func @transform_5(%arg0: i32, %arg1: i32) -> (i32, i32) {
    %c0_i32 = arith.constant 0 : i32
    %c0_i32_0 = arith.constant 0 : i32
    return %arg0, %c0_i32 : i32, i32
  }
}

</mosaic_0001>

<llo_original>
// kernel: tpu_custom_call.1
$region0: #{tpu_custom_call.1}
  #allocation0 [shape = 'u32[]', space=smem, size = 0x4, offset = 0x4, fixed_abs, tag = 'smem constant byte address 0x4 - core index']
  #allocation1 [shape = 'u32[144,128]{1,0:T(1,128)}', space=vmem, size = 0x12000, scoped, tag = 'internal scratch']
  #allocation2 [shape = 'f32[256,1]{1,0:T(8,128)}', space=vmem, size = 0x20000, scoped, tag = 'scratch operand']
  #allocation3 [shape = 'f32[256,1]{1,0:T(8,128)}', space=vmem, size = 0x20000, scoped, tag = 'scratch operand']
  #allocation4 [shape = 'f32[256,1]{1,0:T(8,128)}', space=vmem, size = 0x20000, scoped, tag = 'scratch operand']
  %s0 = inlined_call_operand.hbm [shape: f32[512,128], index: 0, kind: input, shape index: {}]
  %s1 = inlined_call_operand.hbm [shape: f32[512,128], index: 1, kind: input, shape index: {}]
  %s2 = inlined_call_operand.hbm [shape: s32[512,128], index: 2, kind: input, shape index: {}]
  %s3 = inlined_call_operand.hbm [shape: s32[8,512], index: 3, kind: input, shape index: {}]
  %s4 = inlined_call_operand.hbm [shape: f32[512,128], index: 4, kind: output, shape index: {0}]
  %s5 = inlined_call_operand.hbm [shape: f32[512,128], index: 5, kind: output, shape index: {1}]
  %6 = xla_tuple %s4, %s5
  %s7 = sld [smem:[#allocation0]]
  $region89: #{tpu_custom_call.1} parent=0
    _
  %s9 = ssub.s32 1, %s7
  %s10 = scalar_select 0, %s9, %s7
  $region1: #{tpu_custom_call.1} parent=0
    #allocation5 [shape = 'u8[262144]{0}', space=vmem, size = 0x40000, scoped, tag = 'input window, operand 0']
    #allocation6 [shape = 's32[2]{0}', space=sflag, size = 0x8, scoped, tag = 'scoped memory for tpu_custom_call.1']
    #allocation7 [shape = 's32[2]{0}', space=sflag, size = 0x8, scoped, tag = 'scoped memory for tpu_custom_call.1']
    #allocation8 [shape = 'u8[262144]{0}', space=vmem, size = 0x40000, scoped, tag = 'input window, operand 1, single buffered']
    #allocation9 [shape = 's32[1]{0}', space=sflag, size = 0x4, scoped, tag = 'scoped memory for tpu_custom_call.1']
    #allocation10 [shape = 'u8[262144]{0}', space=vmem, size = 0x40000, scoped, tag = 'input window, operand 2']
    #allocation11 [shape = 'u8[16384]{0}', space=vmem, size = 0x4000, scoped, tag = 'input window, operand 3, single buffered']
    #allocation12 [shape = 'u8[262144]{0}', space=vmem, size = 0x40000, scoped, tag = 'output window, operand 0']
    #allocation13 [shape = 'u8[262144]{0}', space=vmem, size = 0x40000, scoped, tag = 'output window, operand 1']
    #allocation14 [shape = 's32[2]{0}', space=sflag, size = 0x8, scoped, tag = 'scoped memory for tpu_custom_call.1']
    %11 = vsyncpa [#allocation6], 0
    %s12 = scalar_lea.sflag [#allocation6], 1
    %13 = vsyncpa %s12, 0
    %14 = vsyncpa [#allocation9], 0
    %15 = vsyncpa [#allocation7], 0
    %s16 = scalar_lea.sflag [#allocation7], 1
    %17 = vsyncpa %s16, 0
    %18 = vsyncpa [#allocation14], 0
    %s19 = scalar_lea.sflag [#allocation14], 1
    %20 = vsyncpa %s19, 0
    loop: start=0, step=1, limit=4
    $region2: #{tpu_custom_call.1} parent=1 // loop_pre_header
      _
    $region3: #{tpu_custom_call.1} parent=1 // loop_header
      %s22 = sphi 0, %s26
      %p23 = scmp.ge.s32.totalorder %s22, 4
      %s29 = sphi 0, %s41
      %s30 = sphi 0, %s37
      %s31 = sphi 0, %s29
      %s32 = sphi 0, %s30
      %s33 = sphi 0, %s31
      %s34 = sphi 0, %s32
      %s44 = sphi 0, %s46
      %s47 = sphi 0, %s44
      %s48 = sphi 0, %s47
      %s64 = sphi 0, %s48
      %s70 = sphi 0, %s72
      %s73 = sphi 0, %s70
      %s74 = sphi 0, %s73
      %s90 = sphi 0, %s74
      %s96 = sphi 0, %s98
      %s99 = sphi 0, %s96
      %s100 = sphi 0, %s99
      %s116 = sphi 0, %s100
      %s122 = sphi 0, %s124
      %s125 = sphi 0, %s122
      %s126 = sphi 0, %s125
      %s142 = sphi 0, %s126
      %s148 = sphi 0, %s150
      %s151 = sphi 0, %s148
      %s152 = sphi 0, %s151
      %s168 = sphi 0, %s152
      %s174 = sphi 0, %s176
      %s177 = sphi 0, %s174
      %s178 = sphi 0, %s177
      %s194 = sphi 0, %s178
    $region4: #{tpu_custom_call.1} parent=1 // loop_header_branch
      %25 = sbr.rel (%p23) target = $region8
    $region5: #{tpu_custom_call.1} parent=1 // loop_body
      %s27 = ssub.s32 %s22, 1
      %s28 = ssub.s32 %s22, 2
      %s35 = sadd.s32 1, %s30
      %p36 = scmp.ge.s32.totalorder %s35, 1
      %s37 = scalar_select %p36, 0, %s35
      %s38 = sadd.s32 1, %s29
      %s39 = scalar_select %p36, %s38, %s29
      %p40 = scmp.ge.s32.totalorder %s39, 2
      %s41 = scalar_select %p40, 0, %s39
      %s42 = ssub.s32 %s29, %s41
      %p43 = scmp.eq.s32.totalorder %s42, 0
      %s45 = sadd.s32 %s44, 1
      %s46 = scalar_select %p43, %s44, %s45
      %p49 = pneg %p43
      %p50 = scmp.eq.s32.totalorder %s22, 1
      %p51 = por %p49, %p50
      %p52 = scmp.ne.s32.totalorder %s44, %s47
      %p53 = scmp.eq.s32.totalorder %s22, 0
      %p54 = por %p52, %p53
      %p55 = scmp.ne.s32.totalorder %s44, %s47
      %p56 = scmp.eq.s32.totalorder %s27, 1
      %p57 = por %p55, %p56
      %p58 = scmp.ne.s32.totalorder %s47, %s48
      %p59 = scmp.eq.s32.totalorder %s27, 0
      %p60 = por %p58, %p59
      %p61 = scmp.ne.s32.totalorder %s47, %s48
      %p62 = scmp.eq.s32.totalorder %s28, 1
      %p63 = por %p61, %p62
      %p65 = scmp.ne.s32.totalorder %s48, %s64
      %p66 = scmp.eq.s32.totalorder %s28, 0
      %p67 = por %p65, %p66
      %s68 = ssub.s32 %s30, %s37
      %p69 = scmp.eq.s32.totalorder %s68, 0
      %s71 = sadd.s32 %s70, 1
      %s72 = scalar_select %p69, %s70, %s71
      %p75 = pneg %p69
      %p76 = scmp.eq.s32.totalorder %s22, 1
      %p77 = por %p75, %p76
      %p78 = scmp.ne.s32.totalorder %s70, %s73
      %p79 = scmp.eq.s32.totalorder %s22, 0
      %p80 = por %p78, %p79
      %p81 = scmp.ne.s32.totalorder %s70, %s73
      %p82 = scmp.eq.s32.totalorder %s27, 1
      %p83 = por %p81, %p82
      %p84 = scmp.ne.s32.totalorder %s73, %s74
      %p85 = scmp.eq.s32.totalorder %s27, 0
      %p86 = por %p84, %p85
      %p87 = scmp.ne.s32.totalorder %s73, %s74
      %p88 = scmp.eq.s32.totalorder %s28, 1
      %p89 = por %p87, %p88
      %p91 = scmp.ne.s32.totalorder %s74, %s90
      %p92 = scmp.eq.s32.totalorder %s28, 0
      %p93 = por %p91, %p92
      %s94 = ssub.s32 %s29, %s41
      %p95 = scmp.eq.s32.totalorder %s94, 0
      %s97 = sadd.s32 %s96, 1
      %s98 = scalar_select %p95, %s96, %s97
      %p101 = pneg %p95
      %p102 = scmp.eq.s32.totalorder %s22, 1
      %p103 = por %p101, %p102
      %p104 = scmp.ne.s32.totalorder %s96, %s99
      %p105 = scmp.eq.s32.totalorder %s22, 0
      %p106 = por %p104, %p105
      %p107 = scmp.ne.s32.totalorder %s96, %s99
      %p108 = scmp.eq.s32.totalorder %s27, 1
      %p109 = por %p107, %p108
      %p110 = scmp.ne.s32.totalorder %s99, %s100
      %p111 = scmp.eq.s32.totalorder %s27, 0
      %p112 = por %p110, %p111
      %p113 = scmp.ne.s32.totalorder %s99, %s100
      %p114 = scmp.eq.s32.totalorder %s28, 1
      %p115 = por %p113, %p114
      %p117 = scmp.ne.s32.totalorder %s100, %s116
      %p118 = scmp.eq.s32.totalorder %s28, 0
      %p119 = por %p117, %p118
      %s120 = ssub.s32 %s30, %s37
      %p121 = scmp.eq.s32.totalorder %s120, 0
      %s123 = sadd.s32 %s122, 1
      %s124 = scalar_select %p121, %s122, %s123
      %p127 = pneg %p121
      %p128 = scmp.eq.s32.totalorder %s22, 1
      %p129 = por %p127, %p128
      %p130 = scmp.ne.s32.totalorder %s122, %s125
      %p131 = scmp.eq.s32.totalorder %s22, 0
      %p132 = por %p130, %p131
      %p133 = scmp.ne.s32.totalorder %s122, %s125
      %p134 = scmp.eq.s32.totalorder %s27, 1
      %p135 = por %p133, %p134
      %p136 = scmp.ne.s32.totalorder %s125, %s126
      %p137 = scmp.eq.s32.totalorder %s27, 0
      %p138 = por %p136, %p137
      %p139 = scmp.ne.s32.totalorder %s125, %s126
      %p140 = scmp.eq.s32.totalorder %s28, 1
      %p141 = por %p139, %p140
      %p143 = scmp.ne.s32.totalorder %s126, %s142
      %p144 = scmp.eq.s32.totalorder %s28, 0
      %p145 = por %p143, %p144
      %s146 = ssub.s32 %s29, %s41
      %p147 = scmp.eq.s32.totalorder %s146, 0
      %s149 = sadd.s32 %s148, 1
      %s150 = scalar_select %p147, %s148, %s149
      %p153 = pneg %p147
      %p154 = scmp.eq.s32.totalorder %s22, 1
      %p155 = por %p153, %p154
      %p156 = scmp.ne.s32.totalorder %s148, %s151
      %p157 = scmp.eq.s32.totalorder %s22, 0
      %p158 = por %p156, %p157
      %p159 = scmp.ne.s32.totalorder %s148, %s151
      %p160 = scmp.eq.s32.totalorder %s27, 1
      %p161 = por %p159, %p160
      %p162 = scmp.ne.s32.totalorder %s151, %s152
      %p163 = scmp.eq.s32.totalorder %s27, 0
      %p164 = por %p162, %p163
      %p165 = scmp.ne.s32.totalorder %s151, %s152
      %p166 = scmp.eq.s32.totalorder %s28, 1
      %p167 = por %p165, %p166
      %p169 = scmp.ne.s32.totalorder %s152, %s168
      %p170 = scmp.eq.s32.totalorder %s28, 0
      %p171 = por %p169, %p170
      %s172 = ssub.s32 %s29, %s41
      %p173 = scmp.eq.s32.totalorder %s172, 0
      %s175 = sadd.s32 %s174, 1
      %s176 = scalar_select %p173, %s174, %s175
      %p179 = pneg %p173
      %p180 = scmp.eq.s32.totalorder %s22, 1
      %p181 = por %p179, %p180
      %p182 = scmp.ne.s32.totalorder %s174, %s177
      %p183 = scmp.eq.s32.totalorder %s22, 0
      %p184 = por %p182, %p183
      %p185 = scmp.ne.s32.totalorder %s174, %s177
      %p186 = scmp.eq.s32.totalorder %s27, 1
      %p187 = por %p185, %p186
      %p188 = scmp.ne.s32.totalorder %s177, %s178
      %p189 = scmp.eq.s32.totalorder %s27, 0
      %p190 = por %p188, %p189
      %p191 = scmp.ne.s32.totalorder %s177, %s178
      %p192 = scmp.eq.s32.totalorder %s28, 1
      %p193 = por %p191, %p192
      %p195 = scmp.ne.s32.totalorder %s178, %s194
      %p196 = scmp.eq.s32.totalorder %s28, 0
      %p197 = por %p195, %p196
      %p198 = scmp.le.s32.totalorder 1, %s22
      %p199 = scmp.lt.s32.totalorder %s22, 3
      %p200 = pnand %p198, %p199
      %p201 = pneg %p200
      // Predicated region
      $region9: #{tpu_custom_call.1} parent=5 // pred_check
        _
      $region10: #{tpu_custom_call.1} parent=5 // pred_check_branch
        %203 = sbr.rel (%p200) target = $region12
      $region11: #{tpu_custom_call.1} parent=5 // pred_region
        %s204 = ssub.s32 %s22, 1
        // Predicated region
        $region13: #{tpu_custom_call.1} parent=11 // pred_check
          %p205 = pneg %p86
        $region14: #{tpu_custom_call.1} parent=11 // pred_check_branch
          %207 = sbr.rel (%p205) target = $region16
        $region15: #{tpu_custom_call.1} parent=11 // pred_region
          %s208 = smul.u32 64, %s32
          %s210 = ssub.s32 8192, 8192
          %211 = vsyncadd [#allocation9], %s210
          %s212 = smul.addr %s208, 128
          %s213 = scalar_lea.hbm %s1, %s212
          %s214 = sshll.u32 [#allocation8], 4
          %s215 = int_to_ptr.vmem [resolvable:$true] %s214
          %220 = dma.hbm_to_vmem [thread:$0]  %s213, 8192, %s215, [#allocation9], 128, 128, 8
        $region16: #{tpu_custom_call.1} parent=11 // pred_fallthru
          _
        // Predicated region
        $region17: #{tpu_custom_call.1} parent=11 // pred_check
          %p221 = pneg %p138
        $region18: #{tpu_custom_call.1} parent=11 // pred_check_branch
          %223 = sbr.rel (%p221) target = $region20
        $region19: #{tpu_custom_call.1} parent=11 // pred_region
          %s224 = smul.u32 4, %s32
          %s226 = ssub.s32 512, 512
          %227 = vsyncadd [#allocation9], %s226
          %s228 = smul.addr %s224, 128
          %s229 = scalar_lea.hbm %s3, %s228
          %s231 = sshll.u32 [#allocation11], 4
          %s232 = int_to_ptr.vmem [resolvable:$true] %s231
          %234 = dma.hbm_to_vmem [thread:$0]  %s229, 512, %s232, [#allocation9]
        $region20: #{tpu_custom_call.1} parent=11 // pred_fallthru
          _
      $region12: #{tpu_custom_call.1} parent=5 // pred_fallthru
        _
      %p235 = scmp.lt.s32.totalorder %s22, 2
      // Predicated region
      $region21: #{tpu_custom_call.1} parent=5 // pred_check
        %p236 = pneg %p235
      $region22: #{tpu_custom_call.1} parent=5 // pred_check_branch
        %238 = sbr.rel (%p236) target = $region24
      $region23: #{tpu_custom_call.1} parent=5 // pred_region
        // Predicated region
        $region25: #{tpu_custom_call.1} parent=23 // pred_check
          %p239 = pneg %p54
        $region26: #{tpu_custom_call.1} parent=23 // pred_check_branch
          %241 = sbr.rel (%p239) target = $region28
        $region27: #{tpu_custom_call.1} parent=23 // pred_region
          %s242 = sand.u32 %s22, 1
          %s243 = scalar_lea.sflag [#allocation6], %s242
          %s244 = sand.u32 %s44, 1
          %s245 = smul.addr %s244, 256
          %s246 = scalar_lea.vmem [#allocation5], %s245
          %s247 = smul.u32 32, %s29
          %s249 = ssub.s32 4096, 4096
          %250 = vsyncadd %s243, %s249
          %s251 = smul.addr %s247, 128
          %s252 = scalar_lea.hbm %s0, %s251
          %s253 = sshll.u32 %s246, 4
          %s254 = int_to_ptr.vmem [resolvable:$true] %s253
          %259 = dma.hbm_to_vmem [thread:$0]  %s252, 4096, %s254, %s243, 128, 128, 8
        $region28: #{tpu_custom_call.1} parent=23 // pred_fallthru
          _
        // Predicated region
        $region29: #{tpu_custom_call.1} parent=23 // pred_check
          %p260 = pneg %p106
        $region30: #{tpu_custom_call.1} parent=23 // pred_check_branch
          %262 = sbr.rel (%p260) target = $region32
        $region31: #{tpu_custom_call.1} parent=23 // pred_region
          %s263 = sand.u32 %s22, 1
          %s264 = scalar_lea.sflag [#allocation6], %s263
          %s265 = sand.u32 %s96, 1
          %s266 = smul.addr %s265, 256
          %s267 = scalar_lea.vmem [#allocation10], %s266
          %s268 = smul.u32 32, %s29
          %s270 = ssub.s32 4096, 4096
          %271 = vsyncadd %s264, %s270
          %s272 = smul.addr %s268, 128
          %s273 = scalar_lea.hbm %s2, %s272
          %s274 = sshll.u32 %s267, 4
          %s275 = int_to_ptr.vmem [resolvable:$true] %s274
          %280 = dma.hbm_to_vmem [thread:$0]  %s273, 4096, %s275, %s264, 128, 128, 8
        $region32: #{tpu_custom_call.1} parent=23 // pred_fallthru
          _
      $region24: #{tpu_custom_call.1} parent=5 // pred_fallthru
        _
      %p281 = scmp.le.s32.totalorder 1, %s22
      %p282 = scmp.lt.s32.totalorder %s22, 3
      %p283 = pnand %p281, %p282
      %p284 = pneg %p283
      // Predicated region
      $region33: #{tpu_custom_call.1} parent=5 // pred_check
        _
      $region34: #{tpu_custom_call.1} parent=5 // pred_check_branch
        %286 = sbr.rel (%p283) target = $region36
      $region35: #{tpu_custom_call.1} parent=5 // pred_region
        %s287 = ssub.s32 %s22, 1
        %s288 = sand.u32 %s27, 1
        %s289 = scalar_lea.sflag [#allocation6], %s288
        %s290 = sand.u32 %s47, 1
        %s291 = smul.addr %s290, 256
        %s292 = scalar_lea.vmem [#allocation5], %s291
        // Predicated region
        $region37: #{tpu_custom_call.1} parent=35 // pred_check
          %p293 = pneg %p60
        $region38: #{tpu_custom_call.1} parent=35 // pred_check_branch
          %295 = sbr.rel (%p293) target = $region40
        $region39: #{tpu_custom_call.1} parent=35 // pred_region
          %296 = dma.done %s289, 4096
        $region40: #{tpu_custom_call.1} parent=35 // pred_fallthru
          _
        // Predicated region
        $region41: #{tpu_custom_call.1} parent=35 // pred_check
          %p297 = pneg %p86
        $region42: #{tpu_custom_call.1} parent=35 // pred_check_branch
          %299 = sbr.rel (%p297) target = $region44
        $region43: #{tpu_custom_call.1} parent=35 // pred_region
          %300 = dma.done [#allocation9], 8192
        $region44: #{tpu_custom_call.1} parent=35 // pred_fallthru
          _
        %s301 = sand.u32 %s27, 1
        %s302 = scalar_lea.sflag [#allocation6], %s301
        %s303 = sand.u32 %s99, 1
        %s304 = smul.addr %s303, 256
        %s305 = scalar_lea.vmem [#allocation10], %s304
        // Predicated region
        $region45: #{tpu_custom_call.1} parent=35 // pred_check
          %p306 = pneg %p112
        $region46: #{tpu_custom_call.1} parent=35 // pred_check_branch
          %308 = sbr.rel (%p306) target = $region48
        $region47: #{tpu_custom_call.1} parent=35 // pred_region
          %309 = dma.done %s302, 4096
        $region48: #{tpu_custom_call.1} parent=35 // pred_fallthru
          _
        // Predicated region
        $region49: #{tpu_custom_call.1} parent=35 // pred_check
          %p310 = pneg %p138
        $region50: #{tpu_custom_call.1} parent=35 // pred_check_branch
          %312 = sbr.rel (%p310) target = $region52
        $region51: #{tpu_custom_call.1} parent=35 // pred_region
          %313 = dma.done [#allocation9], 512
        $region52: #{tpu_custom_call.1} parent=35 // pred_fallthru
          _
        %s314 = sand.u32 %s27, 1
        %s315 = scalar_lea.sflag [#allocation6], %s314
        %s316 = sand.u32 %s47, 1
        %s317 = smul.addr %s316, 256
        %s318 = scalar_lea.vmem [#allocation5], %s317
        %p319 = pneg %p60
        %p320 = pneg %p57
        %p321 = pneg %p86
        %p322 = pneg %p83
        %s323 = sand.u32 %s27, 1
        %s324 = scalar_lea.sflag [#allocation6], %s323
        %s325 = sand.u32 %s99, 1
        %s326 = smul.addr %s325, 256
        %s327 = scalar_lea.vmem [#allocation10], %s326
        %p328 = pneg %p112
        %p329 = pneg %p109
        %p330 = pneg %p138
        %p331 = pneg %p135
        %p332 = pneg %p164
        %p333 = pneg %p161
        %s334 = sand.u32 %s151, 1
        %s335 = scalar_lea.sflag [#allocation7], %s334
        %s336 = sand.u32 %s151, 1
        %s337 = smul.addr %s336, 256
        %s338 = scalar_lea.vmem [#allocation12], %s337
        %p339 = pneg %p190
        %p340 = pneg %p187
        %s341 = sand.u32 %s177, 1
        %s342 = scalar_lea.sflag [#allocation14], %s341
        %s343 = sand.u32 %s177, 1
        %s344 = smul.addr %s343, 256
        %s345 = scalar_lea.vmem [#allocation13], %s344
        %s346 = smul.u32 32, %s31
        %s347 = smul.u32 64, %s32
        %s348 = smul.u32 32, %s31
        %s349 = smul.u32 4, %s32
        %s350 = smul.u32 32, %s31
        %s351 = smul.u32 32, %s31
        %p352 = scmp.eq.s32.totalorder %s32, 0
        // Predicated region
        $region53: #{tpu_custom_call.1} parent=35 // pred_check
          %p353 = pneg %p352
        $region54: #{tpu_custom_call.1} parent=35 // pred_check_branch
          %355 = sbr.rel (%p353) target = $region56
        $region55: #{tpu_custom_call.1} parent=35 // pred_region
          %vm356 = vcmask 7168
          %357 = vst.msk [vmem:[#allocation2] sm:$0xff] %vm356, -inf
          %358 = vst.msk [vmem:[#allocation2 + $0x8] sm:$0xff] %vm356, -inf
          %359 = vst.msk [vmem:[#allocation2 + $0x10] sm:$0xff] %vm356, -inf
          %360 = vst.msk [vmem:[#allocation2 + $0x18] sm:$0xff] %vm356, -inf
          %361 = vst.msk [vmem:[#allocation2 + $0x20] sm:$0xff] %vm356, -inf
          %362 = vst.msk [vmem:[#allocation2 + $0x28] sm:$0xff] %vm356, -inf
          %363 = vst.msk [vmem:[#allocation2 + $0x30] sm:$0xff] %vm356, -inf
          %364 = vst.msk [vmem:[#allocation2 + $0x38] sm:$0xff] %vm356, -inf
          %365 = vst.msk [vmem:[#allocation2 + $0x40] sm:$0xff] %vm356, -inf
          %366 = vst.msk [vmem:[#allocation2 + $0x48] sm:$0xff] %vm356, -inf
          %367 = vst.msk [vmem:[#allocation2 + $0x50] sm:$0xff] %vm356, -inf
          %368 = vst.msk [vmem:[#allocation2 + $0x58] sm:$0xff] %vm356, -inf
          %369 = vst.msk [vmem:[#allocation2 + $0x60] sm:$0xff] %vm356, -inf
          %370 = vst.msk [vmem:[#allocation2 + $0x68] sm:$0xff] %vm356, -inf
          %371 = vst.msk [vmem:[#allocation2 + $0x70] sm:$0xff] %vm356, -inf
          %372 = vst.msk [vmem:[#allocation2 + $0x78] sm:$0xff] %vm356, -inf
          %373 = vst.msk [vmem:[#allocation2 + $0x80] sm:$0xff] %vm356, -inf
          %374 = vst.msk [vmem:[#allocation2 + $0x88] sm:$0xff] %vm356, -inf
          %375 = vst.msk [vmem:[#allocation2 + $0x90] sm:$0xff] %vm356, -inf
          %376 = vst.msk [vmem:[#allocation2 + $0x98] sm:$0xff] %vm356, -inf
          %377 = vst.msk [vmem:[#allocation2 + $0xa0] sm:$0xff] %vm356, -inf
          %378 = vst.msk [vmem:[#allocation2 + $0xa8] sm:$0xff] %vm356, -inf
          %379 = vst.msk [vmem:[#allocation2 + $0xb0] sm:$0xff] %vm356, -inf
          %380 = vst.msk [vmem:[#allocation2 + $0xb8] sm:$0xff] %vm356, -inf
          %381 = vst.msk [vmem:[#allocation2 + $0xc0] sm:$0xff] %vm356, -inf
          %382 = vst.msk [vmem:[#allocation2 + $0xc8] sm:$0xff] %vm356, -inf
          %383 = vst.msk [vmem:[#allocation2 + $0xd0] sm:$0xff] %vm356, -inf
          %384 = vst.msk [vmem:[#allocation2 + $0xd8] sm:$0xff] %vm356, -inf
          %385 = vst.msk [vmem:[#allocation2 + $0xe0] sm:$0xff] %vm356, -inf
          %386 = vst.msk [vmem:[#allocation2 + $0xe8] sm:$0xff] %vm356, -inf
          %387 = vst.msk [vmem:[#allocation2 + $0xf0] sm:$0xff] %vm356, -inf
          %388 = vst.msk [vmem:[#allocation2 + $0xf8] sm:$0xff] %vm356, -inf
          %389 = vst.msk [vmem:[#allocation3] sm:$0xff] %vm356, 0.0
          %390 = vst.msk [vmem:[#allocation3 + $0x8] sm:$0xff] %vm356, 0.0
          %391 = vst.msk [vmem:[#allocation3 + $0x10] sm:$0xff] %vm356, 0.0
          %392 = vst.msk [vmem:[#allocation3 + $0x18] sm:$0xff] %vm356, 0.0
          %393 = vst.msk [vmem:[#allocation3 + $0x20] sm:$0xff] %vm356, 0.0
          %394 = vst.msk [vmem:[#allocation3 + $0x28] sm:$0xff] %vm356, 0.0
          %395 = vst.msk [vmem:[#allocation3 + $0x30] sm:$0xff] %vm356, 0.0
          %396 = vst.msk [vmem:[#allocation3 + $0x38] sm:$0xff] %vm356, 0.0
          %397 = vst.msk [vmem:[#allocation3 + $0x40] sm:$0xff] %vm356, 0.0
          %398 = vst.msk [vmem:[#allocation3 + $0x48] sm:$0xff] %vm356, 0.0
          %399 = vst.msk [vmem:[#allocation3 + $0x50] sm:$0xff] %vm356, 0.0
          %400 = vst.msk [vmem:[#allocation3 + $0x58] sm:$0xff] %vm356, 0.0
          %401 = vst.msk [vmem:[#allocation3 + $0x60] sm:$0xff] %vm356, 0.0
          %402 = vst.msk [vmem:[#allocation3 + $0x68] sm:$0xff] %vm356, 0.0
          %403 = vst.msk [vmem:[#allocation3 + $0x70] sm:$0xff] %vm356, 0.0
          %404 = vst.msk [vmem:[#allocation3 + $0x78] sm:$0xff] %vm356, 0.0
          %405 = vst.msk [vmem:[#allocation3 + $0x80] sm:$0xff] %vm356, 0.0
          %406 = vst.msk [vmem:[#allocation3 + $0x88] sm:$0xff] %vm356, 0.0
          %407 = vst.msk [vmem:[#allocation3 + $0x90] sm:$0xff] %vm356, 0.0
          %408 = vst.msk [vmem:[#allocation3 + $0x98] sm:$0xff] %vm356, 0.0
          %409 = vst.msk [vmem:[#allocation3 + $0xa0] sm:$0xff] %vm356, 0.0
          %410 = vst.msk [vmem:[#allocation3 + $0xa8] sm:$0xff] %vm356, 0.0
          %411 = vst.msk [vmem:[#allocation3 + $0xb0] sm:$0xff] %vm356, 0.0
          %412 = vst.msk [vmem:[#allocation3 + $0xb8] sm:$0xff] %vm356, 0.0
          %413 = vst.msk [vmem:[#allocation3 + $0xc0] sm:$0xff] %vm356, 0.0
          %414 = vst.msk [vmem:[#allocation3 + $0xc8] sm:$0xff] %vm356, 0.0
          %415 = vst.msk [vmem:[#allocation3 + $0xd0] sm:$0xff] %vm356, 0.0
          %416 = vst.msk [vmem:[#allocation3 + $0xd8] sm:$0xff] %vm356, 0.0
          %417 = vst.msk [vmem:[#allocation3 + $0xe0] sm:$0xff] %vm356, 0.0
          %418 = vst.msk [vmem:[#allocation3 + $0xe8] sm:$0xff] %vm356, 0.0
          %419 = vst.msk [vmem:[#allocation3 + $0xf0] sm:$0xff] %vm356, 0.0
          %420 = vst.msk [vmem:[#allocation3 + $0xf8] sm:$0xff] %vm356, 0.0
          %421 = vst.msk [vmem:[#allocation4] sm:$0xff] %vm356, 0.0
          %422 = vst.msk [vmem:[#allocation4 + $0x8] sm:$0xff] %vm356, 0.0
          %423 = vst.msk [vmem:[#allocation4 + $0x10] sm:$0xff] %vm356, 0.0
          %424 = vst.msk [vmem:[#allocation4 + $0x18] sm:$0xff] %vm356, 0.0
          %425 = vst.msk [vmem:[#allocation4 + $0x20] sm:$0xff] %vm356, 0.0
          %426 = vst.msk [vmem:[#allocation4 + $0x28] sm:$0xff] %vm356, 0.0
          %427 = vst.msk [vmem:[#allocation4 + $0x30] sm:$0xff] %vm356, 0.0
          %428 = vst.msk [vmem:[#allocation4 + $0x38] sm:$0xff] %vm356, 0.0
          %429 = vst.msk [vmem:[#allocation4 + $0x40] sm:$0xff] %vm356, 0.0
          %430 = vst.msk [vmem:[#allocation4 + $0x48] sm:$0xff] %vm356, 0.0
          %431 = vst.msk [vmem:[#allocation4 + $0x50] sm:$0xff] %vm356, 0.0
          %432 = vst.msk [vmem:[#allocation4 + $0x58] sm:$0xff] %vm356, 0.0
          %433 = vst.msk [vmem:[#allocation4 + $0x60] sm:$0xff] %vm356, 0.0
          %434 = vst.msk [vmem:[#allocation4 + $0x68] sm:$0xff] %vm356, 0.0
          %435 = vst.msk [vmem:[#allocation4 + $0x70] sm:$0xff] %vm356, 0.0
          %436 = vst.msk [vmem:[#allocation4 + $0x78] sm:$0xff] %vm356, 0.0
          %437 = vst.msk [vmem:[#allocation4 + $0x80] sm:$0xff] %vm356, 0.0
          %438 = vst.msk [vmem:[#allocation4 + $0x88] sm:$0xff] %vm356, 0.0
          %439 = vst.msk [vmem:[#allocation4 + $0x90] sm:$0xff] %vm356, 0.0
          %440 = vst.msk [vmem:[#allocation4 + $0x98] sm:$0xff] %vm356, 0.0
          %441 = vst.msk [vmem:[#allocation4 + $0xa0] sm:$0xff] %vm356, 0.0
          %442 = vst.msk [vmem:[#allocation4 + $0xa8] sm:$0xff] %vm356, 0.0
          %443 = vst.msk [vmem:[#allocation4 + $0xb0] sm:$0xff] %vm356, 0.0
          %444 = vst.msk [vmem:[#allocation4 + $0xb8] sm:$0xff] %vm356, 0.0
          %445 = vst.msk [vmem:[#allocation4 + $0xc0] sm:$0xff] %vm356, 0.0
          %446 = vst.msk [vmem:[#allocation4 + $0xc8] sm:$0xff] %vm356, 0.0
          %447 = vst.msk [vmem:[#allocation4 + $0xd0] sm:$0xff] %vm356, 0.0
          %448 = vst.msk [vmem:[#allocation4 + $0xd8] sm:$0xff] %vm356, 0.0
          %449 = vst.msk [vmem:[#allocation4 + $0xe0] sm:$0xff] %vm356, 0.0
          %450 = vst.msk [vmem:[#allocation4 + $0xe8] sm:$0xff] %vm356, 0.0
          %451 = vst.msk [vmem:[#allocation4 + $0xf0] sm:$0xff] %vm356, 0.0
          %452 = vst.msk [vmem:[#allocation4 + $0xf8] sm:$0xff] %vm356, 0.0
        $region56: #{tpu_custom_call.1} parent=35 // pred_fallthru
          _
        %v453 = vld [vmem:[%s292] sm:$0xff]
        %v454 = vld [vmem:[%s292 + $0x8] sm:$0xff]
        %v455 = vld [vmem:[%s292 + $0x10] sm:$0xff]
        %v456 = vld [vmem:[%s292 + $0x18] sm:$0xff]
        %v457 = vld [vmem:[%s292 + $0x20] sm:$0xff]
        %v458 = vld [vmem:[%s292 + $0x28] sm:$0xff]
        %v459 = vld [vmem:[%s292 + $0x30] sm:$0xff]
        %v460 = vld [vmem:[%s292 + $0x38] sm:$0xff]
        %v461 = vld [vmem:[%s292 + $0x40] sm:$0xff]
        %v462 = vld [vmem:[%s292 + $0x48] sm:$0xff]
        %v463 = vld [vmem:[%s292 + $0x50] sm:$0xff]
        %v464 = vld [vmem:[%s292 + $0x58] sm:$0xff]
        %v465 = vld [vmem:[%s292 + $0x60] sm:$0xff]
        %v466 = vld [vmem:[%s292 + $0x68] sm:$0xff]
        %v467 = vld [vmem:[%s292 + $0x70] sm:$0xff]
        %v468 = vld [vmem:[%s292 + $0x78] sm:$0xff]
        %v469 = vld [vmem:[%s292 + $0x80] sm:$0xff]
        %v470 = vld [vmem:[%s292 + $0x88] sm:$0xff]
        %v471 = vld [vmem:[%s292 + $0x90] sm:$0xff]
        %v472 = vld [vmem:[%s292 + $0x98] sm:$0xff]
        %v473 = vld [vmem:[%s292 + $0xa0] sm:$0xff]
        %v474 = vld [vmem:[%s292 + $0xa8] sm:$0xff]
        %v475 = vld [vmem:[%s292 + $0xb0] sm:$0xff]
        %v476 = vld [vmem:[%s292 + $0xb8] sm:$0xff]
        %v477 = vld [vmem:[%s292 + $0xc0] sm:$0xff]
        %v478 = vld [vmem:[%s292 + $0xc8] sm:$0xff]
        %v479 = vld [vmem:[%s292 + $0xd0] sm:$0xff]
        %v480 = vld [vmem:[%s292 + $0xd8] sm:$0xff]
        %v481 = vld [vmem:[%s292 + $0xe0] sm:$0xff]
        %v482 = vld [vmem:[%s292 + $0xe8] sm:$0xff]
        %v483 = vld [vmem:[%s292 + $0xf0] sm:$0xff]
        %v484 = vld [vmem:[%s292 + $0xf8] sm:$0xff]
        %v485 = vld [vmem:[#allocation8] sm:$0xff]
        %v486 = vld [vmem:[#allocation8 + $0x8] sm:$0xff]
        %v487 = vld [vmem:[#allocation8 + $0x10] sm:$0xff]
        %v488 = vld [vmem:[#allocation8 + $0x18] sm:$0xff]
        %v489 = vld [vmem:[#allocation8 + $0x20] sm:$0xff]
        %v490 = vld [vmem:[#allocation8 + $0x28] sm:$0xff]
        %v491 = vld [vmem:[#allocation8 + $0x30] sm:$0xff]
        %v492 = vld [vmem:[#allocation8 + $0x38] sm:$0xff]
        %v493 = vld [vmem:[#allocation8 + $0x40] sm:$0xff]
        %v494 = vld [vmem:[#allocation8 + $0x48] sm:$0xff]
        %v495 = vld [vmem:[#allocation8 + $0x50] sm:$0xff]
        %v496 = vld [vmem:[#allocation8 + $0x58] sm:$0xff]
        %v497 = vld [vmem:[#allocation8 + $0x60] sm:$0xff]
        %v498 = vld [vmem:[#allocation8 + $0x68] sm:$0xff]
        %v499 = vld [vmem:[#allocation8 + $0x70] sm:$0xff]
        %v500 = vld [vmem:[#allocation8 + $0x78] sm:$0xff]
        %v501 = vld [vmem:[#allocation8 + $0x80] sm:$0xff]
        %v502 = vld [vmem:[#allocation8 + $0x88] sm:$0xff]
        %v503 = vld [vmem:[#allocation8 + $0x90] sm:$0xff]
        %v504 = vld [vmem:[#allocation8 + $0x98] sm:$0xff]
        %v505 = vld [vmem:[#allocation8 + $0xa0] sm:$0xff]
        %v506 = vld [vmem:[#allocation8 + $0xa8] sm:$0xff]
        %v507 = vld [vmem:[#allocation8 + $0xb0] sm:$0xff]
        %v508 = vld [vmem:[#allocation8 + $0xb8] sm:$0xff]
        %v509 = vld [vmem:[#allocation8 + $0xc0] sm:$0xff]
        %v510 = vld [vmem:[#allocation8 + $0xc8] sm:$0xff]
        %v511 = vld [vmem:[#allocation8 + $0xd0] sm:$0xff]
        %v512 = vld [vmem:[#allocation8 + $0xd8] sm:$0xff]
        %v513 = vld [vmem:[#allocation8 + $0xe0] sm:$0xff]
        %v514 = vld [vmem:[#allocation8 + $0xe8] sm:$0xff]
        %v515 = vld [vmem:[#allocation8 + $0xf0] sm:$0xff]
        %v516 = vld [vmem:[#allocation8 + $0xf8] sm:$0xff]
        %v517 = vld [vmem:[#allocation8 + $0x100] sm:$0xff]
        %v518 = vld [vmem:[#allocation8 + $0x108] sm:$0xff]
        %v519 = vld [vmem:[#allocation8 + $0x110] sm:$0xff]
        %v520 = vld [vmem:[#allocation8 + $0x118] sm:$0xff]
        %v521 = vld [vmem:[#allocation8 + $0x120] sm:$0xff]
        %v522 = vld [vmem:[#allocation8 + $0x128] sm:$0xff]
        %v523 = vld [vmem:[#allocation8 + $0x130] sm:$0xff]
        %v524 = vld [vmem:[#allocation8 + $0x138] sm:$0xff]
        %v525 = vld [vmem:[#allocation8 + $0x140] sm:$0xff]
        %v526 = vld [vmem:[#allocation8 + $0x148] sm:$0xff]
        %v527 = vld [vmem:[#allocation8 + $0x150] sm:$0xff]
        %v528 = vld [vmem:[#allocation8 + $0x158] sm:$0xff]
        %v529 = vld [vmem:[#allocation8 + $0x160] sm:$0xff]
        %v530 = vld [vmem:[#allocation8 + $0x168] sm:$0xff]
        %v531 = vld [vmem:[#allocation8 + $0x170] sm:$0xff]
        %v532 = vld [vmem:[#allocation8 + $0x178] sm:$0xff]
        %v533 = vld [vmem:[#allocation8 + $0x180] sm:$0xff]
        %v534 = vld [vmem:[#allocation8 + $0x188] sm:$0xff]
        %v535 = vld [vmem:[#allocation8 + $0x190] sm:$0xff]
        %v536 = vld [vmem:[#allocation8 + $0x198] sm:$0xff]
        %v537 = vld [vmem:[#allocation8 + $0x1a0] sm:$0xff]
        %v538 = vld [vmem:[#allocation8 + $0x1a8] sm:$0xff]
        %v539 = vld [vmem:[#allocation8 + $0x1b0] sm:$0xff]
        %v540 = vld [vmem:[#allocation8 + $0x1b8] sm:$0xff]
        %v541 = vld [vmem:[#allocation8 + $0x1c0] sm:$0xff]
        %v542 = vld [vmem:[#allocation8 + $0x1c8] sm:$0xff]
        %v543 = vld [vmem:[#allocation8 + $0x1d0] sm:$0xff]
        %v544 = vld [vmem:[#allocation8 + $0x1d8] sm:$0xff]
        %v545 = vld [vmem:[#allocation8 + $0x1e0] sm:$0xff]
        %v546 = vld [vmem:[#allocation8 + $0x1e8] sm:$0xff]
        %v547 = vld [vmem:[#allocation8 + $0x1f0] sm:$0xff]
        %v548 = vld [vmem:[#allocation8 + $0x1f8] sm:$0xff]
        %549 = vmatprep.subr.mxu0 0.0
        %550 = vmatpush1.xpose.msra.mxu0 %v500
        %551 = vmatprep.subr.mxu0 0.0
        %552 = vmatpush1.xpose.msra.mxu0 %v499
        %553 = vmatprep.subr.mxu0 0.0
        %554 = vmatpush1.xpose.msra.mxu0 %v498
        %555 = vmatprep.subr.mxu0 0.0
        %556 = vmatpush1.xpose.msra.mxu0 %v497
        %557 = vmatprep.subr.mxu0 0.0
        %558 = vmatpush1.xpose.msra.mxu0 %v496
        %559 = vmatprep.subr.mxu0 0.0
        %560 = vmatpush1.xpose.msra.mxu0 %v495
        %561 = vmatprep.subr.mxu0 0.0
        %562 = vmatpush1.xpose.msra.mxu0 %v494
        %563 = vmatprep.subr.mxu0 0.0
        %564 = vmatpush1.xpose.msra.mxu0 %v493
        %565 = vmatprep.subr.mxu0 0.0
        %566 = vmatpush1.xpose.msra.mxu0 %v492
        %567 = vmatprep.subr.mxu0 0.0
        %568 = vmatpush1.xpose.msra.mxu0 %v491
        %569 = vmatprep.subr.mxu0 0.0
        %570 = vmatpush1.xpose.msra.mxu0 %v490
        %571 = vmatprep.subr.mxu0 0.0
        %572 = vmatpush1.xpose.msra.mxu0 %v489
        %573 = vmatprep.subr.mxu0 0.0
        %574 = vmatpush1.xpose.msra.mxu0 %v488
        %575 = vmatprep.subr.mxu0 0.0
        %576 = vmatpush1.xpose.msra.mxu0 %v487
        %577 = vmatprep.subr.mxu0 0.0
        %578 = vmatpush1.xpose.msra.mxu0 %v486
        %579 = vmatprep.subr.mxu0 0.0
        %580 = vmatpush1.xpose.msra.mxu0 %v485
        %581 = vmatprep.subr.mxu0 0.0
        %582 = vmatpush2.xpose.msra.mxu0 %v516
        %583 = vmatprep.subr.mxu0 0.0
        %584 = vmatpush2.xpose.msra.mxu0 %v515
        %585 = vmatprep.subr.mxu0 0.0
        %586 = vmatpush2.xpose.msra.mxu0 %v514
        %587 = vmatprep.subr.mxu0 0.0
        %588 = vmatpush2.xpose.msra.mxu0 %v513
        %589 = vmatprep.subr.mxu0 0.0
        %590 = vmatpush2.xpose.msra.mxu0 %v512
        %591 = vmatprep.subr.mxu0 0.0
        %592 = vmatpush2.xpose.msra.mxu0 %v511
        %593 = vmatprep.subr.mxu0 0.0
        %594 = vmatpush2.xpose.msra.mxu0 %v510
        %595 = vmatprep.subr.mxu0 0.0
        %596 = vmatpush2.xpose.msra.mxu0 %v509
        %597 = vmatprep.subr.mxu0 0.0
        %598 = vmatpush2.xpose.msra.mxu0 %v508
        %599 = vmatprep.subr.mxu0 0.0
        %600 = vmatpush2.xpose.msra.mxu0 %v507
        %601 = vmatprep.subr.mxu0 0.0
        %602 = vmatpush2.xpose.msra.mxu0 %v506
        %603 = vmatprep.subr.mxu0 0.0
        %604 = vmatpush2.xpose.msra.mxu0 %v505
        %605 = vmatprep.subr.mxu0 0.0
        %606 = vmatpush2.xpose.msra.mxu0 %v504
        %607 = vmatprep.subr.mxu0 0.0
        %608 = vmatpush2.xpose.msra.mxu0 %v503
        %609 = vmatprep.subr.mxu0 0.0
        %610 = vmatpush2.xpose.msra.mxu0 %v502
        %611 = vmatprep.subr.mxu0 0.0
        %612 = vmatpush2.xpose.msra.mxu0 %v501
        %613 = vmatprep.mubr.f32.mxu0 0.0
        %614 = vmatmul.mubr.f32.gmra.mxu0 %v453
        %v615 = vpop.f32.mrf.mxu0
        %v616 = vadd.f32 0.0, %v615
        %v617 = vpop.f32.mrf.mxu0
        %v618 = vadd.f32 0.0, %v617
        %619 = vmatprep.mubr.f32.mxu0 0.0
        %620 = vmatmul.mubr.f32.gmra.mxu0 %v454
        %v621 = vpop.f32.mrf.mxu0
        %v622 = vadd.f32 0.0, %v621
        %v623 = vpop.f32.mrf.mxu0
        %v624 = vadd.f32 0.0, %v623
        %625 = vmatprep.mubr.f32.mxu0 0.0
        %626 = vmatmul.mubr.f32.gmra.mxu0 %v455
        %v627 = vpop.f32.mrf.mxu0
        %v628 = vadd.f32 0.0, %v627
        %v629 = vpop.f32.mrf.mxu0
        %v630 = vadd.f32 0.0, %v629
        %631 = vmatprep.mubr.f32.mxu0 0.0
        %632 = vmatmul.mubr.f32.gmra.mxu0 %v456
        %v633 = vpop.f32.mrf.mxu0
        %v634 = vadd.f32 0.0, %v633
        %v635 = vpop.f32.mrf.mxu0
        %v636 = vadd.f32 0.0, %v635
        %637 = vmatprep.mubr.f32.mxu0 0.0
        %638 = vmatmul.mubr.f32.gmra.mxu0 %v457
        %v639 = vpop.f32.mrf.mxu0
        %v640 = vadd.f32 0.0, %v639
        %v641 = vpop.f32.mrf.mxu0
        %v642 = vadd.f32 0.0, %v641
        %643 = vmatprep.mubr.f32.mxu0 0.0
        %644 = vmatmul.mubr.f32.gmra.mxu0 %v458
        %v645 = vpop.f32.mrf.mxu0
        %v646 = vadd.f32 0.0, %v645
        %v647 = vpop.f32.mrf.mxu0
        %v648 = vadd.f32 0.0, %v647
        %649 = vmatprep.mubr.f32.mxu0 0.0
        %650 = vmatmul.mubr.f32.gmra.mxu0 %v459
        %v651 = vpop.f32.mrf.mxu0
        %v652 = vadd.f32 0.0, %v651
        %v653 = vpop.f32.mrf.mxu0
        %v654 = vadd.f32 0.0, %v653
        %655 = vmatprep.mubr.f32.mxu0 0.0
        %656 = vmatmul.mubr.f32.gmra.mxu0 %v460
        %v657 = vpop.f32.mrf.mxu0
        %v658 = vadd.f32 0.0, %v657
        %v659 = vpop.f32.mrf.mxu0
        %v660 = vadd.f32 0.0, %v659
        %661 = vmatprep.mubr.f32.mxu0 0.0
        %662 = vmatmul.mubr.f32.gmra.mxu0 %v461
        %v663 = vpop.f32.mrf.mxu0
        %v664 = vadd.f32 0.0, %v663
        %v665 = vpop.f32.mrf.mxu0
        %v666 = vadd.f32 0.0, %v665
        %667 = vmatprep.mubr.f32.mxu0 0.0
        %668 = vmatmul.mubr.f32.gmra.mxu0 %v462
        %v669 = vpop.f32.mrf.mxu0
        %v670 = vadd.f32 0.0, %v669
        %v671 = vpop.f32.mrf.mxu0
        %v672 = vadd.f32 0.0, %v671
        %673 = vmatprep.mubr.f32.mxu0 0.0
        %674 = vmatmul.mubr.f32.gmra.mxu0 %v463
        %v675 = vpop.f32.mrf.mxu0
        %v676 = vadd.f32 0.0, %v675
        %v677 = vpop.f32.mrf.mxu0
        %v678 = vadd.f32 0.0, %v677
        %679 = vmatprep.mubr.f32.mxu0 0.0
        %680 = vmatmul.mubr.f32.gmra.mxu0 %v464
        %v681 = vpop.f32.mrf.mxu0
        %v682 = vadd.f32 0.0, %v681
        %v683 = vpop.f32.mrf.mxu0
        %v684 = vadd.f32 0.0, %v683
        %685 = vmatprep.mubr.f32.mxu0 0.0
        %686 = vmatmul.mubr.f32.gmra.mxu0 %v465
        %v687 = vpop.f32.mrf.mxu0
        %v688 = vadd.f32 0.0, %v687
        %v689 = vpop.f32.mrf.mxu0
        %v690 = vadd.f32 0.0, %v689
        %691 = vmatprep.mubr.f32.mxu0 0.0
        %692 = vmatmul.mubr.f32.gmra.mxu0 %v466
        %v693 = vpop.f32.mrf.mxu0
        %v694 = vadd.f32 0.0, %v693
        %v695 = vpop.f32.mrf.mxu0
        %v696 = vadd.f32 0.0, %v695
        %697 = vmatprep.mubr.f32.mxu0 0.0
        %698 = vmatmul.mubr.f32.gmra.mxu0 %v467
        %v699 = vpop.f32.mrf.mxu0
        %v700 = vadd.f32 0.0, %v699
        %v701 = vpop.f32.mrf.mxu0
        %v702 = vadd.f32 0.0, %v701
        %703 = vmatprep.mubr.f32.mxu0 0.0
        %704 = vmatmul.mubr.f32.gmra.mxu0 %v468
        %v705 = vpop.f32.mrf.mxu0
        %v706 = vadd.f32 0.0, %v705
        %v707 = vpop.f32.mrf.mxu0
        %v708 = vadd.f32 0.0, %v707
        %709 = vmatprep.mubr.f32.mxu0 0.0
        %710 = vmatmul.mubr.f32.gmra.mxu0 %v469
        %v711 = vpop.f32.mrf.mxu0
        %v712 = vadd.f32 0.0, %v711
        %v713 = vpop.f32.mrf.mxu0
        %v714 = vadd.f32 0.0, %v713
        %715 = vmatprep.mubr.f32.mxu0 0.0
        %716 = vmatmul.mubr.f32.gmra.mxu0 %v470
        %v717 = vpop.f32.mrf.mxu0
        %v718 = vadd.f32 0.0, %v717
        %v719 = vpop.f32.mrf.mxu0
        %v720 = vadd.f32 0.0, %v719
        %721 = vmatprep.mubr.f32.mxu0 0.0
        %722 = vmatmul.mubr.f32.gmra.mxu0 %v471
        %v723 = vpop.f32.mrf.mxu0
        %v724 = vadd.f32 0.0, %v723
        %v725 = vpop.f32.mrf.mxu0
        %v726 = vadd.f32 0.0, %v725
        %727 = vmatprep.mubr.f32.mxu0 0.0
        %728 = vmatmul.mubr.f32.gmra.mxu0 %v472
        %v729 = vpop.f32.mrf.mxu0
        %v730 = vadd.f32 0.0, %v729
        %v731 = vpop.f32.mrf.mxu0
        %v732 = vadd.f32 0.0, %v731
        %733 = vmatprep.mubr.f32.mxu0 0.0
        %734 = vmatmul.mubr.f32.gmra.mxu0 %v473
        %v735 = vpop.f32.mrf.mxu0
        %v736 = vadd.f32 0.0, %v735
        %v737 = vpop.f32.mrf.mxu0
        %v738 = vadd.f32 0.0, %v737
        %739 = vmatprep.mubr.f32.mxu0 0.0
        %740 = vmatmul.mubr.f32.gmra.mxu0 %v474
        %v741 = vpop.f32.mrf.mxu0
        %v742 = vadd.f32 0.0, %v741
        %v743 = vpop.f32.mrf.mxu0
        %v744 = vadd.f32 0.0, %v743
        %745 = vmatprep.mubr.f32.mxu0 0.0
        %746 = vmatmul.mubr.f32.gmra.mxu0 %v475
        %v747 = vpop.f32.mrf.mxu0
        %v748 = vadd.f32 0.0, %v747
        %v749 = vpop.f32.mrf.mxu0
        %v750 = vadd.f32 0.0, %v749
        %751 = vmatprep.mubr.f32.mxu0 0.0
        %752 = vmatmul.mubr.f32.gmra.mxu0 %v476
        %v753 = vpop.f32.mrf.mxu0
        %v754 = vadd.f32 0.0, %v753
        %v755 = vpop.f32.mrf.mxu0
        %v756 = vadd.f32 0.0, %v755
        %757 = vmatprep.mubr.f32.mxu0 0.0
        %758 = vmatmul.mubr.f32.gmra.mxu0 %v477
        %v759 = vpop.f32.mrf.mxu0
        %v760 = vadd.f32 0.0, %v759
        %v761 = vpop.f32.mrf.mxu0
        %v762 = vadd.f32 0.0, %v761
        %763 = vmatprep.mubr.f32.mxu0 0.0
        %764 = vmatmul.mubr.f32.gmra.mxu0 %v478
        %v765 = vpop.f32.mrf.mxu0
        %v766 = vadd.f32 0.0, %v765
        %v767 = vpop.f32.mrf.mxu0
        %v768 = vadd.f32 0.0, %v767
        %769 = vmatprep.mubr.f32.mxu0 0.0
        %770 = vmatmul.mubr.f32.gmra.mxu0 %v479
        %v771 = vpop.f32.mrf.mxu0
        %v772 = vadd.f32 0.0, %v771
        %v773 = vpop.f32.mrf.mxu0
        %v774 = vadd.f32 0.0, %v773
        %775 = vmatprep.mubr.f32.mxu0 0.0
        %776 = vmatmul.mubr.f32.gmra.mxu0 %v480
        %v777 = vpop.f32.mrf.mxu0
        %v778 = vadd.f32 0.0, %v777
        %v779 = vpop.f32.mrf.mxu0
        %v780 = vadd.f32 0.0, %v779
        %781 = vmatprep.mubr.f32.mxu0 0.0
        %782 = vmatmul.mubr.f32.gmra.mxu0 %v481
        %v783 = vpop.f32.mrf.mxu0
        %v784 = vadd.f32 0.0, %v783
        %v785 = vpop.f32.mrf.mxu0
        %v786 = vadd.f32 0.0, %v785
        %787 = vmatprep.mubr.f32.mxu0 0.0
        %788 = vmatmul.mubr.f32.gmra.mxu0 %v482
        %v789 = vpop.f32.mrf.mxu0
        %v790 = vadd.f32 0.0, %v789
        %v791 = vpop.f32.mrf.mxu0
        %v792 = vadd.f32 0.0, %v791
        %793 = vmatprep.mubr.f32.mxu0 0.0
        %794 = vmatmul.mubr.f32.gmra.mxu0 %v483
        %v795 = vpop.f32.mrf.mxu0
        %v796 = vadd.f32 0.0, %v795
        %v797 = vpop.f32.mrf.mxu0
        %v798 = vadd.f32 0.0, %v797
        %799 = vmatprep.mubr.f32.mxu0 0.0
        %800 = vmatmul.mubr.f32.gmra.mxu0 %v484
        %v801 = vpop.f32.mrf.mxu0
        %v802 = vadd.f32 0.0, %v801
        %v803 = vpop.f32.mrf.mxu0
        %v804 = vadd.f32 0.0, %v803
        %805 = vdwg.mxu0
        %806 = vmatprep.subr.mxu0 0.0
        %807 = vmatpush1.xpose.msra.mxu0 %v532
        %808 = vmatprep.subr.mxu0 0.0
        %809 = vmatpush1.xpose.msra.mxu0 %v531
        %810 = vmatprep.subr.mxu0 0.0
        %811 = vmatpush1.xpose.msra.mxu0 %v530
        %812 = vmatprep.subr.mxu0 0.0
        %813 = vmatpush1.xpose.msra.mxu0 %v529
        %814 = vmatprep.subr.mxu0 0.0
        %815 = vmatpush1.xpose.msra.mxu0 %v528
        %816 = vmatprep.subr.mxu0 0.0
        %817 = vmatpush1.xpose.msra.mxu0 %v527
        %818 = vmatprep.subr.mxu0 0.0
        %819 = vmatpush1.xpose.msra.mxu0 %v526
        %820 = vmatprep.subr.mxu0 0.0
        %821 = vmatpush1.xpose.msra.mxu0 %v525
        %822 = vmatprep.subr.mxu0 0.0
        %823 = vmatpush1.xpose.msra.mxu0 %v524
        %824 = vmatprep.subr.mxu0 0.0
        %825 = vmatpush1.xpose.msra.mxu0 %v523
        %826 = vmatprep.subr.mxu0 0.0
        %827 = vmatpush1.xpose.msra.mxu0 %v522
        %828 = vmatprep.subr.mxu0 0.0
        %829 = vmatpush1.xpose.msra.mxu0 %v521
        %830 = vmatprep.subr.mxu0 0.0
        %831 = vmatpush1.xpose.msra.mxu0 %v520
        %832 = vmatprep.subr.mxu0 0.0
        %833 = vmatpush1.xpose.msra.mxu0 %v519
        %834 = vmatprep.subr.mxu0 0.0
        %835 = vmatpush1.xpose.msra.mxu0 %v518
        %836 = vmatprep.subr.mxu0 0.0
        %837 = vmatpush1.xpose.msra.mxu0 %v517
        %838 = vmatprep.subr.mxu0 0.0
        %839 = vmatpush2.xpose.msra.mxu0 %v548
        %840 = vmatprep.subr.mxu0 0.0
        %841 = vmatpush2.xpose.msra.mxu0 %v547
        %842 = vmatprep.subr.mxu0 0.0
        %843 = vmatpush2.xpose.msra.mxu0 %v546
        %844 = vmatprep.subr.mxu0 0.0
        %845 = vmatpush2.xpose.msra.mxu0 %v545
        %846 = vmatprep.subr.mxu0 0.0
        %847 = vmatpush2.xpose.msra.mxu0 %v544
        %848 = vmatprep.subr.mxu0 0.0
        %849 = vmatpush2.xpose.msra.mxu0 %v543
        %850 = vmatprep.subr.mxu0 0.0
        %851 = vmatpush2.xpose.msra.mxu0 %v542
        %852 = vmatprep.subr.mxu0 0.0
        %853 = vmatpush2.xpose.msra.mxu0 %v541
        %854 = vmatprep.subr.mxu0 0.0
        %855 = vmatpush2.xpose.msra.mxu0 %v540
        %856 = vmatprep.subr.mxu0 0.0
        %857 = vmatpush2.xpose.msra.mxu0 %v539
        %858 = vmatprep.subr.mxu0 0.0
        %859 = vmatpush2.xpose.msra.mxu0 %v538
        %860 = vmatprep.subr.mxu0 0.0
        %861 = vmatpush2.xpose.msra.mxu0 %v537
        %862 = vmatprep.subr.mxu0 0.0
        %863 = vmatpush2.xpose.msra.mxu0 %v536
        %864 = vmatprep.subr.mxu0 0.0
        %865 = vmatpush2.xpose.msra.mxu0 %v535
        %866 = vmatprep.subr.mxu0 0.0
        %867 = vmatpush2.xpose.msra.mxu0 %v534
        %868 = vmatprep.subr.mxu0 0.0
        %869 = vmatpush2.xpose.msra.mxu0 %v533
        %870 = vmatprep.mubr.f32.mxu0 0.0
        %871 = vmatmul.mubr.f32.gmra.mxu0 %v453
        %v872 = vpop.f32.mrf.mxu0
        %v873 = vadd.f32 0.0, %v872
        %v874 = vpop.f32.mrf.mxu0
        %v875 = vadd.f32 0.0, %v874
        %876 = vmatprep.mubr.f32.mxu0 0.0
        %877 = vmatmul.mubr.f32.gmra.mxu0 %v454
        %v878 = vpop.f32.mrf.mxu0
        %v879 = vadd.f32 0.0, %v878
        %v880 = vpop.f32.mrf.mxu0
        %v881 = vadd.f32 0.0, %v880
        %882 = vmatprep.mubr.f32.mxu0 0.0
        %883 = vmatmul.mubr.f32.gmra.mxu0 %v455
        %v884 = vpop.f32.mrf.mxu0
        %v885 = vadd.f32 0.0, %v884
        %v886 = vpop.f32.mrf.mxu0
        %v887 = vadd.f32 0.0, %v886
        %888 = vmatprep.mubr.f32.mxu0 0.0
        %889 = vmatmul.mubr.f32.gmra.mxu0 %v456
        %v890 = vpop.f32.mrf.mxu0
        %v891 = vadd.f32 0.0, %v890
        %v892 = vpop.f32.mrf.mxu0
        %v893 = vadd.f32 0.0, %v892
        %894 = vmatprep.mubr.f32.mxu0 0.0
        %895 = vmatmul.mubr.f32.gmra.mxu0 %v457
        %v896 = vpop.f32.mrf.mxu0
        %v897 = vadd.f32 0.0, %v896
        %v898 = vpop.f32.mrf.mxu0
        %v899 = vadd.f32 0.0, %v898
        %900 = vmatprep.mubr.f32.mxu0 0.0
        %901 = vmatmul.mubr.f32.gmra.mxu0 %v458
        %v902 = vpop.f32.mrf.mxu0
        %v903 = vadd.f32 0.0, %v902
        %v904 = vpop.f32.mrf.mxu0
        %v905 = vadd.f32 0.0, %v904
        %906 = vmatprep.mubr.f32.mxu0 0.0
        %907 = vmatmul.mubr.f32.gmra.mxu0 %v459
        %v908 = vpop.f32.mrf.mxu0
        %v909 = vadd.f32 0.0, %v908
        %v910 = vpop.f32.mrf.mxu0
        %v911 = vadd.f32 0.0, %v910
        %912 = vmatprep.mubr.f32.mxu0 0.0
        %913 = vmatmul.mubr.f32.gmra.mxu0 %v460
        %v914 = vpop.f32.mrf.mxu0
        %v915 = vadd.f32 0.0, %v914
        %v916 = vpop.f32.mrf.mxu0
        %v917 = vadd.f32 0.0, %v916
        %918 = vmatprep.mubr.f32.mxu0 0.0
        %919 = vmatmul.mubr.f32.gmra.mxu0 %v461
        %v920 = vpop.f32.mrf.mxu0
        %v921 = vadd.f32 0.0, %v920
        %v922 = vpop.f32.mrf.mxu0
        %v923 = vadd.f32 0.0, %v922
        %924 = vmatprep.mubr.f32.mxu0 0.0
        %925 = vmatmul.mubr.f32.gmra.mxu0 %v462
        %v926 = vpop.f32.mrf.mxu0
        %v927 = vadd.f32 0.0, %v926
        %v928 = vpop.f32.mrf.mxu0
        %v929 = vadd.f32 0.0, %v928
        %930 = vmatprep.mubr.f32.mxu0 0.0
        %931 = vmatmul.mubr.f32.gmra.mxu0 %v463
        %v932 = vpop.f32.mrf.mxu0
        %v933 = vadd.f32 0.0, %v932
        %v934 = vpop.f32.mrf.mxu0
        %v935 = vadd.f32 0.0, %v934
        %936 = vmatprep.mubr.f32.mxu0 0.0
        %937 = vmatmul.mubr.f32.gmra.mxu0 %v464
        %v938 = vpop.f32.mrf.mxu0
        %v939 = vadd.f32 0.0, %v938
        %v940 = vpop.f32.mrf.mxu0
        %v941 = vadd.f32 0.0, %v940
        %942 = vmatprep.mubr.f32.mxu0 0.0
        %943 = vmatmul.mubr.f32.gmra.mxu0 %v465
        %v944 = vpop.f32.mrf.mxu0
        %v945 = vadd.f32 0.0, %v944
        %v946 = vpop.f32.mrf.mxu0
        %v947 = vadd.f32 0.0, %v946
        %948 = vmatprep.mubr.f32.mxu0 0.0
        %949 = vmatmul.mubr.f32.gmra.mxu0 %v466
        %v950 = vpop.f32.mrf.mxu0
        %v951 = vadd.f32 0.0, %v950
        %v952 = vpop.f32.mrf.mxu0
        %v953 = vadd.f32 0.0, %v952
        %954 = vmatprep.mubr.f32.mxu0 0.0
        %955 = vmatmul.mubr.f32.gmra.mxu0 %v467
        %v956 = vpop.f32.mrf.mxu0
        %v957 = vadd.f32 0.0, %v956
        %v958 = vpop.f32.mrf.mxu0
        %v959 = vadd.f32 0.0, %v958
        %960 = vmatprep.mubr.f32.mxu0 0.0
        %961 = vmatmul.mubr.f32.gmra.mxu0 %v468
        %v962 = vpop.f32.mrf.mxu0
        %v963 = vadd.f32 0.0, %v962
        %v964 = vpop.f32.mrf.mxu0
        %v965 = vadd.f32 0.0, %v964
        %966 = vmatprep.mubr.f32.mxu0 0.0
        %967 = vmatmul.mubr.f32.gmra.mxu0 %v469
        %v968 = vpop.f32.mrf.mxu0
        %v969 = vadd.f32 0.0, %v968
        %v970 = vpop.f32.mrf.mxu0
        %v971 = vadd.f32 0.0, %v970
        %972 = vmatprep.mubr.f32.mxu0 0.0
        %973 = vmatmul.mubr.f32.gmra.mxu0 %v470
        %v974 = vpop.f32.mrf.mxu0
        %v975 = vadd.f32 0.0, %v974
        %v976 = vpop.f32.mrf.mxu0
        %v977 = vadd.f32 0.0, %v976
        %978 = vmatprep.mubr.f32.mxu0 0.0
        %979 = vmatmul.mubr.f32.gmra.mxu0 %v471
        %v980 = vpop.f32.mrf.mxu0
        %v981 = vadd.f32 0.0, %v980
        %v982 = vpop.f32.mrf.mxu0
        %v983 = vadd.f32 0.0, %v982
        %984 = vmatprep.mubr.f32.mxu0 0.0
        %985 = vmatmul.mubr.f32.gmra.mxu0 %v472
        %v986 = vpop.f32.mrf.mxu0
        %v987 = vadd.f32 0.0, %v986
        %v988 = vpop.f32.mrf.mxu0
        %v989 = vadd.f32 0.0, %v988
        %990 = vmatprep.mubr.f32.mxu0 0.0
        %991 = vmatmul.mubr.f32.gmra.mxu0 %v473
        %v992 = vpop.f32.mrf.mxu0
        %v993 = vadd.f32 0.0, %v992
        %v994 = vpop.f32.mrf.mxu0
        %v995 = vadd.f32 0.0, %v994
        %996 = vmatprep.mubr.f32.mxu0 0.0
        %997 = vmatmul.mubr.f32.gmra.mxu0 %v474
        %v998 = vpop.f32.mrf.mxu0
        %v999 = vadd.f32 0.0, %v998
        %v1000 = vpop.f32.mrf.mxu0
        %v1001 = vadd.f32 0.0, %v1000
        %1002 = vmatprep.mubr.f32.mxu0 0.0
        %1003 = vmatmul.mubr.f32.gmra.mxu0 %v475
        %v1004 = vpop.f32.mrf.mxu0
        %v1005 = vadd.f32 0.0, %v1004
        %v1006 = vpop.f32.mrf.mxu0
        %v1007 = vadd.f32 0.0, %v1006
        %1008 = vmatprep.mubr.f32.mxu0 0.0
        %1009 = vmatmul.mubr.f32.gmra.mxu0 %v476
        %v1010 = vpop.f32.mrf.mxu0
        %v1011 = vadd.f32 0.0, %v1010
        %v1012 = vpop.f32.mrf.mxu0
        %v1013 = vadd.f32 0.0, %v1012
        %1014 = vmatprep.mubr.f32.mxu0 0.0
        %1015 = vmatmul.mubr.f32.gmra.mxu0 %v477
        %v1016 = vpop.f32.mrf.mxu0
        %v1017 = vadd.f32 0.0, %v1016
        %v1018 = vpop.f32.mrf.mxu0
        %v1019 = vadd.f32 0.0, %v1018
        %1020 = vmatprep.mubr.f32.mxu0 0.0
        %1021 = vmatmul.mubr.f32.gmra.mxu0 %v478
        %v1022 = vpop.f32.mrf.mxu0
        %v1023 = vadd.f32 0.0, %v1022
        %v1024 = vpop.f32.mrf.mxu0
        %v1025 = vadd.f32 0.0, %v1024
        %1026 = vmatprep.mubr.f32.mxu0 0.0
        %1027 = vmatmul.mubr.f32.gmra.mxu0 %v479
        %v1028 = vpop.f32.mrf.mxu0
        %v1029 = vadd.f32 0.0, %v1028
        %v1030 = vpop.f32.mrf.mxu0
        %v1031 = vadd.f32 0.0, %v1030
        %1032 = vmatprep.mubr.f32.mxu0 0.0
        %1033 = vmatmul.mubr.f32.gmra.mxu0 %v480
        %v1034 = vpop.f32.mrf.mxu0
        %v1035 = vadd.f32 0.0, %v1034
        %v1036 = vpop.f32.mrf.mxu0
        %v1037 = vadd.f32 0.0, %v1036
        %1038 = vmatprep.mubr.f32.mxu0 0.0
        %1039 = vmatmul.mubr.f32.gmra.mxu0 %v481
        %v1040 = vpop.f32.mrf.mxu0
        %v1041 = vadd.f32 0.0, %v1040
        %v1042 = vpop.f32.mrf.mxu0
        %v1043 = vadd.f32 0.0, %v1042
        %1044 = vmatprep.mubr.f32.mxu0 0.0
        %1045 = vmatmul.mubr.f32.gmra.mxu0 %v482
        %v1046 = vpop.f32.mrf.mxu0
        %v1047 = vadd.f32 0.0, %v1046
        %v1048 = vpop.f32.mrf.mxu0
        %v1049 = vadd.f32 0.0, %v1048
        %1050 = vmatprep.mubr.f32.mxu0 0.0
        %1051 = vmatmul.mubr.f32.gmra.mxu0 %v483
        %v1052 = vpop.f32.mrf.mxu0
        %v1053 = vadd.f32 0.0, %v1052
        %v1054 = vpop.f32.mrf.mxu0
        %v1055 = vadd.f32 0.0, %v1054
        %1056 = vmatprep.mubr.f32.mxu0 0.0
        %1057 = vmatmul.mubr.f32.gmra.mxu0 %v484
        %v1058 = vpop.f32.mrf.mxu0
        %v1059 = vadd.f32 0.0, %v1058
        %v1060 = vpop.f32.mrf.mxu0
        %v1061 = vadd.f32 0.0, %v1060
        %1062 = vdwg.mxu0
        %v1063 = vmul.f32 %v616, 14.285714
        %v1064 = vmul.f32 %v618, 14.285714
        %v1065 = vmul.f32 %v873, 14.285714
        %v1066 = vmul.f32 %v875, 14.285714
        %v1067 = vmul.f32 %v622, 14.285714
        %v1068 = vmul.f32 %v624, 14.285714
        %v1069 = vmul.f32 %v879, 14.285714
        %v1070 = vmul.f32 %v881, 14.285714
        %v1071 = vmul.f32 %v628, 14.285714
        %v1072 = vmul.f32 %v630, 14.285714
        %v1073 = vmul.f32 %v885, 14.285714
        %v1074 = vmul.f32 %v887, 14.285714
        %v1075 = vmul.f32 %v634, 14.285714
        %v1076 = vmul.f32 %v636, 14.285714
        %v1077 = vmul.f32 %v891, 14.285714
        %v1078 = vmul.f32 %v893, 14.285714
        %v1079 = vmul.f32 %v640, 14.285714
        %v1080 = vmul.f32 %v642, 14.285714
        %v1081 = vmul.f32 %v897, 14.285714
        %v1082 = vmul.f32 %v899, 14.285714
        %v1083 = vmul.f32 %v646, 14.285714
        %v1084 = vmul.f32 %v648, 14.285714
        %v1085 = vmul.f32 %v903, 14.285714
        %v1086 = vmul.f32 %v905, 14.285714
        %v1087 = vmul.f32 %v652, 14.285714
        %v1088 = vmul.f32 %v654, 14.285714
        %v1089 = vmul.f32 %v909, 14.285714
        %v1090 = vmul.f32 %v911, 14.285714
        %v1091 = vmul.f32 %v658, 14.285714
        %v1092 = vmul.f32 %v660, 14.285714
        %v1093 = vmul.f32 %v915, 14.285714
        %v1094 = vmul.f32 %v917, 14.285714
        %v1095 = vmul.f32 %v664, 14.285714
        %v1096 = vmul.f32 %v666, 14.285714
        %v1097 = vmul.f32 %v921, 14.285714
        %v1098 = vmul.f32 %v923, 14.285714
        %v1099 = vmul.f32 %v670, 14.285714
        %v1100 = vmul.f32 %v672, 14.285714
        %v1101 = vmul.f32 %v927, 14.285714
        %v1102 = vmul.f32 %v929, 14.285714
        %v1103 = vmul.f32 %v676, 14.285714
        %v1104 = vmul.f32 %v678, 14.285714
        %v1105 = vmul.f32 %v933, 14.285714
        %v1106 = vmul.f32 %v935, 14.285714
        %v1107 = vmul.f32 %v682, 14.285714
        %v1108 = vmul.f32 %v684, 14.285714
        %v1109 = vmul.f32 %v939, 14.285714
        %v1110 = vmul.f32 %v941, 14.285714
        %v1111 = vmul.f32 %v688, 14.285714
        %v1112 = vmul.f32 %v690, 14.285714
        %v1113 = vmul.f32 %v945, 14.285714
        %v1114 = vmul.f32 %v947, 14.285714
        %v1115 = vmul.f32 %v694, 14.285714
        %v1116 = vmul.f32 %v696, 14.285714
        %v1117 = vmul.f32 %v951, 14.285714
        %v1118 = vmul.f32 %v953, 14.285714
        %v1119 = vmul.f32 %v700, 14.285714
        %v1120 = vmul.f32 %v702, 14.285714
        %v1121 = vmul.f32 %v957, 14.285714
        %v1122 = vmul.f32 %v959, 14.285714
        %v1123 = vmul.f32 %v706, 14.285714
        %v1124 = vmul.f32 %v708, 14.285714
        %v1125 = vmul.f32 %v963, 14.285714
        %v1126 = vmul.f32 %v965, 14.285714
        %v1127 = vmul.f32 %v712, 14.285714
        %v1128 = vmul.f32 %v714, 14.285714
        %v1129 = vmul.f32 %v969, 14.285714
        %v1130 = vmul.f32 %v971, 14.285714
        %v1131 = vmul.f32 %v718, 14.285714
        %v1132 = vmul.f32 %v720, 14.285714
        %v1133 = vmul.f32 %v975, 14.285714
        %v1134 = vmul.f32 %v977, 14.285714
        %v1135 = vmul.f32 %v724, 14.285714
        %v1136 = vmul.f32 %v726, 14.285714
        %v1137 = vmul.f32 %v981, 14.285714
        %v1138 = vmul.f32 %v983, 14.285714
        %v1139 = vmul.f32 %v730, 14.285714
        %v1140 = vmul.f32 %v732, 14.285714
        %v1141 = vmul.f32 %v987, 14.285714
        %v1142 = vmul.f32 %v989, 14.285714
        %v1143 = vmul.f32 %v736, 14.285714
        %v1144 = vmul.f32 %v738, 14.285714
        %v1145 = vmul.f32 %v993, 14.285714
        %v1146 = vmul.f32 %v995, 14.285714
        %v1147 = vmul.f32 %v742, 14.285714
        %v1148 = vmul.f32 %v744, 14.285714
        %v1149 = vmul.f32 %v999, 14.285714
        %v1150 = vmul.f32 %v1001, 14.285714
        %v1151 = vmul.f32 %v748, 14.285714
        %v1152 = vmul.f32 %v750, 14.285714
        %v1153 = vmul.f32 %v1005, 14.285714
        %v1154 = vmul.f32 %v1007, 14.285714
        %v1155 = vmul.f32 %v754, 14.285714
        %v1156 = vmul.f32 %v756, 14.285714
        %v1157 = vmul.f32 %v1011, 14.285714
        %v1158 = vmul.f32 %v1013, 14.285714
        %v1159 = vmul.f32 %v760, 14.285714
        %v1160 = vmul.f32 %v762, 14.285714
        %v1161 = vmul.f32 %v1017, 14.285714
        %v1162 = vmul.f32 %v1019, 14.285714
        %v1163 = vmul.f32 %v766, 14.285714
        %v1164 = vmul.f32 %v768, 14.285714
        %v1165 = vmul.f32 %v1023, 14.285714
        %v1166 = vmul.f32 %v1025, 14.285714
        %v1167 = vmul.f32 %v772, 14.285714
        %v1168 = vmul.f32 %v774, 14.285714
        %v1169 = vmul.f32 %v1029, 14.285714
        %v1170 = vmul.f32 %v1031, 14.285714
        %v1171 = vmul.f32 %v778, 14.285714
        %v1172 = vmul.f32 %v780, 14.285714
        %v1173 = vmul.f32 %v1035, 14.285714
        %v1174 = vmul.f32 %v1037, 14.285714
        %v1175 = vmul.f32 %v784, 14.285714
        %v1176 = vmul.f32 %v786, 14.285714
        %v1177 = vmul.f32 %v1041, 14.285714
        %v1178 = vmul.f32 %v1043, 14.285714
        %v1179 = vmul.f32 %v790, 14.285714
        %v1180 = vmul.f32 %v792, 14.285714
        %v1181 = vmul.f32 %v1047, 14.285714
        %v1182 = vmul.f32 %v1049, 14.285714
        %v1183 = vmul.f32 %v796, 14.285714
        %v1184 = vmul.f32 %v798, 14.285714
        %v1185 = vmul.f32 %v1053, 14.285714
        %v1186 = vmul.f32 %v1055, 14.285714
        %v1187 = vmul.f32 %v802, 14.285714
        %v1188 = vmul.f32 %v804, 14.285714
        %v1189 = vmul.f32 %v1059, 14.285714
        %v1190 = vmul.f32 %v1061, 14.285714
        %v1191 = vld [vmem:[%s305] sm:$0xff]
        %v1192 = vld [vmem:[%s305 + $0x8] sm:$0xff]
        %v1193 = vld [vmem:[%s305 + $0x10] sm:$0xff]
        %v1194 = vld [vmem:[%s305 + $0x18] sm:$0xff]
        %v1195 = vld [vmem:[%s305 + $0x20] sm:$0xff]
        %v1196 = vld [vmem:[%s305 + $0x28] sm:$0xff]
        %v1197 = vld [vmem:[%s305 + $0x30] sm:$0xff]
        %v1198 = vld [vmem:[%s305 + $0x38] sm:$0xff]
        %v1199 = vld [vmem:[%s305 + $0x40] sm:$0xff]
        %v1200 = vld [vmem:[%s305 + $0x48] sm:$0xff]
        %v1201 = vld [vmem:[%s305 + $0x50] sm:$0xff]
        %v1202 = vld [vmem:[%s305 + $0x58] sm:$0xff]
        %v1203 = vld [vmem:[%s305 + $0x60] sm:$0xff]
        %v1204 = vld [vmem:[%s305 + $0x68] sm:$0xff]
        %v1205 = vld [vmem:[%s305 + $0x70] sm:$0xff]
        %v1206 = vld [vmem:[%s305 + $0x78] sm:$0xff]
        %v1207 = vld [vmem:[%s305 + $0x80] sm:$0xff]
        %v1208 = vld [vmem:[%s305 + $0x88] sm:$0xff]
        %v1209 = vld [vmem:[%s305 + $0x90] sm:$0xff]
        %v1210 = vld [vmem:[%s305 + $0x98] sm:$0xff]
        %v1211 = vld [vmem:[%s305 + $0xa0] sm:$0xff]
        %v1212 = vld [vmem:[%s305 + $0xa8] sm:$0xff]
        %v1213 = vld [vmem:[%s305 + $0xb0] sm:$0xff]
        %v1214 = vld [vmem:[%s305 + $0xb8] sm:$0xff]
        %v1215 = vld [vmem:[%s305 + $0xc0] sm:$0xff]
        %v1216 = vld [vmem:[%s305 + $0xc8] sm:$0xff]
        %v1217 = vld [vmem:[%s305 + $0xd0] sm:$0xff]
        %v1218 = vld [vmem:[%s305 + $0xd8] sm:$0xff]
        %v1219 = vld [vmem:[%s305 + $0xe0] sm:$0xff]
        %v1220 = vld [vmem:[%s305 + $0xe8] sm:$0xff]
        %v1221 = vld [vmem:[%s305 + $0xf0] sm:$0xff]
        %v1222 = vld [vmem:[%s305 + $0xf8] sm:$0xff]
        %v1223 = vld [vmem:[#allocation11] ss:$8 sm:$0xf]
        %1224 = vset.pattern.permute.xlu0 0
        %1225 = vperm.xlu0 %1224, %v1191
        %v1226 = vpop.permute.xlu0 %1225
        %1227 = vset.pattern.permute.xlu0 0
        %1228 = vperm.xlu0 %1227, %v1192
        %v1229 = vpop.permute.xlu0 %1228
        %1230 = vset.pattern.permute.xlu0 0
        %1231 = vperm.xlu0 %1230, %v1193
        %v1232 = vpop.permute.xlu0 %1231
        %1233 = vset.pattern.permute.xlu0 0
        %1234 = vperm.xlu0 %1233, %v1194
        %v1235 = vpop.permute.xlu0 %1234
        %1236 = vset.pattern.permute.xlu0 0
        %1237 = vperm.xlu0 %1236, %v1195
        %v1238 = vpop.permute.xlu0 %1237
        %1239 = vset.pattern.permute.xlu0 0
        %1240 = vperm.xlu0 %1239, %v1196
        %v1241 = vpop.permute.xlu0 %1240
        %1242 = vset.pattern.permute.xlu0 0
        %1243 = vperm.xlu0 %1242, %v1197
        %v1244 = vpop.permute.xlu0 %1243
        %1245 = vset.pattern.permute.xlu0 0
        %1246 = vperm.xlu0 %1245, %v1198
        %v1247 = vpop.permute.xlu0 %1246
        %1248 = vset.pattern.permute.xlu0 0
        %1249 = vperm.xlu0 %1248, %v1199
        %v1250 = vpop.permute.xlu0 %1249
        %1251 = vset.pattern.permute.xlu0 0
        %1252 = vperm.xlu0 %1251, %v1200
        %v1253 = vpop.permute.xlu0 %1252
        %1254 = vset.pattern.permute.xlu0 0
        %1255 = vperm.xlu0 %1254, %v1201
        %v1256 = vpop.permute.xlu0 %1255
        %1257 = vset.pattern.permute.xlu0 0
        %1258 = vperm.xlu0 %1257, %v1202
        %v1259 = vpop.permute.xlu0 %1258
        %1260 = vset.pattern.permute.xlu0 0
        %1261 = vperm.xlu0 %1260, %v1203
        %v1262 = vpop.permute.xlu0 %1261
        %1263 = vset.pattern.permute.xlu0 0
        %1264 = vperm.xlu0 %1263, %v1204
        %v1265 = vpop.permute.xlu0 %1264
        %1266 = vset.pattern.permute.xlu0 0
        %1267 = vperm.xlu0 %1266, %v1205
        %v1268 = vpop.permute.xlu0 %1267
        %1269 = vset.pattern.permute.xlu0 0
        %1270 = vperm.xlu0 %1269, %v1206
        %v1271 = vpop.permute.xlu0 %1270
        %1272 = vset.pattern.permute.xlu0 0
        %1273 = vperm.xlu0 %1272, %v1207
        %v1274 = vpop.permute.xlu0 %1273
        %1275 = vset.pattern.permute.xlu0 0
        %1276 = vperm.xlu0 %1275, %v1208
        %v1277 = vpop.permute.xlu0 %1276
        %1278 = vset.pattern.permute.xlu0 0
        %1279 = vperm.xlu0 %1278, %v1209
        %v1280 = vpop.permute.xlu0 %1279
        %1281 = vset.pattern.permute.xlu0 0
        %1282 = vperm.xlu0 %1281, %v1210
        %v1283 = vpop.permute.xlu0 %1282
        %1284 = vset.pattern.permute.xlu0 0
        %1285 = vperm.xlu0 %1284, %v1211
        %v1286 = vpop.permute.xlu0 %1285
        %1287 = vset.pattern.permute.xlu0 0
        %1288 = vperm.xlu0 %1287, %v1212
        %v1289 = vpop.permute.xlu0 %1288
        %1290 = vset.pattern.permute.xlu0 0
        %1291 = vperm.xlu0 %1290, %v1213
        %v1292 = vpop.permute.xlu0 %1291
        %1293 = vset.pattern.permute.xlu0 0
        %1294 = vperm.xlu0 %1293, %v1214
        %v1295 = vpop.permute.xlu0 %1294
        %1296 = vset.pattern.permute.xlu0 0
        %1297 = vperm.xlu0 %1296, %v1215
        %v1298 = vpop.permute.xlu0 %1297
        %1299 = vset.pattern.permute.xlu0 0
        %1300 = vperm.xlu0 %1299, %v1216
        %v1301 = vpop.permute.xlu0 %1300
        %1302 = vset.pattern.permute.xlu0 0
        %1303 = vperm.xlu0 %1302, %v1217
        %v1304 = vpop.permute.xlu0 %1303
        %1305 = vset.pattern.permute.xlu0 0
        %1306 = vperm.xlu0 %1305, %v1218
        %v1307 = vpop.permute.xlu0 %1306
        %1308 = vset.pattern.permute.xlu0 0
        %1309 = vperm.xlu0 %1308, %v1219
        %v1310 = vpop.permute.xlu0 %1309
        %1311 = vset.pattern.permute.xlu0 0
        %1312 = vperm.xlu0 %1311, %v1220
        %v1313 = vpop.permute.xlu0 %1312
        %1314 = vset.pattern.permute.xlu0 0
        %1315 = vperm.xlu0 %1314, %v1221
        %v1316 = vpop.permute.xlu0 %1315
        %1317 = vset.pattern.permute.xlu0 0
        %1318 = vperm.xlu0 %1317, %v1222
        %v1319 = vpop.permute.xlu0 %1318
        %v1320 = vlaneseq
        %v1321 = vshrl.u32 %v1320, 7
        %v1322 = vsub.s32 0, %v1321
        %v1323 = vrot.slane %v1223, %v1322
        %v1324 = vlaneseq
        %v1325 = vshrl.u32 %v1324, 7
        %v1326 = vsub.s32 1, %v1325
        %v1327 = vrot.slane %v1223, %v1326
        %v1328 = vlaneseq
        %v1329 = vshrl.u32 %v1328, 7
        %v1330 = vsub.s32 2, %v1329
        %v1331 = vrot.slane %v1223, %v1330
        %v1332 = vlaneseq
        %v1333 = vshrl.u32 %v1332, 7
        %v1334 = vsub.s32 3, %v1333
        %v1335 = vrot.slane %v1223, %v1334
        %vm1336 = vcmp.eq.s32.totalorder %v1226, %v1323
        %vm1337 = vcmp.eq.s32.totalorder %v1226, %v1327
        %vm1338 = vcmp.eq.s32.totalorder %v1226, %v1331
        %vm1339 = vcmp.eq.s32.totalorder %v1226, %v1335
        %vm1340 = vcmp.eq.s32.totalorder %v1229, %v1323
        %vm1341 = vcmp.eq.s32.totalorder %v1229, %v1327
        %vm1342 = vcmp.eq.s32.totalorder %v1229, %v1331
        %vm1343 = vcmp.eq.s32.totalorder %v1229, %v1335
        %vm1344 = vcmp.eq.s32.totalorder %v1232, %v1323
        %vm1345 = vcmp.eq.s32.totalorder %v1232, %v1327
        %vm1346 = vcmp.eq.s32.totalorder %v1232, %v1331
        %vm1347 = vcmp.eq.s32.totalorder %v1232, %v1335
        %vm1348 = vcmp.eq.s32.totalorder %v1235, %v1323
        %vm1349 = vcmp.eq.s32.totalorder %v1235, %v1327
        %vm1350 = vcmp.eq.s32.totalorder %v1235, %v1331
        %vm1351 = vcmp.eq.s32.totalorder %v1235, %v1335
        %vm1352 = vcmp.eq.s32.totalorder %v1238, %v1323
        %vm1353 = vcmp.eq.s32.totalorder %v1238, %v1327
        %vm1354 = vcmp.eq.s32.totalorder %v1238, %v1331
        %vm1355 = vcmp.eq.s32.totalorder %v1238, %v1335
        %vm1356 = vcmp.eq.s32.totalorder %v1241, %v1323
        %vm1357 = vcmp.eq.s32.totalorder %v1241, %v1327
        %vm1358 = vcmp.eq.s32.totalorder %v1241, %v1331
        %vm1359 = vcmp.eq.s32.totalorder %v1241, %v1335
        %vm1360 = vcmp.eq.s32.totalorder %v1244, %v1323
        %vm1361 = vcmp.eq.s32.totalorder %v1244, %v1327
        %vm1362 = vcmp.eq.s32.totalorder %v1244, %v1331
        %vm1363 = vcmp.eq.s32.totalorder %v1244, %v1335
        %vm1364 = vcmp.eq.s32.totalorder %v1247, %v1323
        %vm1365 = vcmp.eq.s32.totalorder %v1247, %v1327
        %vm1366 = vcmp.eq.s32.totalorder %v1247, %v1331
        %vm1367 = vcmp.eq.s32.totalorder %v1247, %v1335
        %vm1368 = vcmp.eq.s32.totalorder %v1250, %v1323
        %vm1369 = vcmp.eq.s32.totalorder %v1250, %v1327
        %vm1370 = vcmp.eq.s32.totalorder %v1250, %v1331
        %vm1371 = vcmp.eq.s32.totalorder %v1250, %v1335
        %vm1372 = vcmp.eq.s32.totalorder %v1253, %v1323
        %vm1373 = vcmp.eq.s32.totalorder %v1253, %v1327
        %vm1374 = vcmp.eq.s32.totalorder %v1253, %v1331
        %vm1375 = vcmp.eq.s32.totalorder %v1253, %v1335
        %vm1376 = vcmp.eq.s32.totalorder %v1256, %v1323
        %vm1377 = vcmp.eq.s32.totalorder %v1256, %v1327
        %vm1378 = vcmp.eq.s32.totalorder %v1256, %v1331
        %vm1379 = vcmp.eq.s32.totalorder %v1256, %v1335
        %vm1380 = vcmp.eq.s32.totalorder %v1259, %v1323
        %vm1381 = vcmp.eq.s32.totalorder %v1259, %v1327
        %vm1382 = vcmp.eq.s32.totalorder %v1259, %v1331
        %vm1383 = vcmp.eq.s32.totalorder %v1259, %v1335
        %vm1384 = vcmp.eq.s32.totalorder %v1262, %v1323
        %vm1385 = vcmp.eq.s32.totalorder %v1262, %v1327
        %vm1386 = vcmp.eq.s32.totalorder %v1262, %v1331
        %vm1387 = vcmp.eq.s32.totalorder %v1262, %v1335
        %vm1388 = vcmp.eq.s32.totalorder %v1265, %v1323
        %vm1389 = vcmp.eq.s32.totalorder %v1265, %v1327
        %vm1390 = vcmp.eq.s32.totalorder %v1265, %v1331
        %vm1391 = vcmp.eq.s32.totalorder %v1265, %v1335
        %vm1392 = vcmp.eq.s32.totalorder %v1268, %v1323
        %vm1393 = vcmp.eq.s32.totalorder %v1268, %v1327
        %vm1394 = vcmp.eq.s32.totalorder %v1268, %v1331
        %vm1395 = vcmp.eq.s32.totalorder %v1268, %v1335
        %vm1396 = vcmp.eq.s32.totalorder %v1271, %v1323
        %vm1397 = vcmp.eq.s32.totalorder %v1271, %v1327
        %vm1398 = vcmp.eq.s32.totalorder %v1271, %v1331
        %vm1399 = vcmp.eq.s32.totalorder %v1271, %v1335
        %vm1400 = vcmp.eq.s32.totalorder %v1274, %v1323
        %vm1401 = vcmp.eq.s32.totalorder %v1274, %v1327
        %vm1402 = vcmp.eq.s32.totalorder %v1274, %v1331
        %vm1403 = vcmp.eq.s32.totalorder %v1274, %v1335
        %vm1404 = vcmp.eq.s32.totalorder %v1277, %v1323
        %vm1405 = vcmp.eq.s32.totalorder %v1277, %v1327
        %vm1406 = vcmp.eq.s32.totalorder %v1277, %v1331
        %vm1407 = vcmp.eq.s32.totalorder %v1277, %v1335
        %vm1408 = vcmp.eq.s32.totalorder %v1280, %v1323
        %vm1409 = vcmp.eq.s32.totalorder %v1280, %v1327
        %vm1410 = vcmp.eq.s32.totalorder %v1280, %v1331
        %vm1411 = vcmp.eq.s32.totalorder %v1280, %v1335
        %vm1412 = vcmp.eq.s32.totalorder %v1283, %v1323
        %vm1413 = vcmp.eq.s32.totalorder %v1283, %v1327
        %vm1414 = vcmp.eq.s32.totalorder %v1283, %v1331
        %vm1415 = vcmp.eq.s32.totalorder %v1283, %v1335
        %vm1416 = vcmp.eq.s32.totalorder %v1286, %v1323
        %vm1417 = vcmp.eq.s32.totalorder %v1286, %v1327
        %vm1418 = vcmp.eq.s32.totalorder %v1286, %v1331
        %vm1419 = vcmp.eq.s32.totalorder %v1286, %v1335
        %vm1420 = vcmp.eq.s32.totalorder %v1289, %v1323
        %vm1421 = vcmp.eq.s32.totalorder %v1289, %v1327
        %vm1422 = vcmp.eq.s32.totalorder %v1289, %v1331
        %vm1423 = vcmp.eq.s32.totalorder %v1289, %v1335
        %vm1424 = vcmp.eq.s32.totalorder %v1292, %v1323
        %vm1425 = vcmp.eq.s32.totalorder %v1292, %v1327
        %vm1426 = vcmp.eq.s32.totalorder %v1292, %v1331
        %vm1427 = vcmp.eq.s32.totalorder %v1292, %v1335
        %vm1428 = vcmp.eq.s32.totalorder %v1295, %v1323
        %vm1429 = vcmp.eq.s32.totalorder %v1295, %v1327
        %vm1430 = vcmp.eq.s32.totalorder %v1295, %v1331
        %vm1431 = vcmp.eq.s32.totalorder %v1295, %v1335
        %vm1432 = vcmp.eq.s32.totalorder %v1298, %v1323
        %vm1433 = vcmp.eq.s32.totalorder %v1298, %v1327
        %vm1434 = vcmp.eq.s32.totalorder %v1298, %v1331
        %vm1435 = vcmp.eq.s32.totalorder %v1298, %v1335
        %vm1436 = vcmp.eq.s32.totalorder %v1301, %v1323
        %vm1437 = vcmp.eq.s32.totalorder %v1301, %v1327
        %vm1438 = vcmp.eq.s32.totalorder %v1301, %v1331
        %vm1439 = vcmp.eq.s32.totalorder %v1301, %v1335
        %vm1440 = vcmp.eq.s32.totalorder %v1304, %v1323
        %vm1441 = vcmp.eq.s32.totalorder %v1304, %v1327
        %vm1442 = vcmp.eq.s32.totalorder %v1304, %v1331
        %vm1443 = vcmp.eq.s32.totalorder %v1304, %v1335
        %vm1444 = vcmp.eq.s32.totalorder %v1307, %v1323
        %vm1445 = vcmp.eq.s32.totalorder %v1307, %v1327
        %vm1446 = vcmp.eq.s32.totalorder %v1307, %v1331
        %vm1447 = vcmp.eq.s32.totalorder %v1307, %v1335
        %vm1448 = vcmp.eq.s32.totalorder %v1310, %v1323
        %vm1449 = vcmp.eq.s32.totalorder %v1310, %v1327
        %vm1450 = vcmp.eq.s32.totalorder %v1310, %v1331
        %vm1451 = vcmp.eq.s32.totalorder %v1310, %v1335
        %vm1452 = vcmp.eq.s32.totalorder %v1313, %v1323
        %vm1453 = vcmp.eq.s32.totalorder %v1313, %v1327
        %vm1454 = vcmp.eq.s32.totalorder %v1313, %v1331
        %vm1455 = vcmp.eq.s32.totalorder %v1313, %v1335
        %vm1456 = vcmp.eq.s32.totalorder %v1316, %v1323
        %vm1457 = vcmp.eq.s32.totalorder %v1316, %v1327
        %vm1458 = vcmp.eq.s32.totalorder %v1316, %v1331
        %vm1459 = vcmp.eq.s32.totalorder %v1316, %v1335
        %vm1460 = vcmp.eq.s32.totalorder %v1319, %v1323
        %vm1461 = vcmp.eq.s32.totalorder %v1319, %v1327
        %vm1462 = vcmp.eq.s32.totalorder %v1319, %v1331
        %vm1463 = vcmp.eq.s32.totalorder %v1319, %v1335
        %v1464 = vld [vmem:[#allocation2] sm:$0xff]
        %v1465 = vld [vmem:[#allocation2 + $0x8] sm:$0xff]
        %v1466 = vld [vmem:[#allocation2 + $0x10] sm:$0xff]
        %v1467 = vld [vmem:[#allocation2 + $0x18] sm:$0xff]
        %v1468 = vld [vmem:[#allocation2 + $0x20] sm:$0xff]
        %v1469 = vld [vmem:[#allocation2 + $0x28] sm:$0xff]
        %v1470 = vld [vmem:[#allocation2 + $0x30] sm:$0xff]
        %v1471 = vld [vmem:[#allocation2 + $0x38] sm:$0xff]
        %v1472 = vld [vmem:[#allocation2 + $0x40] sm:$0xff]
        %v1473 = vld [vmem:[#allocation2 + $0x48] sm:$0xff]
        %v1474 = vld [vmem:[#allocation2 + $0x50] sm:$0xff]
        %v1475 = vld [vmem:[#allocation2 + $0x58] sm:$0xff]
        %v1476 = vld [vmem:[#allocation2 + $0x60] sm:$0xff]
        %v1477 = vld [vmem:[#allocation2 + $0x68] sm:$0xff]
        %v1478 = vld [vmem:[#allocation2 + $0x70] sm:$0xff]
        %v1479 = vld [vmem:[#allocation2 + $0x78] sm:$0xff]
        %v1480 = vld [vmem:[#allocation2 + $0x80] sm:$0xff]
        %v1481 = vld [vmem:[#allocation2 + $0x88] sm:$0xff]
        %v1482 = vld [vmem:[#allocation2 + $0x90] sm:$0xff]
        %v1483 = vld [vmem:[#allocation2 + $0x98] sm:$0xff]
        %v1484 = vld [vmem:[#allocation2 + $0xa0] sm:$0xff]
        %v1485 = vld [vmem:[#allocation2 + $0xa8] sm:$0xff]
        %v1486 = vld [vmem:[#allocation2 + $0xb0] sm:$0xff]
        %v1487 = vld [vmem:[#allocation2 + $0xb8] sm:$0xff]
        %v1488 = vld [vmem:[#allocation2 + $0xc0] sm:$0xff]
        %v1489 = vld [vmem:[#allocation2 + $0xc8] sm:$0xff]
        %v1490 = vld [vmem:[#allocation2 + $0xd0] sm:$0xff]
        %v1491 = vld [vmem:[#allocation2 + $0xd8] sm:$0xff]
        %v1492 = vld [vmem:[#allocation2 + $0xe0] sm:$0xff]
        %v1493 = vld [vmem:[#allocation2 + $0xe8] sm:$0xff]
        %v1494 = vld [vmem:[#allocation2 + $0xf0] sm:$0xff]
        %v1495 = vld [vmem:[#allocation2 + $0xf8] sm:$0xff]
        %v1496 = vmax.f32 %v1063, %v1064
        %v1497 = vmax.f32 %v1496, %v1065
        %v1498 = vmax.f32 %v1497, %v1066
        %1499 = vmax.xlane.f32.xlu0 %v1498
        %v1500 = vpop.xlane.xlu0 %1499
        %v1501 = vmax.f32 %v1067, %v1068
        %v1502 = vmax.f32 %v1501, %v1069
        %v1503 = vmax.f32 %v1502, %v1070
        %1504 = vmax.xlane.f32.xlu0 %v1503
        %v1505 = vpop.xlane.xlu0 %1504
        %v1506 = vmax.f32 %v1071, %v1072
        %v1507 = vmax.f32 %v1506, %v1073
        %v1508 = vmax.f32 %v1507, %v1074
        %1509 = vmax.xlane.f32.xlu0 %v1508
        %v1510 = vpop.xlane.xlu0 %1509
        %v1511 = vmax.f32 %v1075, %v1076
        %v1512 = vmax.f32 %v1511, %v1077
        %v1513 = vmax.f32 %v1512, %v1078
        %1514 = vmax.xlane.f32.xlu0 %v1513
        %v1515 = vpop.xlane.xlu0 %1514
        %v1516 = vmax.f32 %v1079, %v1080
        %v1517 = vmax.f32 %v1516, %v1081
        %v1518 = vmax.f32 %v1517, %v1082
        %1519 = vmax.xlane.f32.xlu0 %v1518
        %v1520 = vpop.xlane.xlu0 %1519
        %v1521 = vmax.f32 %v1083, %v1084
        %v1522 = vmax.f32 %v1521, %v1085
        %v1523 = vmax.f32 %v1522, %v1086
        %1524 = vmax.xlane.f32.xlu0 %v1523
        %v1525 = vpop.xlane.xlu0 %1524
        %v1526 = vmax.f32 %v1087, %v1088
        %v1527 = vmax.f32 %v1526, %v1089
        %v1528 = vmax.f32 %v1527, %v1090
        %1529 = vmax.xlane.f32.xlu0 %v1528
        %v1530 = vpop.xlane.xlu0 %1529
        %v1531 = vmax.f32 %v1091, %v1092
        %v1532 = vmax.f32 %v1531, %v1093
        %v1533 = vmax.f32 %v1532, %v1094
        %1534 = vmax.xlane.f32.xlu0 %v1533
        %v1535 = vpop.xlane.xlu0 %1534
        %v1536 = vmax.f32 %v1095, %v1096
        %v1537 = vmax.f32 %v1536, %v1097
        %v1538 = vmax.f32 %v1537, %v1098
        %1539 = vmax.xlane.f32.xlu0 %v1538
        %v1540 = vpop.xlane.xlu0 %1539
        %v1541 = vmax.f32 %v1099, %v1100
        %v1542 = vmax.f32 %v1541, %v1101
        %v1543 = vmax.f32 %v1542, %v1102
        %1544 = vmax.xlane.f32.xlu0 %v1543
        %v1545 = vpop.xlane.xlu0 %1544
        %v1546 = vmax.f32 %v1103, %v1104
        %v1547 = vmax.f32 %v1546, %v1105
        %v1548 = vmax.f32 %v1547, %v1106
        %1549 = vmax.xlane.f32.xlu0 %v1548
        %v1550 = vpop.xlane.xlu0 %1549
        %v1551 = vmax.f32 %v1107, %v1108
        %v1552 = vmax.f32 %v1551, %v1109
        %v1553 = vmax.f32 %v1552, %v1110
        %1554 = vmax.xlane.f32.xlu0 %v1553
        %v1555 = vpop.xlane.xlu0 %1554
        %v1556 = vmax.f32 %v1111, %v1112
        %v1557 = vmax.f32 %v1556, %v1113
        %v1558 = vmax.f32 %v1557, %v1114
        %1559 = vmax.xlane.f32.xlu0 %v1558
        %v1560 = vpop.xlane.xlu0 %1559
        %v1561 = vmax.f32 %v1115, %v1116
        %v1562 = vmax.f32 %v1561, %v1117
        %v1563 = vmax.f32 %v1562, %v1118
        %1564 = vmax.xlane.f32.xlu0 %v1563
        %v1565 = vpop.xlane.xlu0 %1564
        %v1566 = vmax.f32 %v1119, %v1120
        %v1567 = vmax.f32 %v1566, %v1121
        %v1568 = vmax.f32 %v1567, %v1122
        %1569 = vmax.xlane.f32.xlu0 %v1568
        %v1570 = vpop.xlane.xlu0 %1569
        %v1571 = vmax.f32 %v1123, %v1124
        %v1572 = vmax.f32 %v1571, %v1125
        %v1573 = vmax.f32 %v1572, %v1126
        %1574 = vmax.xlane.f32.xlu0 %v1573
        %v1575 = vpop.xlane.xlu0 %1574
        %v1576 = vmax.f32 %v1127, %v1128
        %v1577 = vmax.f32 %v1576, %v1129
        %v1578 = vmax.f32 %v1577, %v1130
        %1579 = vmax.xlane.f32.xlu0 %v1578
        %v1580 = vpop.xlane.xlu0 %1579
        %v1581 = vmax.f32 %v1131, %v1132
        %v1582 = vmax.f32 %v1581, %v1133
        %v1583 = vmax.f32 %v1582, %v1134
        %1584 = vmax.xlane.f32.xlu0 %v1583
        %v1585 = vpop.xlane.xlu0 %1584
        %v1586 = vmax.f32 %v1135, %v1136
        %v1587 = vmax.f32 %v1586, %v1137
        %v1588 = vmax.f32 %v1587, %v1138
        %1589 = vmax.xlane.f32.xlu0 %v1588
        %v1590 = vpop.xlane.xlu0 %1589
        %v1591 = vmax.f32 %v1139, %v1140
        %v1592 = vmax.f32 %v1591, %v1141
        %v1593 = vmax.f32 %v1592, %v1142
        %1594 = vmax.xlane.f32.xlu0 %v1593
        %v1595 = vpop.xlane.xlu0 %1594
        %v1596 = vmax.f32 %v1143, %v1144
        %v1597 = vmax.f32 %v1596, %v1145
        %v1598 = vmax.f32 %v1597, %v1146
        %1599 = vmax.xlane.f32.xlu0 %v1598
        %v1600 = vpop.xlane.xlu0 %1599
        %v1601 = vmax.f32 %v1147, %v1148
        %v1602 = vmax.f32 %v1601, %v1149
        %v1603 = vmax.f32 %v1602, %v1150
        %1604 = vmax.xlane.f32.xlu0 %v1603
        %v1605 = vpop.xlane.xlu0 %1604
        %v1606 = vmax.f32 %v1151, %v1152
        %v1607 = vmax.f32 %v1606, %v1153
        %v1608 = vmax.f32 %v1607, %v1154
        %1609 = vmax.xlane.f32.xlu0 %v1608
        %v1610 = vpop.xlane.xlu0 %1609
        %v1611 = vmax.f32 %v1155, %v1156
        %v1612 = vmax.f32 %v1611, %v1157
        %v1613 = vmax.f32 %v1612, %v1158
        %1614 = vmax.xlane.f32.xlu0 %v1613
        %v1615 = vpop.xlane.xlu0 %1614
        %v1616 = vmax.f32 %v1159, %v1160
        %v1617 = vmax.f32 %v1616, %v1161
        %v1618 = vmax.f32 %v1617, %v1162
        %1619 = vmax.xlane.f32.xlu0 %v1618
        %v1620 = vpop.xlane.xlu0 %1619
        %v1621 = vmax.f32 %v1163, %v1164
        %v1622 = vmax.f32 %v1621, %v1165
        %v1623 = vmax.f32 %v1622, %v1166
        %1624 = vmax.xlane.f32.xlu0 %v1623
        %v1625 = vpop.xlane.xlu0 %1624
        %v1626 = vmax.f32 %v1167, %v1168
        %v1627 = vmax.f32 %v1626, %v1169
        %v1628 = vmax.f32 %v1627, %v1170
        %1629 = vmax.xlane.f32.xlu0 %v1628
        %v1630 = vpop.xlane.xlu0 %1629
        %v1631 = vmax.f32 %v1171, %v1172
        %v1632 = vmax.f32 %v1631, %v1173
        %v1633 = vmax.f32 %v1632, %v1174
        %1634 = vmax.xlane.f32.xlu0 %v1633
        %v1635 = vpop.xlane.xlu0 %1634
        %v1636 = vmax.f32 %v1175, %v1176
        %v1637 = vmax.f32 %v1636, %v1177
        %v1638 = vmax.f32 %v1637, %v1178
        %1639 = vmax.xlane.f32.xlu0 %v1638
        %v1640 = vpop.xlane.xlu0 %1639
        %v1641 = vmax.f32 %v1179, %v1180
        %v1642 = vmax.f32 %v1641, %v1181
        %v1643 = vmax.f32 %v1642, %v1182
        %1644 = vmax.xlane.f32.xlu0 %v1643
        %v1645 = vpop.xlane.xlu0 %1644
        %v1646 = vmax.f32 %v1183, %v1184
        %v1647 = vmax.f32 %v1646, %v1185
        %v1648 = vmax.f32 %v1647, %v1186
        %1649 = vmax.xlane.f32.xlu0 %v1648
        %v1650 = vpop.xlane.xlu0 %1649
        %v1651 = vmax.f32 %v1187, %v1188
        %v1652 = vmax.f32 %v1651, %v1189
        %v1653 = vmax.f32 %v1652, %v1190
        %1654 = vmax.xlane.f32.xlu0 %v1653
        %v1655 = vpop.xlane.xlu0 %1654
        %v1656 = vmax.f32 %v1464, %v1500
        %v1657 = vmax.f32 %v1465, %v1505
        %v1658 = vmax.f32 %v1466, %v1510
        %v1659 = vmax.f32 %v1467, %v1515
        %v1660 = vmax.f32 %v1468, %v1520
        %v1661 = vmax.f32 %v1469, %v1525
        %v1662 = vmax.f32 %v1470, %v1530
        %v1663 = vmax.f32 %v1471, %v1535
        %v1664 = vmax.f32 %v1472, %v1540
        %v1665 = vmax.f32 %v1473, %v1545
        %v1666 = vmax.f32 %v1474, %v1550
        %v1667 = vmax.f32 %v1475, %v1555
        %v1668 = vmax.f32 %v1476, %v1560
        %v1669 = vmax.f32 %v1477, %v1565
        %v1670 = vmax.f32 %v1478, %v1570
        %v1671 = vmax.f32 %v1479, %v1575
        %v1672 = vmax.f32 %v1480, %v1580
        %v1673 = vmax.f32 %v1481, %v1585
        %v1674 = vmax.f32 %v1482, %v1590
        %v1675 = vmax.f32 %v1483, %v1595
        %v1676 = vmax.f32 %v1484, %v1600
        %v1677 = vmax.f32 %v1485, %v1605
        %v1678 = vmax.f32 %v1486, %v1610
        %v1679 = vmax.f32 %v1487, %v1615
        %v1680 = vmax.f32 %v1488, %v1620
        %v1681 = vmax.f32 %v1489, %v1625
        %v1682 = vmax.f32 %v1490, %v1630
        %v1683 = vmax.f32 %v1491, %v1635
        %v1684 = vmax.f32 %v1492, %v1640
        %v1685 = vmax.f32 %v1493, %v1645
        %v1686 = vmax.f32 %v1494, %v1650
        %v1687 = vmax.f32 %v1495, %v1655
        %v1688 = vsub.f32 %v1464, %v1656
        %v1689 = vsub.f32 %v1465, %v1657
        %v1690 = vsub.f32 %v1466, %v1658
        %v1691 = vsub.f32 %v1467, %v1659
        %v1692 = vsub.f32 %v1468, %v1660
        %v1693 = vsub.f32 %v1469, %v1661
        %v1694 = vsub.f32 %v1470, %v1662
        %v1695 = vsub.f32 %v1471, %v1663
        %v1696 = vsub.f32 %v1472, %v1664
        %v1697 = vsub.f32 %v1473, %v1665
        %v1698 = vsub.f32 %v1474, %v1666
        %v1699 = vsub.f32 %v1475, %v1667
        %v1700 = vsub.f32 %v1476, %v1668
        %v1701 = vsub.f32 %v1477, %v1669
        %v1702 = vsub.f32 %v1478, %v1670
        %v1703 = vsub.f32 %v1479, %v1671
        %v1704 = vsub.f32 %v1480, %v1672
        %v1705 = vsub.f32 %v1481, %v1673
        %v1706 = vsub.f32 %v1482, %v1674
        %v1707 = vsub.f32 %v1483, %v1675
        %v1708 = vsub.f32 %v1484, %v1676
        %v1709 = vsub.f32 %v1485, %v1677
        %v1710 = vsub.f32 %v1486, %v1678
        %v1711 = vsub.f32 %v1487, %v1679
        %v1712 = vsub.f32 %v1488, %v1680
        %v1713 = vsub.f32 %v1489, %v1681
        %v1714 = vsub.f32 %v1490, %v1682
        %v1715 = vsub.f32 %v1491, %v1683
        %v1716 = vsub.f32 %v1492, %v1684
        %v1717 = vsub.f32 %v1493, %v1685
        %v1718 = vsub.f32 %v1494, %v1686
        %v1719 = vsub.f32 %v1495, %v1687
        %v1720 = vmul.f32 %v1688, 1.442695
        %v1721 = vpow.pop %v1720
        %v1722 = vmul.f32 %v1689, 1.442695
        %v1723 = vpow.pop %v1722
        %v1724 = vmul.f32 %v1690, 1.442695
        %v1725 = vpow.pop %v1724
        %v1726 = vmul.f32 %v1691, 1.442695
        %v1727 = vpow.pop %v1726
        %v1728 = vmul.f32 %v1692, 1.442695
        %v1729 = vpow.pop %v1728
        %v1730 = vmul.f32 %v1693, 1.442695
        %v1731 = vpow.pop %v1730
        %v1732 = vmul.f32 %v1694, 1.442695
        %v1733 = vpow.pop %v1732
        %v1734 = vmul.f32 %v1695, 1.442695
        %v1735 = vpow.pop %v1734
        %v1736 = vmul.f32 %v1696, 1.442695
        %v1737 = vpow.pop %v1736
        %v1738 = vmul.f32 %v1697, 1.442695
        %v1739 = vpow.pop %v1738
        %v1740 = vmul.f32 %v1698, 1.442695
        %v1741 = vpow.pop %v1740
        %v1742 = vmul.f32 %v1699, 1.442695
        %v1743 = vpow.pop %v1742
        %v1744 = vmul.f32 %v1700, 1.442695
        %v1745 = vpow.pop %v1744
        %v1746 = vmul.f32 %v1701, 1.442695
        %v1747 = vpow.pop %v1746
        %v1748 = vmul.f32 %v1702, 1.442695
        %v1749 = vpow.pop %v1748
        %v1750 = vmul.f32 %v1703, 1.442695
        %v1751 = vpow.pop %v1750
        %v1752 = vmul.f32 %v1704, 1.442695
        %v1753 = vpow.pop %v1752
        %v1754 = vmul.f32 %v1705, 1.442695
        %v1755 = vpow.pop %v1754
        %v1756 = vmul.f32 %v1706, 1.442695
        %v1757 = vpow.pop %v1756
        %v1758 = vmul.f32 %v1707, 1.442695
        %v1759 = vpow.pop %v1758
        %v1760 = vmul.f32 %v1708, 1.442695
        %v1761 = vpow.pop %v1760
        %v1762 = vmul.f32 %v1709, 1.442695
        %v1763 = vpow.pop %v1762
        %v1764 = vmul.f32 %v1710, 1.442695
        %v1765 = vpow.pop %v1764
        %v1766 = vmul.f32 %v1711, 1.442695
        %v1767 = vpow.pop %v1766
        %v1768 = vmul.f32 %v1712, 1.442695
        %v1769 = vpow.pop %v1768
        %v1770 = vmul.f32 %v1713, 1.442695
        %v1771 = vpow.pop %v1770
        %v1772 = vmul.f32 %v1714, 1.442695
        %v1773 = vpow.pop %v1772
        %v1774 = vmul.f32 %v1715, 1.442695
        %v1775 = vpow.pop %v1774
        %v1776 = vmul.f32 %v1716, 1.442695
        %v1777 = vpow.pop %v1776
        %v1778 = vmul.f32 %v1717, 1.442695
        %v1779 = vpow.pop %v1778
        %v1780 = vmul.f32 %v1718, 1.442695
        %v1781 = vpow.pop %v1780
        %v1782 = vmul.f32 %v1719, 1.442695
        %v1783 = vpow.pop %v1782
        %1785 = vset.pattern.permute.xlu0 0
        %1786 = vperm.xlu0 %1785, %v1656
        %v1787 = vpop.permute.xlu0 %1786
        %1790 = vset.pattern.permute.xlu0 0
        %1791 = vperm.xlu0 %1790, %v1657
        %v1792 = vpop.permute.xlu0 %1791
        %1795 = vset.pattern.permute.xlu0 0
        %1796 = vperm.xlu0 %1795, %v1658
        %v1797 = vpop.permute.xlu0 %1796
        %1800 = vset.pattern.permute.xlu0 0
        %1801 = vperm.xlu0 %1800, %v1659
        %v1802 = vpop.permute.xlu0 %1801
        %1805 = vset.pattern.permute.xlu0 0
        %1806 = vperm.xlu0 %1805, %v1660
        %v1807 = vpop.permute.xlu0 %1806
        %1810 = vset.pattern.permute.xlu0 0
        %1811 = vperm.xlu0 %1810, %v1661
        %v1812 = vpop.permute.xlu0 %1811
        %1815 = vset.pattern.permute.xlu0 0
        %1816 = vperm.xlu0 %1815, %v1662
        %v1817 = vpop.permute.xlu0 %1816
        %1820 = vset.pattern.permute.xlu0 0
        %1821 = vperm.xlu0 %1820, %v1663
        %v1822 = vpop.permute.xlu0 %1821
        %1825 = vset.pattern.permute.xlu0 0
        %1826 = vperm.xlu0 %1825, %v1664
        %v1827 = vpop.permute.xlu0 %1826
        %1830 = vset.pattern.permute.xlu0 0
        %1831 = vperm.xlu0 %1830, %v1665
        %v1832 = vpop.permute.xlu0 %1831
        %1835 = vset.pattern.permute.xlu0 0
        %1836 = vperm.xlu0 %1835, %v1666
        %v1837 = vpop.permute.xlu0 %1836
        %1840 = vset.pattern.permute.xlu0 0
        %1841 = vperm.xlu0 %1840, %v1667
        %v1842 = vpop.permute.xlu0 %1841
        %1845 = vset.pattern.permute.xlu0 0
        %1846 = vperm.xlu0 %1845, %v1668
        %v1847 = vpop.permute.xlu0 %1846
        %1850 = vset.pattern.permute.xlu0 0
        %1851 = vperm.xlu0 %1850, %v1669
        %v1852 = vpop.permute.xlu0 %1851
        %1855 = vset.pattern.permute.xlu0 0
        %1856 = vperm.xlu0 %1855, %v1670
        %v1857 = vpop.permute.xlu0 %1856
        %1860 = vset.pattern.permute.xlu0 0
        %1861 = vperm.xlu0 %1860, %v1671
        %v1862 = vpop.permute.xlu0 %1861
        %1865 = vset.pattern.permute.xlu0 0
        %1866 = vperm.xlu0 %1865, %v1672
        %v1867 = vpop.permute.xlu0 %1866
        %1870 = vset.pattern.permute.xlu0 0
        %1871 = vperm.xlu0 %1870, %v1673
        %v1872 = vpop.permute.xlu0 %1871
        %1875 = vset.pattern.permute.xlu0 0
        %1876 = vperm.xlu0 %1875, %v1674
        %v1877 = vpop.permute.xlu0 %1876
        %1880 = vset.pattern.permute.xlu0 0
        %1881 = vperm.xlu0 %1880, %v1675
        %v1882 = vpop.permute.xlu0 %1881
        %1885 = vset.pattern.permute.xlu0 0
        %1886 = vperm.xlu0 %1885, %v1676
        %v1887 = vpop.permute.xlu0 %1886
        %1890 = vset.pattern.permute.xlu0 0
        %1891 = vperm.xlu0 %1890, %v1677
        %v1892 = vpop.permute.xlu0 %1891
        %1895 = vset.pattern.permute.xlu0 0
        %1896 = vperm.xlu0 %1895, %v1678
        %v1897 = vpop.permute.xlu0 %1896
        %1900 = vset.pattern.permute.xlu0 0
        %1901 = vperm.xlu0 %1900, %v1679
        %v1902 = vpop.permute.xlu0 %1901
        %1905 = vset.pattern.permute.xlu0 0
        %1906 = vperm.xlu0 %1905, %v1680
        %v1907 = vpop.permute.xlu0 %1906
        %1910 = vset.pattern.permute.xlu0 0
        %1911 = vperm.xlu0 %1910, %v1681
        %v1912 = vpop.permute.xlu0 %1911
        %1915 = vset.pattern.permute.xlu0 0
        %1916 = vperm.xlu0 %1915, %v1682
        %v1917 = vpop.permute.xlu0 %1916
        %1920 = vset.pattern.permute.xlu0 0
        %1921 = vperm.xlu0 %1920, %v1683
        %v1922 = vpop.permute.xlu0 %1921
        %1925 = vset.pattern.permute.xlu0 0
        %1926 = vperm.xlu0 %1925, %v1684
        %v1927 = vpop.permute.xlu0 %1926
        %1930 = vset.pattern.permute.xlu0 0
        %1931 = vperm.xlu0 %1930, %v1685
        %v1932 = vpop.permute.xlu0 %1931
        %1935 = vset.pattern.permute.xlu0 0
        %1936 = vperm.xlu0 %1935, %v1686
        %v1937 = vpop.permute.xlu0 %1936
        %1940 = vset.pattern.permute.xlu0 0
        %1941 = vperm.xlu0 %1940, %v1687
        %v1942 = vpop.permute.xlu0 %1941
        %v1944 = vsub.f32 %v1063, %v1787
        %v1945 = vsub.f32 %v1064, %v1787
        %v1946 = vsub.f32 %v1065, %v1787
        %v1947 = vsub.f32 %v1066, %v1787
        %v1948 = vsub.f32 %v1067, %v1792
        %v1949 = vsub.f32 %v1068, %v1792
        %v1950 = vsub.f32 %v1069, %v1792
        %v1951 = vsub.f32 %v1070, %v1792
        %v1952 = vsub.f32 %v1071, %v1797
        %v1953 = vsub.f32 %v1072, %v1797
        %v1954 = vsub.f32 %v1073, %v1797
        %v1955 = vsub.f32 %v1074, %v1797
        %v1956 = vsub.f32 %v1075, %v1802
        %v1957 = vsub.f32 %v1076, %v1802
        %v1958 = vsub.f32 %v1077, %v1802
        %v1959 = vsub.f32 %v1078, %v1802
        %v1960 = vsub.f32 %v1079, %v1807
        %v1961 = vsub.f32 %v1080, %v1807
        %v1962 = vsub.f32 %v1081, %v1807
        %v1963 = vsub.f32 %v1082, %v1807
        %v1964 = vsub.f32 %v1083, %v1812
        %v1965 = vsub.f32 %v1084, %v1812
        %v1966 = vsub.f32 %v1085, %v1812
        %v1967 = vsub.f32 %v1086, %v1812
        %v1968 = vsub.f32 %v1087, %v1817
        %v1969 = vsub.f32 %v1088, %v1817
        %v1970 = vsub.f32 %v1089, %v1817
        %v1971 = vsub.f32 %v1090, %v1817
        %v1972 = vsub.f32 %v1091, %v1822
        %v1973 = vsub.f32 %v1092, %v1822
        %v1974 = vsub.f32 %v1093, %v1822
        %v1975 = vsub.f32 %v1094, %v1822
        %v1976 = vsub.f32 %v1095, %v1827
        %v1977 = vsub.f32 %v1096, %v1827
        %v1978 = vsub.f32 %v1097, %v1827
        %v1979 = vsub.f32 %v1098, %v1827
        %v1980 = vsub.f32 %v1099, %v1832
        %v1981 = vsub.f32 %v1100, %v1832
        %v1982 = vsub.f32 %v1101, %v1832
        %v1983 = vsub.f32 %v1102, %v1832
        %v1984 = vsub.f32 %v1103, %v1837
        %v1985 = vsub.f32 %v1104, %v1837
        %v1986 = vsub.f32 %v1105, %v1837
        %v1987 = vsub.f32 %v1106, %v1837
        %v1988 = vsub.f32 %v1107, %v1842
        %v1989 = vsub.f32 %v1108, %v1842
        %v1990 = vsub.f32 %v1109, %v1842
        %v1991 = vsub.f32 %v1110, %v1842
        %v1992 = vsub.f32 %v1111, %v1847
        %v1993 = vsub.f32 %v1112, %v1847
        %v1994 = vsub.f32 %v1113, %v1847
        %v1995 = vsub.f32 %v1114, %v1847
        %v1996 = vsub.f32 %v1115, %v1852
        %v1997 = vsub.f32 %v1116, %v1852
        %v1998 = vsub.f32 %v1117, %v1852
        %v1999 = vsub.f32 %v1118, %v1852
        %v2000 = vsub.f32 %v1119, %v1857
        %v2001 = vsub.f32 %v1120, %v1857
        %v2002 = vsub.f32 %v1121, %v1857
        %v2003 = vsub.f32 %v1122, %v1857
        %v2004 = vsub.f32 %v1123, %v1862
        %v2005 = vsub.f32 %v1124, %v1862
        %v2006 = vsub.f32 %v1125, %v1862
        %v2007 = vsub.f32 %v1126, %v1862
        %v2008 = vsub.f32 %v1127, %v1867
        %v2009 = vsub.f32 %v1128, %v1867
        %v2010 = vsub.f32 %v1129, %v1867
        %v2011 = vsub.f32 %v1130, %v1867
        %v2012 = vsub.f32 %v1131, %v1872
        %v2013 = vsub.f32 %v1132, %v1872
        %v2014 = vsub.f32 %v1133, %v1872
        %v2015 = vsub.f32 %v1134, %v1872
        %v2016 = vsub.f32 %v1135, %v1877
        %v2017 = vsub.f32 %v1136, %v1877
        %v2018 = vsub.f32 %v1137, %v1877
        %v2019 = vsub.f32 %v1138, %v1877
        %v2020 = vsub.f32 %v1139, %v1882
        %v2021 = vsub.f32 %v1140, %v1882
        %v2022 = vsub.f32 %v1141, %v1882
        %v2023 = vsub.f32 %v1142, %v1882
        %v2024 = vsub.f32 %v1143, %v1887
        %v2025 = vsub.f32 %v1144, %v1887
        %v2026 = vsub.f32 %v1145, %v1887
        %v2027 = vsub.f32 %v1146, %v1887
        %v2028 = vsub.f32 %v1147, %v1892
        %v2029 = vsub.f32 %v1148, %v1892
        %v2030 = vsub.f32 %v1149, %v1892
        %v2031 = vsub.f32 %v1150, %v1892
        %v2032 = vsub.f32 %v1151, %v1897
        %v2033 = vsub.f32 %v1152, %v1897
        %v2034 = vsub.f32 %v1153, %v1897
        %v2035 = vsub.f32 %v1154, %v1897
        %v2036 = vsub.f32 %v1155, %v1902
        %v2037 = vsub.f32 %v1156, %v1902
        %v2038 = vsub.f32 %v1157, %v1902
        %v2039 = vsub.f32 %v1158, %v1902
        %v2040 = vsub.f32 %v1159, %v1907
        %v2041 = vsub.f32 %v1160, %v1907
        %v2042 = vsub.f32 %v1161, %v1907
        %v2043 = vsub.f32 %v1162, %v1907
        %v2044 = vsub.f32 %v1163, %v1912
        %v2045 = vsub.f32 %v1164, %v1912
        %v2046 = vsub.f32 %v1165, %v1912
        %v2047 = vsub.f32 %v1166, %v1912
        %v2048 = vsub.f32 %v1167, %v1917
        %v2049 = vsub.f32 %v1168, %v1917
        %v2050 = vsub.f32 %v1169, %v1917
        %v2051 = vsub.f32 %v1170, %v1917
        %v2052 = vsub.f32 %v1171, %v1922
        %v2053 = vsub.f32 %v1172, %v1922
        %v2054 = vsub.f32 %v1173, %v1922
        %v2055 = vsub.f32 %v1174, %v1922
        %v2056 = vsub.f32 %v1175, %v1927
        %v2057 = vsub.f32 %v1176, %v1927
        %v2058 = vsub.f32 %v1177, %v1927
        %v2059 = vsub.f32 %v1178, %v1927
        %v2060 = vsub.f32 %v1179, %v1932
        %v2061 = vsub.f32 %v1180, %v1932
        %v2062 = vsub.f32 %v1181, %v1932
        %v2063 = vsub.f32 %v1182, %v1932
        %v2064 = vsub.f32 %v1183, %v1937
        %v2065 = vsub.f32 %v1184, %v1937
        %v2066 = vsub.f32 %v1185, %v1937
        %v2067 = vsub.f32 %v1186, %v1937
        %v2068 = vsub.f32 %v1187, %v1942
        %v2069 = vsub.f32 %v1188, %v1942
        %v2070 = vsub.f32 %v1189, %v1942
        %v2071 = vsub.f32 %v1190, %v1942
        %v2072 = vmul.f32 %v1944, 1.442695
        %v2073 = vpow.pop %v2072
        %v2074 = vmul.f32 %v1945, 1.442695
        %v2075 = vpow.pop %v2074
        %v2076 = vmul.f32 %v1946, 1.442695
        %v2077 = vpow.pop %v2076
        %v2078 = vmul.f32 %v1947, 1.442695
        %v2079 = vpow.pop %v2078
        %v2080 = vmul.f32 %v1948, 1.442695
        %v2081 = vpow.pop %v2080
        %v2082 = vmul.f32 %v1949, 1.442695
        %v2083 = vpow.pop %v2082
        %v2084 = vmul.f32 %v1950, 1.442695
        %v2085 = vpow.pop %v2084
        %v2086 = vmul.f32 %v1951, 1.442695
        %v2087 = vpow.pop %v2086
        %v2088 = vmul.f32 %v1952, 1.442695
        %v2089 = vpow.pop %v2088
        %v2090 = vmul.f32 %v1953, 1.442695
        %v2091 = vpow.pop %v2090
        %v2092 = vmul.f32 %v1954, 1.442695
        %v2093 = vpow.pop %v2092
        %v2094 = vmul.f32 %v1955, 1.442695
        %v2095 = vpow.pop %v2094
        %v2096 = vmul.f32 %v1956, 1.442695
        %v2097 = vpow.pop %v2096
        %v2098 = vmul.f32 %v1957, 1.442695
        %v2099 = vpow.pop %v2098
        %v2100 = vmul.f32 %v1958, 1.442695
        %v2101 = vpow.pop %v2100
        %v2102 = vmul.f32 %v1959, 1.442695
        %v2103 = vpow.pop %v2102
        %v2104 = vmul.f32 %v1960, 1.442695
        %v2105 = vpow.pop %v2104
        %v2106 = vmul.f32 %v1961, 1.442695
        %v2107 = vpow.pop %v2106
        %v2108 = vmul.f32 %v1962, 1.442695
        %v2109 = vpow.pop %v2108
        %v2110 = vmul.f32 %v1963, 1.442695
        %v2111 = vpow.pop %v2110
        %v2112 = vmul.f32 %v1964, 1.442695
        %v2113 = vpow.pop %v2112
        %v2114 = vmul.f32 %v1965, 1.442695
        %v2115 = vpow.pop %v2114
        %v2116 = vmul.f32 %v1966, 1.442695
        %v2117 = vpow.pop %v2116
        %v2118 = vmul.f32 %v1967, 1.442695
        %v2119 = vpow.pop %v2118
        %v2120 = vmul.f32 %v1968, 1.442695
        %v2121 = vpow.pop %v2120
        %v2122 = vmul.f32 %v1969, 1.442695
        %v2123 = vpow.pop %v2122
        %v2124 = vmul.f32 %v1970, 1.442695
        %v2125 = vpow.pop %v2124
        %v2126 = vmul.f32 %v1971, 1.442695
        %v2127 = vpow.pop %v2126
        %v2128 = vmul.f32 %v1972, 1.442695
        %v2129 = vpow.pop %v2128
        %v2130 = vmul.f32 %v1973, 1.442695
        %v2131 = vpow.pop %v2130
        %v2132 = vmul.f32 %v1974, 1.442695
        %v2133 = vpow.pop %v2132
        %v2134 = vmul.f32 %v1975, 1.442695
        %v2135 = vpow.pop %v2134
        %v2136 = vmul.f32 %v1976, 1.442695
        %v2137 = vpow.pop %v2136
        %v2138 = vmul.f32 %v1977, 1.442695
        %v2139 = vpow.pop %v2138
        %v2140 = vmul.f32 %v1978, 1.442695
        %v2141 = vpow.pop %v2140
        %v2142 = vmul.f32 %v1979, 1.442695
        %v2143 = vpow.pop %v2142
        %v2144 = vmul.f32 %v1980, 1.442695
        %v2145 = vpow.pop %v2144
        %v2146 = vmul.f32 %v1981, 1.442695
        %v2147 = vpow.pop %v2146
        %v2148 = vmul.f32 %v1982, 1.442695
        %v2149 = vpow.pop %v2148
        %v2150 = vmul.f32 %v1983, 1.442695
        %v2151 = vpow.pop %v2150
        %v2152 = vmul.f32 %v1984, 1.442695
        %v2153 = vpow.pop %v2152
        %v2154 = vmul.f32 %v1985, 1.442695
        %v2155 = vpow.pop %v2154
        %v2156 = vmul.f32 %v1986, 1.442695
        %v2157 = vpow.pop %v2156
        %v2158 = vmul.f32 %v1987, 1.442695
        %v2159 = vpow.pop %v2158
        %v2160 = vmul.f32 %v1988, 1.442695
        %v2161 = vpow.pop %v2160
        %v2162 = vmul.f32 %v1989, 1.442695
        %v2163 = vpow.pop %v2162
        %v2164 = vmul.f32 %v1990, 1.442695
        %v2165 = vpow.pop %v2164
        %v2166 = vmul.f32 %v1991, 1.442695
        %v2167 = vpow.pop %v2166
        %v2168 = vmul.f32 %v1992, 1.442695
        %v2169 = vpow.pop %v2168
        %v2170 = vmul.f32 %v1993, 1.442695
        %v2171 = vpow.pop %v2170
        %v2172 = vmul.f32 %v1994, 1.442695
        %v2173 = vpow.pop %v2172
        %v2174 = vmul.f32 %v1995, 1.442695
        %v2175 = vpow.pop %v2174
        %v2176 = vmul.f32 %v1996, 1.442695
        %v2177 = vpow.pop %v2176
        %v2178 = vmul.f32 %v1997, 1.442695
        %v2179 = vpow.pop %v2178
        %v2180 = vmul.f32 %v1998, 1.442695
        %v2181 = vpow.pop %v2180
        %v2182 = vmul.f32 %v1999, 1.442695
        %v2183 = vpow.pop %v2182
        %v2184 = vmul.f32 %v2000, 1.442695
        %v2185 = vpow.pop %v2184
        %v2186 = vmul.f32 %v2001, 1.442695
        %v2187 = vpow.pop %v2186
        %v2188 = vmul.f32 %v2002, 1.442695
        %v2189 = vpow.pop %v2188
        %v2190 = vmul.f32 %v2003, 1.442695
        %v2191 = vpow.pop %v2190
        %v2192 = vmul.f32 %v2004, 1.442695
        %v2193 = vpow.pop %v2192
        %v2194 = vmul.f32 %v2005, 1.442695
        %v2195 = vpow.pop %v2194
        %v2196 = vmul.f32 %v2006, 1.442695
        %v2197 = vpow.pop %v2196
        %v2198 = vmul.f32 %v2007, 1.442695
        %v2199 = vpow.pop %v2198
        %v2200 = vmul.f32 %v2008, 1.442695
        %v2201 = vpow.pop %v2200
        %v2202 = vmul.f32 %v2009, 1.442695
        %v2203 = vpow.pop %v2202
        %v2204 = vmul.f32 %v2010, 1.442695
        %v2205 = vpow.pop %v2204
        %v2206 = vmul.f32 %v2011, 1.442695
        %v2207 = vpow.pop %v2206
        %v2208 = vmul.f32 %v2012, 1.442695
        %v2209 = vpow.pop %v2208
        %v2210 = vmul.f32 %v2013, 1.442695
        %v2211 = vpow.pop %v2210
        %v2212 = vmul.f32 %v2014, 1.442695
        %v2213 = vpow.pop %v2212
        %v2214 = vmul.f32 %v2015, 1.442695
        %v2215 = vpow.pop %v2214
        %v2216 = vmul.f32 %v2016, 1.442695
        %v2217 = vpow.pop %v2216
        %v2218 = vmul.f32 %v2017, 1.442695
        %v2219 = vpow.pop %v2218
        %v2220 = vmul.f32 %v2018, 1.442695
        %v2221 = vpow.pop %v2220
        %v2222 = vmul.f32 %v2019, 1.442695
        %v2223 = vpow.pop %v2222
        %v2224 = vmul.f32 %v2020, 1.442695
        %v2225 = vpow.pop %v2224
        %v2226 = vmul.f32 %v2021, 1.442695
        %v2227 = vpow.pop %v2226
        %v2228 = vmul.f32 %v2022, 1.442695
        %v2229 = vpow.pop %v2228
        %v2230 = vmul.f32 %v2023, 1.442695
        %v2231 = vpow.pop %v2230
        %v2232 = vmul.f32 %v2024, 1.442695
        %v2233 = vpow.pop %v2232
        %v2234 = vmul.f32 %v2025, 1.442695
        %v2235 = vpow.pop %v2234
        %v2236 = vmul.f32 %v2026, 1.442695
        %v2237 = vpow.pop %v2236
        %v2238 = vmul.f32 %v2027, 1.442695
        %v2239 = vpow.pop %v2238
        %v2240 = vmul.f32 %v2028, 1.442695
        %v2241 = vpow.pop %v2240
        %v2242 = vmul.f32 %v2029, 1.442695
        %v2243 = vpow.pop %v2242
        %v2244 = vmul.f32 %v2030, 1.442695
        %v2245 = vpow.pop %v2244
        %v2246 = vmul.f32 %v2031, 1.442695
        %v2247 = vpow.pop %v2246
        %v2248 = vmul.f32 %v2032, 1.442695
        %v2249 = vpow.pop %v2248
        %v2250 = vmul.f32 %v2033, 1.442695
        %v2251 = vpow.pop %v2250
        %v2252 = vmul.f32 %v2034, 1.442695
        %v2253 = vpow.pop %v2252
        %v2254 = vmul.f32 %v2035, 1.442695
        %v2255 = vpow.pop %v2254
        %v2256 = vmul.f32 %v2036, 1.442695
        %v2257 = vpow.pop %v2256
        %v2258 = vmul.f32 %v2037, 1.442695
        %v2259 = vpow.pop %v2258
        %v2260 = vmul.f32 %v2038, 1.442695
        %v2261 = vpow.pop %v2260
        %v2262 = vmul.f32 %v2039, 1.442695
        %v2263 = vpow.pop %v2262
        %v2264 = vmul.f32 %v2040, 1.442695
        %v2265 = vpow.pop %v2264
        %v2266 = vmul.f32 %v2041, 1.442695
        %v2267 = vpow.pop %v2266
        %v2268 = vmul.f32 %v2042, 1.442695
        %v2269 = vpow.pop %v2268
        %v2270 = vmul.f32 %v2043, 1.442695
        %v2271 = vpow.pop %v2270
        %v2272 = vmul.f32 %v2044, 1.442695
        %v2273 = vpow.pop %v2272
        %v2274 = vmul.f32 %v2045, 1.442695
        %v2275 = vpow.pop %v2274
        %v2276 = vmul.f32 %v2046, 1.442695
        %v2277 = vpow.pop %v2276
        %v2278 = vmul.f32 %v2047, 1.442695
        %v2279 = vpow.pop %v2278
        %v2280 = vmul.f32 %v2048, 1.442695
        %v2281 = vpow.pop %v2280
        %v2282 = vmul.f32 %v2049, 1.442695
        %v2283 = vpow.pop %v2282
        %v2284 = vmul.f32 %v2050, 1.442695
        %v2285 = vpow.pop %v2284
        %v2286 = vmul.f32 %v2051, 1.442695
        %v2287 = vpow.pop %v2286
        %v2288 = vmul.f32 %v2052, 1.442695
        %v2289 = vpow.pop %v2288
        %v2290 = vmul.f32 %v2053, 1.442695
        %v2291 = vpow.pop %v2290
        %v2292 = vmul.f32 %v2054, 1.442695
        %v2293 = vpow.pop %v2292
        %v2294 = vmul.f32 %v2055, 1.442695
        %v2295 = vpow.pop %v2294
        %v2296 = vmul.f32 %v2056, 1.442695
        %v2297 = vpow.pop %v2296
        %v2298 = vmul.f32 %v2057, 1.442695
        %v2299 = vpow.pop %v2298
        %v2300 = vmul.f32 %v2058, 1.442695
        %v2301 = vpow.pop %v2300
        %v2302 = vmul.f32 %v2059, 1.442695
        %v2303 = vpow.pop %v2302
        %v2304 = vmul.f32 %v2060, 1.442695
        %v2305 = vpow.pop %v2304
        %v2306 = vmul.f32 %v2061, 1.442695
        %v2307 = vpow.pop %v2306
        %v2308 = vmul.f32 %v2062, 1.442695
        %v2309 = vpow.pop %v2308
        %v2310 = vmul.f32 %v2063, 1.442695
        %v2311 = vpow.pop %v2310
        %v2312 = vmul.f32 %v2064, 1.442695
        %v2313 = vpow.pop %v2312
        %v2314 = vmul.f32 %v2065, 1.442695
        %v2315 = vpow.pop %v2314
        %v2316 = vmul.f32 %v2066, 1.442695
        %v2317 = vpow.pop %v2316
        %v2318 = vmul.f32 %v2067, 1.442695
        %v2319 = vpow.pop %v2318
        %v2320 = vmul.f32 %v2068, 1.442695
        %v2321 = vpow.pop %v2320
        %v2322 = vmul.f32 %v2069, 1.442695
        %v2323 = vpow.pop %v2322
        %v2324 = vmul.f32 %v2070, 1.442695
        %v2325 = vpow.pop %v2324
        %v2326 = vmul.f32 %v2071, 1.442695
        %v2327 = vpow.pop %v2326
        %vm2328 = vcmask 7168
        %2329 = vst.msk [vmem:[#allocation2] sm:$0xff] %vm2328, %v1656
        %2330 = vst.msk [vmem:[#allocation2 + $0x8] sm:$0xff] %vm2328, %v1657
        %2331 = vst.msk [vmem:[#allocation2 + $0x10] sm:$0xff] %vm2328, %v1658
        %2332 = vst.msk [vmem:[#allocation2 + $0x18] sm:$0xff] %vm2328, %v1659
        %2333 = vst.msk [vmem:[#allocation2 + $0x20] sm:$0xff] %vm2328, %v1660
        %2334 = vst.msk [vmem:[#allocation2 + $0x28] sm:$0xff] %vm2328, %v1661
        %2335 = vst.msk [vmem:[#allocation2 + $0x30] sm:$0xff] %vm2328, %v1662
        %2336 = vst.msk [vmem:[#allocation2 + $0x38] sm:$0xff] %vm2328, %v1663
        %2337 = vst.msk [vmem:[#allocation2 + $0x40] sm:$0xff] %vm2328, %v1664
        %2338 = vst.msk [vmem:[#allocation2 + $0x48] sm:$0xff] %vm2328, %v1665
        %2339 = vst.msk [vmem:[#allocation2 + $0x50] sm:$0xff] %vm2328, %v1666
        %2340 = vst.msk [vmem:[#allocation2 + $0x58] sm:$0xff] %vm2328, %v1667
        %2341 = vst.msk [vmem:[#allocation2 + $0x60] sm:$0xff] %vm2328, %v1668
        %2342 = vst.msk [vmem:[#allocation2 + $0x68] sm:$0xff] %vm2328, %v1669
        %2343 = vst.msk [vmem:[#allocation2 + $0x70] sm:$0xff] %vm2328, %v1670
        %2344 = vst.msk [vmem:[#allocation2 + $0x78] sm:$0xff] %vm2328, %v1671
        %2345 = vst.msk [vmem:[#allocation2 + $0x80] sm:$0xff] %vm2328, %v1672
        %2346 = vst.msk [vmem:[#allocation2 + $0x88] sm:$0xff] %vm2328, %v1673
        %2347 = vst.msk [vmem:[#allocation2 + $0x90] sm:$0xff] %vm2328, %v1674
        %2348 = vst.msk [vmem:[#allocation2 + $0x98] sm:$0xff] %vm2328, %v1675
        %2349 = vst.msk [vmem:[#allocation2 + $0xa0] sm:$0xff] %vm2328, %v1676
        %2350 = vst.msk [vmem:[#allocation2 + $0xa8] sm:$0xff] %vm2328, %v1677
        %2351 = vst.msk [vmem:[#allocation2 + $0xb0] sm:$0xff] %vm2328, %v1678
        %2352 = vst.msk [vmem:[#allocation2 + $0xb8] sm:$0xff] %vm2328, %v1679
        %2353 = vst.msk [vmem:[#allocation2 + $0xc0] sm:$0xff] %vm2328, %v1680
        %2354 = vst.msk [vmem:[#allocation2 + $0xc8] sm:$0xff] %vm2328, %v1681
        %2355 = vst.msk [vmem:[#allocation2 + $0xd0] sm:$0xff] %vm2328, %v1682
        %2356 = vst.msk [vmem:[#allocation2 + $0xd8] sm:$0xff] %vm2328, %v1683
        %2357 = vst.msk [vmem:[#allocation2 + $0xe0] sm:$0xff] %vm2328, %v1684
        %2358 = vst.msk [vmem:[#allocation2 + $0xe8] sm:$0xff] %vm2328, %v1685
        %2359 = vst.msk [vmem:[#allocation2 + $0xf0] sm:$0xff] %vm2328, %v1686
        %2360 = vst.msk [vmem:[#allocation2 + $0xf8] sm:$0xff] %vm2328, %v1687
        %s2361 = smul.u32 %s31, 256
        %s2362 = smul.u32 %s32, 512
        %s2363 = sadd.s32 %s2362, 512
        %p2364 = scmp.lt.s32.totalorder %s2361, %s2363
        %s2365 = sadd.s32 %s2361, 256
        %p2366 = scmp.lt.s32.totalorder %s2362, %s2365
        %p2367 = pnand %p2364, %p2366
        %p2368 = pneg %p2367
        %p2369 = scmp.gt.s32.totalorder %s2363, 8
        %p2370 = por %p2368, %p2369
        // Predicated region
        $region57: #{tpu_custom_call.1} parent=35 // pred_check
          %p2371 = pneg %p2370
        $region58: #{tpu_custom_call.1} parent=35 // pred_check_branch
          %2373 = sbr.rel (%p2371) target = $region60
        $region59: #{tpu_custom_call.1} parent=35 // pred_region
          %v2374 = vlaneseq
          %v2375 = vshrl.u32 %v2374, 7
          %v2376 = vadd.s32 %v2375, 8
          %v2377 = vadd.s32 %v2375, 16
          %v2378 = vadd.s32 %v2375, 24
          %v2379 = vadd.s32 %v2375, 32
          %v2380 = vadd.s32 %v2375, 40
          %v2381 = vadd.s32 %v2375, 48
          %v2382 = vadd.s32 %v2375, 56
          %v2383 = vadd.s32 %v2375, 64
          %v2384 = vadd.s32 %v2375, 72
          %v2385 = vadd.s32 %v2375, 80
          %v2386 = vadd.s32 %v2375, 88
          %v2387 = vadd.s32 %v2375, 96
          %v2388 = vadd.s32 %v2375, 104
          %v2389 = vadd.s32 %v2375, 112
          %v2390 = vadd.s32 %v2375, 120
          %v2391 = vadd.s32 %v2375, 128
          %v2392 = vadd.s32 %v2375, 136
          %v2393 = vadd.s32 %v2375, 144
          %v2394 = vadd.s32 %v2375, 152
          %v2395 = vadd.s32 %v2375, 160
          %v2396 = vadd.s32 %v2375, 168
          %v2397 = vadd.s32 %v2375, 176
          %v2398 = vadd.s32 %v2375, 184
          %v2399 = vadd.s32 %v2375, 192
          %v2400 = vadd.s32 %v2375, 200
          %v2401 = vadd.s32 %v2375, 208
          %v2402 = vadd.s32 %v2375, 216
          %v2403 = vadd.s32 %v2375, 224
          %v2404 = vadd.s32 %v2375, 232
          %v2405 = vadd.s32 %v2375, 240
          %v2406 = vadd.s32 %v2375, 248
          %v2407 = vstv %s2361
          %v2408 = vadd.s32 %v2407, %v2375
          %v2409 = vadd.s32 %v2407, %v2376
          %v2410 = vadd.s32 %v2407, %v2377
          %v2411 = vadd.s32 %v2407, %v2378
          %v2412 = vadd.s32 %v2407, %v2379
          %v2413 = vadd.s32 %v2407, %v2380
          %v2414 = vadd.s32 %v2407, %v2381
          %v2415 = vadd.s32 %v2407, %v2382
          %v2416 = vadd.s32 %v2407, %v2383
          %v2417 = vadd.s32 %v2407, %v2384
          %v2418 = vadd.s32 %v2407, %v2385
          %v2419 = vadd.s32 %v2407, %v2386
          %v2420 = vadd.s32 %v2407, %v2387
          %v2421 = vadd.s32 %v2407, %v2388
          %v2422 = vadd.s32 %v2407, %v2389
          %v2423 = vadd.s32 %v2407, %v2390
          %v2424 = vadd.s32 %v2407, %v2391
          %v2425 = vadd.s32 %v2407, %v2392
          %v2426 = vadd.s32 %v2407, %v2393
          %v2427 = vadd.s32 %v2407, %v2394
          %v2428 = vadd.s32 %v2407, %v2395
          %v2429 = vadd.s32 %v2407, %v2396
          %v2430 = vadd.s32 %v2407, %v2397
          %v2431 = vadd.s32 %v2407, %v2398
          %v2432 = vadd.s32 %v2407, %v2399
          %v2433 = vadd.s32 %v2407, %v2400
          %v2434 = vadd.s32 %v2407, %v2401
          %v2435 = vadd.s32 %v2407, %v2402
          %v2436 = vadd.s32 %v2407, %v2403
          %v2437 = vadd.s32 %v2407, %v2404
          %v2438 = vadd.s32 %v2407, %v2405
          %v2439 = vadd.s32 %v2407, %v2406
          %v2440 = vlaneseq
          %v2441 = vand.u32 %v2440, 127
          %v2442 = vadd.s32 %v2441, 128
          %v2443 = vadd.s32 %v2441, 256
          %v2444 = vadd.s32 %v2441, 384
          %v2445 = vstv %s2362
          %v2446 = vadd.s32 %v2445, %v2441
          %v2447 = vadd.s32 %v2445, %v2442
          %v2448 = vadd.s32 %v2445, %v2443
          %v2449 = vadd.s32 %v2445, %v2444
          %vm2450 = vcmp.lt.s32.totalorder %v2446, 8
          %vm2451 = vcmp.lt.s32.totalorder %v2447, 8
          %vm2452 = vcmp.lt.s32.totalorder %v2448, 8
          %vm2453 = vcmp.lt.s32.totalorder %v2449, 8
          %vm2454 = vcmp.ne.s32.totalorder %v2408, %v2446
          %vm2455 = vcmp.ne.s32.totalorder %v2408, %v2447
          %vm2456 = vcmp.ne.s32.totalorder %v2408, %v2448
          %vm2457 = vcmp.ne.s32.totalorder %v2408, %v2449
          %vm2458 = vcmp.ne.s32.totalorder %v2409, %v2446
          %vm2459 = vcmp.ne.s32.totalorder %v2409, %v2447
          %vm2460 = vcmp.ne.s32.totalorder %v2409, %v2448
          %vm2461 = vcmp.ne.s32.totalorder %v2409, %v2449
          %vm2462 = vcmp.ne.s32.totalorder %v2410, %v2446
          %vm2463 = vcmp.ne.s32.totalorder %v2410, %v2447
          %vm2464 = vcmp.ne.s32.totalorder %v2410, %v2448
          %vm2465 = vcmp.ne.s32.totalorder %v2410, %v2449
          %vm2466 = vcmp.ne.s32.totalorder %v2411, %v2446
          %vm2467 = vcmp.ne.s32.totalorder %v2411, %v2447
          %vm2468 = vcmp.ne.s32.totalorder %v2411, %v2448
          %vm2469 = vcmp.ne.s32.totalorder %v2411, %v2449
          %vm2470 = vcmp.ne.s32.totalorder %v2412, %v2446
          %vm2471 = vcmp.ne.s32.totalorder %v2412, %v2447
          %vm2472 = vcmp.ne.s32.totalorder %v2412, %v2448
          %vm2473 = vcmp.ne.s32.totalorder %v2412, %v2449
          %vm2474 = vcmp.ne.s32.totalorder %v2413, %v2446
          %vm2475 = vcmp.ne.s32.totalorder %v2413, %v2447
          %vm2476 = vcmp.ne.s32.totalorder %v2413, %v2448
          %vm2477 = vcmp.ne.s32.totalorder %v2413, %v2449
          %vm2478 = vcmp.ne.s32.totalorder %v2414, %v2446
          %vm2479 = vcmp.ne.s32.totalorder %v2414, %v2447
          %vm2480 = vcmp.ne.s32.totalorder %v2414, %v2448
          %vm2481 = vcmp.ne.s32.totalorder %v2414, %v2449
          %vm2482 = vcmp.ne.s32.totalorder %v2415, %v2446
          %vm2483 = vcmp.ne.s32.totalorder %v2415, %v2447
          %vm2484 = vcmp.ne.s32.totalorder %v2415, %v2448
          %vm2485 = vcmp.ne.s32.totalorder %v2415, %v2449
          %vm2486 = vcmp.ne.s32.totalorder %v2416, %v2446
          %vm2487 = vcmp.ne.s32.totalorder %v2416, %v2447
          %vm2488 = vcmp.ne.s32.totalorder %v2416, %v2448
          %vm2489 = vcmp.ne.s32.totalorder %v2416, %v2449
          %vm2490 = vcmp.ne.s32.totalorder %v2417, %v2446
          %vm2491 = vcmp.ne.s32.totalorder %v2417, %v2447
          %vm2492 = vcmp.ne.s32.totalorder %v2417, %v2448
          %vm2493 = vcmp.ne.s32.totalorder %v2417, %v2449
          %vm2494 = vcmp.ne.s32.totalorder %v2418, %v2446
          %vm2495 = vcmp.ne.s32.totalorder %v2418, %v2447
          %vm2496 = vcmp.ne.s32.totalorder %v2418, %v2448
          %vm2497 = vcmp.ne.s32.totalorder %v2418, %v2449
          %vm2498 = vcmp.ne.s32.totalorder %v2419, %v2446
          %vm2499 = vcmp.ne.s32.totalorder %v2419, %v2447
          %vm2500 = vcmp.ne.s32.totalorder %v2419, %v2448
          %vm2501 = vcmp.ne.s32.totalorder %v2419, %v2449
          %vm2502 = vcmp.ne.s32.totalorder %v2420, %v2446
          %vm2503 = vcmp.ne.s32.totalorder %v2420, %v2447
          %vm2504 = vcmp.ne.s32.totalorder %v2420, %v2448
          %vm2505 = vcmp.ne.s32.totalorder %v2420, %v2449
          %vm2506 = vcmp.ne.s32.totalorder %v2421, %v2446
          %vm2507 = vcmp.ne.s32.totalorder %v2421, %v2447
          %vm2508 = vcmp.ne.s32.totalorder %v2421, %v2448
          %vm2509 = vcmp.ne.s32.totalorder %v2421, %v2449
          %vm2510 = vcmp.ne.s32.totalorder %v2422, %v2446
          %vm2511 = vcmp.ne.s32.totalorder %v2422, %v2447
          %vm2512 = vcmp.ne.s32.totalorder %v2422, %v2448
          %vm2513 = vcmp.ne.s32.totalorder %v2422, %v2449
          %vm2514 = vcmp.ne.s32.totalorder %v2423, %v2446
          %vm2515 = vcmp.ne.s32.totalorder %v2423, %v2447
          %vm2516 = vcmp.ne.s32.totalorder %v2423, %v2448
          %vm2517 = vcmp.ne.s32.totalorder %v2423, %v2449
          %vm2518 = vcmp.ne.s32.totalorder %v2424, %v2446
          %vm2519 = vcmp.ne.s32.totalorder %v2424, %v2447
          %vm2520 = vcmp.ne.s32.totalorder %v2424, %v2448
          %vm2521 = vcmp.ne.s32.totalorder %v2424, %v2449
          %vm2522 = vcmp.ne.s32.totalorder %v2425, %v2446
          %vm2523 = vcmp.ne.s32.totalorder %v2425, %v2447
          %vm2524 = vcmp.ne.s32.totalorder %v2425, %v2448
          %vm2525 = vcmp.ne.s32.totalorder %v2425, %v2449
          %vm2526 = vcmp.ne.s32.totalorder %v2426, %v2446
          %vm2527 = vcmp.ne.s32.totalorder %v2426, %v2447
          %vm2528 = vcmp.ne.s32.totalorder %v2426, %v2448
          %vm2529 = vcmp.ne.s32.totalorder %v2426, %v2449
          %vm2530 = vcmp.ne.s32.totalorder %v2427, %v2446
          %vm2531 = vcmp.ne.s32.totalorder %v2427, %v2447
          %vm2532 = vcmp.ne.s32.totalorder %v2427, %v2448
          %vm2533 = vcmp.ne.s32.totalorder %v2427, %v2449
          %vm2534 = vcmp.ne.s32.totalorder %v2428, %v2446
          %vm2535 = vcmp.ne.s32.totalorder %v2428, %v2447
          %vm2536 = vcmp.ne.s32.totalorder %v2428, %v2448
          %vm2537 = vcmp.ne.s32.totalorder %v2428, %v2449
          %vm2538 = vcmp.ne.s32.totalorder %v2429, %v2446
          %vm2539 = vcmp.ne.s32.totalorder %v2429, %v2447
          %vm2540 = vcmp.ne.s32.totalorder %v2429, %v2448
          %vm2541 = vcmp.ne.s32.totalorder %v2429, %v2449
          %vm2542 = vcmp.ne.s32.totalorder %v2430, %v2446
          %vm2543 = vcmp.ne.s32.totalorder %v2430, %v2447
          %vm2544 = vcmp.ne.s32.totalorder %v2430, %v2448
          %vm2545 = vcmp.ne.s32.totalorder %v2430, %v2449
          %vm2546 = vcmp.ne.s32.totalorder %v2431, %v2446
          %vm2547 = vcmp.ne.s32.totalorder %v2431, %v2447
          %vm2548 = vcmp.ne.s32.totalorder %v2431, %v2448
          %vm2549 = vcmp.ne.s32.totalorder %v2431, %v2449
          %vm2550 = vcmp.ne.s32.totalorder %v2432, %v2446
          %vm2551 = vcmp.ne.s32.totalorder %v2432, %v2447
          %vm2552 = vcmp.ne.s32.totalorder %v2432, %v2448
          %vm2553 = vcmp.ne.s32.totalorder %v2432, %v2449
          %vm2554 = vcmp.ne.s32.totalorder %v2433, %v2446
          %vm2555 = vcmp.ne.s32.totalorder %v2433, %v2447
          %vm2556 = vcmp.ne.s32.totalorder %v2433, %v2448
          %vm2557 = vcmp.ne.s32.totalorder %v2433, %v2449
          %vm2558 = vcmp.ne.s32.totalorder %v2434, %v2446
          %vm2559 = vcmp.ne.s32.totalorder %v2434, %v2447
          %vm2560 = vcmp.ne.s32.totalorder %v2434, %v2448
          %vm2561 = vcmp.ne.s32.totalorder %v2434, %v2449
          %vm2562 = vcmp.ne.s32.totalorder %v2435, %v2446
          %vm2563 = vcmp.ne.s32.totalorder %v2435, %v2447
          %vm2564 = vcmp.ne.s32.totalorder %v2435, %v2448
          %vm2565 = vcmp.ne.s32.totalorder %v2435, %v2449
          %vm2566 = vcmp.ne.s32.totalorder %v2436, %v2446
          %vm2567 = vcmp.ne.s32.totalorder %v2436, %v2447
          %vm2568 = vcmp.ne.s32.totalorder %v2436, %v2448
          %vm2569 = vcmp.ne.s32.totalorder %v2436, %v2449
          %vm2570 = vcmp.ne.s32.totalorder %v2437, %v2446
          %vm2571 = vcmp.ne.s32.totalorder %v2437, %v2447
          %vm2572 = vcmp.ne.s32.totalorder %v2437, %v2448
          %vm2573 = vcmp.ne.s32.totalorder %v2437, %v2449
          %vm2574 = vcmp.ne.s32.totalorder %v2438, %v2446
          %vm2575 = vcmp.ne.s32.totalorder %v2438, %v2447
          %vm2576 = vcmp.ne.s32.totalorder %v2438, %v2448
          %vm2577 = vcmp.ne.s32.totalorder %v2438, %v2449
          %vm2578 = vcmp.ne.s32.totalorder %v2439, %v2446
          %vm2579 = vcmp.ne.s32.totalorder %v2439, %v2447
          %vm2580 = vcmp.ne.s32.totalorder %v2439, %v2448
          %vm2581 = vcmp.ne.s32.totalorder %v2439, %v2449
          %v2582 = vsel %vm2450, 1, 0
          %v2583 = vsel %vm2451, 1, 0
          %v2584 = vsel %vm2452, 1, 0
          %v2585 = vsel %vm2453, 1, 0
          %vm2586 = vcmp.eq.s32.totalorder %v2582, 1
          %vm2587 = vcmp.eq.s32.totalorder %v2583, 1
          %vm2588 = vcmp.eq.s32.totalorder %v2584, 1
          %vm2589 = vcmp.eq.s32.totalorder %v2585, 1
          %vm2590 = vmand %vm2586, %vm2454
          %vm2591 = vmand %vm2587, %vm2455
          %vm2592 = vmand %vm2588, %vm2456
          %vm2593 = vmand %vm2589, %vm2457
          %vm2594 = vmand %vm2586, %vm2458
          %vm2595 = vmand %vm2587, %vm2459
          %vm2596 = vmand %vm2588, %vm2460
          %vm2597 = vmand %vm2589, %vm2461
          %vm2598 = vmand %vm2586, %vm2462
          %vm2599 = vmand %vm2587, %vm2463
          %vm2600 = vmand %vm2588, %vm2464
          %vm2601 = vmand %vm2589, %vm2465
          %vm2602 = vmand %vm2586, %vm2466
          %vm2603 = vmand %vm2587, %vm2467
          %vm2604 = vmand %vm2588, %vm2468
          %vm2605 = vmand %vm2589, %vm2469
          %vm2606 = vmand %vm2586, %vm2470
          %vm2607 = vmand %vm2587, %vm2471
          %vm2608 = vmand %vm2588, %vm2472
          %vm2609 = vmand %vm2589, %vm2473
          %vm2610 = vmand %vm2586, %vm2474
          %vm2611 = vmand %vm2587, %vm2475
          %vm2612 = vmand %vm2588, %vm2476
          %vm2613 = vmand %vm2589, %vm2477
          %vm2614 = vmand %vm2586, %vm2478
          %vm2615 = vmand %vm2587, %vm2479
          %vm2616 = vmand %vm2588, %vm2480
          %vm2617 = vmand %vm2589, %vm2481
          %vm2618 = vmand %vm2586, %vm2482
          %vm2619 = vmand %vm2587, %vm2483
          %vm2620 = vmand %vm2588, %vm2484
          %vm2621 = vmand %vm2589, %vm2485
          %vm2622 = vmand %vm2586, %vm2486
          %vm2623 = vmand %vm2587, %vm2487
          %vm2624 = vmand %vm2588, %vm2488
          %vm2625 = vmand %vm2589, %vm2489
          %vm2626 = vmand %vm2586, %vm2490
          %vm2627 = vmand %vm2587, %vm2491
          %vm2628 = vmand %vm2588, %vm2492
          %vm2629 = vmand %vm2589, %vm2493
          %vm2630 = vmand %vm2586, %vm2494
          %vm2631 = vmand %vm2587, %vm2495
          %vm2632 = vmand %vm2588, %vm2496
          %vm2633 = vmand %vm2589, %vm2497
          %vm2634 = vmand %vm2586, %vm2498
          %vm2635 = vmand %vm2587, %vm2499
          %vm2636 = vmand %vm2588, %vm2500
          %vm2637 = vmand %vm2589, %vm2501
          %vm2638 = vmand %vm2586, %vm2502
          %vm2639 = vmand %vm2587, %vm2503
          %vm2640 = vmand %vm2588, %vm2504
          %vm2641 = vmand %vm2589, %vm2505
          %vm2642 = vmand %vm2586, %vm2506
          %vm2643 = vmand %vm2587, %vm2507
          %vm2644 = vmand %vm2588, %vm2508
          %vm2645 = vmand %vm2589, %vm2509
          %vm2646 = vmand %vm2586, %vm2510
          %vm2647 = vmand %vm2587, %vm2511
          %vm2648 = vmand %vm2588, %vm2512
          %vm2649 = vmand %vm2589, %vm2513
          %vm2650 = vmand %vm2586, %vm2514
          %vm2651 = vmand %vm2587, %vm2515
          %vm2652 = vmand %vm2588, %vm2516
          %vm2653 = vmand %vm2589, %vm2517
          %vm2654 = vmand %vm2586, %vm2518
          %vm2655 = vmand %vm2587, %vm2519
          %vm2656 = vmand %vm2588, %vm2520
          %vm2657 = vmand %vm2589, %vm2521
          %vm2658 = vmand %vm2586, %vm2522
          %vm2659 = vmand %vm2587, %vm2523
          %vm2660 = vmand %vm2588, %vm2524
          %vm2661 = vmand %vm2589, %vm2525
          %vm2662 = vmand %vm2586, %vm2526
          %vm2663 = vmand %vm2587, %vm2527
          %vm2664 = vmand %vm2588, %vm2528
          %vm2665 = vmand %vm2589, %vm2529
          %vm2666 = vmand %vm2586, %vm2530
          %vm2667 = vmand %vm2587, %vm2531
          %vm2668 = vmand %vm2588, %vm2532
          %vm2669 = vmand %vm2589, %vm2533
          %vm2670 = vmand %vm2586, %vm2534
          %vm2671 = vmand %vm2587, %vm2535
          %vm2672 = vmand %vm2588, %vm2536
          %vm2673 = vmand %vm2589, %vm2537
          %vm2674 = vmand %vm2586, %vm2538
          %vm2675 = vmand %vm2587, %vm2539
          %vm2676 = vmand %vm2588, %vm2540
          %vm2677 = vmand %vm2589, %vm2541
          %vm2678 = vmand %vm2586, %vm2542
          %vm2679 = vmand %vm2587, %vm2543
          %vm2680 = vmand %vm2588, %vm2544
          %vm2681 = vmand %vm2589, %vm2545
          %vm2682 = vmand %vm2586, %vm2546
          %vm2683 = vmand %vm2587, %vm2547
          %vm2684 = vmand %vm2588, %vm2548
          %vm2685 = vmand %vm2589, %vm2549
          %vm2686 = vmand %vm2586, %vm2550
          %vm2687 = vmand %vm2587, %vm2551
          %vm2688 = vmand %vm2588, %vm2552
          %vm2689 = vmand %vm2589, %vm2553
          %vm2690 = vmand %vm2586, %vm2554
          %vm2691 = vmand %vm2587, %vm2555
          %vm2692 = vmand %vm2588, %vm2556
          %vm2693 = vmand %vm2589, %vm2557
          %vm2694 = vmand %vm2586, %vm2558
          %vm2695 = vmand %vm2587, %vm2559
          %vm2696 = vmand %vm2588, %vm2560
          %vm2697 = vmand %vm2589, %vm2561
          %vm2698 = vmand %vm2586, %vm2562
          %vm2699 = vmand %vm2587, %vm2563
          %vm2700 = vmand %vm2588, %vm2564
          %vm2701 = vmand %vm2589, %vm2565
          %vm2702 = vmand %vm2586, %vm2566
          %vm2703 = vmand %vm2587, %vm2567
          %vm2704 = vmand %vm2588, %vm2568
          %vm2705 = vmand %vm2589, %vm2569
          %vm2706 = vmand %vm2586, %vm2570
          %vm2707 = vmand %vm2587, %vm2571
          %vm2708 = vmand %vm2588, %vm2572
          %vm2709 = vmand %vm2589, %vm2573
          %vm2710 = vmand %vm2586, %vm2574
          %vm2711 = vmand %vm2587, %vm2575
          %vm2712 = vmand %vm2588, %vm2576
          %vm2713 = vmand %vm2589, %vm2577
          %vm2714 = vmand %vm2586, %vm2578
          %vm2715 = vmand %vm2587, %vm2579
          %vm2716 = vmand %vm2588, %vm2580
          %vm2717 = vmand %vm2589, %vm2581
          %v2718 = vld [vmem:[#allocation3] sm:$0xff]
          %v2719 = vld [vmem:[#allocation3 + $0x8] sm:$0xff]
          %v2720 = vld [vmem:[#allocation3 + $0x10] sm:$0xff]
          %v2721 = vld [vmem:[#allocation3 + $0x18] sm:$0xff]
          %v2722 = vld [vmem:[#allocation3 + $0x20] sm:$0xff]
          %v2723 = vld [vmem:[#allocation3 + $0x28] sm:$0xff]
          %v2724 = vld [vmem:[#allocation3 + $0x30] sm:$0xff]
          %v2725 = vld [vmem:[#allocation3 + $0x38] sm:$0xff]
          %v2726 = vld [vmem:[#allocation3 + $0x40] sm:$0xff]
          %v2727 = vld [vmem:[#allocation3 + $0x48] sm:$0xff]
          %v2728 = vld [vmem:[#allocation3 + $0x50] sm:$0xff]
          %v2729 = vld [vmem:[#allocation3 + $0x58] sm:$0xff]
          %v2730 = vld [vmem:[#allocation3 + $0x60] sm:$0xff]
          %v2731 = vld [vmem:[#allocation3 + $0x68] sm:$0xff]
          %v2732 = vld [vmem:[#allocation3 + $0x70] sm:$0xff]
          %v2733 = vld [vmem:[#allocation3 + $0x78] sm:$0xff]
          %v2734 = vld [vmem:[#allocation3 + $0x80] sm:$0xff]
          %v2735 = vld [vmem:[#allocation3 + $0x88] sm:$0xff]
          %v2736 = vld [vmem:[#allocation3 + $0x90] sm:$0xff]
          %v2737 = vld [vmem:[#allocation3 + $0x98] sm:$0xff]
          %v2738 = vld [vmem:[#allocation3 + $0xa0] sm:$0xff]
          %v2739 = vld [vmem:[#allocation3 + $0xa8] sm:$0xff]
          %v2740 = vld [vmem:[#allocation3 + $0xb0] sm:$0xff]
          %v2741 = vld [vmem:[#allocation3 + $0xb8] sm:$0xff]
          %v2742 = vld [vmem:[#allocation3 + $0xc0] sm:$0xff]
          %v2743 = vld [vmem:[#allocation3 + $0xc8] sm:$0xff]
          %v2744 = vld [vmem:[#allocation3 + $0xd0] sm:$0xff]
          %v2745 = vld [vmem:[#allocation3 + $0xd8] sm:$0xff]
          %v2746 = vld [vmem:[#allocation3 + $0xe0] sm:$0xff]
          %v2747 = vld [vmem:[#allocation3 + $0xe8] sm:$0xff]
          %v2748 = vld [vmem:[#allocation3 + $0xf0] sm:$0xff]
          %v2749 = vld [vmem:[#allocation3 + $0xf8] sm:$0xff]
          %v2750 = vmul.f32 %v1721, %v2718
          %v2751 = vmul.f32 %v1723, %v2719
          %v2752 = vmul.f32 %v1725, %v2720
          %v2753 = vmul.f32 %v1727, %v2721
          %v2754 = vmul.f32 %v1729, %v2722
          %v2755 = vmul.f32 %v1731, %v2723
          %v2756 = vmul.f32 %v1733, %v2724
          %v2757 = vmul.f32 %v1735, %v2725
          %v2758 = vmul.f32 %v1737, %v2726
          %v2759 = vmul.f32 %v1739, %v2727
          %v2760 = vmul.f32 %v1741, %v2728
          %v2761 = vmul.f32 %v1743, %v2729
          %v2762 = vmul.f32 %v1745, %v2730
          %v2763 = vmul.f32 %v1747, %v2731
          %v2764 = vmul.f32 %v1749, %v2732
          %v2765 = vmul.f32 %v1751, %v2733
          %v2766 = vmul.f32 %v1753, %v2734
          %v2767 = vmul.f32 %v1755, %v2735
          %v2768 = vmul.f32 %v1757, %v2736
          %v2769 = vmul.f32 %v1759, %v2737
          %v2770 = vmul.f32 %v1761, %v2738
          %v2771 = vmul.f32 %v1763, %v2739
          %v2772 = vmul.f32 %v1765, %v2740
          %v2773 = vmul.f32 %v1767, %v2741
          %v2774 = vmul.f32 %v1769, %v2742
          %v2775 = vmul.f32 %v1771, %v2743
          %v2776 = vmul.f32 %v1773, %v2744
          %v2777 = vmul.f32 %v1775, %v2745
          %v2778 = vmul.f32 %v1777, %v2746
          %v2779 = vmul.f32 %v1779, %v2747
          %v2780 = vmul.f32 %v1781, %v2748
          %v2781 = vmul.f32 %v1783, %v2749
          %v2782 = vsel %vm2590, %v2073, 0.0
          %v2783 = vsel %vm2591, %v2075, 0.0
          %v2784 = vsel %vm2592, %v2077, 0.0
          %v2785 = vsel %vm2593, %v2079, 0.0
          %v2786 = vsel %vm2594, %v2081, 0.0
          %v2787 = vsel %vm2595, %v2083, 0.0
          %v2788 = vsel %vm2596, %v2085, 0.0
          %v2789 = vsel %vm2597, %v2087, 0.0
          %v2790 = vsel %vm2598, %v2089, 0.0
          %v2791 = vsel %vm2599, %v2091, 0.0
          %v2792 = vsel %vm2600, %v2093, 0.0
          %v2793 = vsel %vm2601, %v2095, 0.0
          %v2794 = vsel %vm2602, %v2097, 0.0
          %v2795 = vsel %vm2603, %v2099, 0.0
          %v2796 = vsel %vm2604, %v2101, 0.0
          %v2797 = vsel %vm2605, %v2103, 0.0
          %v2798 = vsel %vm2606, %v2105, 0.0
          %v2799 = vsel %vm2607, %v2107, 0.0
          %v2800 = vsel %vm2608, %v2109, 0.0
          %v2801 = vsel %vm2609, %v2111, 0.0
          %v2802 = vsel %vm2610, %v2113, 0.0
          %v2803 = vsel %vm2611, %v2115, 0.0
          %v2804 = vsel %vm2612, %v2117, 0.0
          %v2805 = vsel %vm2613, %v2119, 0.0
          %v2806 = vsel %vm2614, %v2121, 0.0
          %v2807 = vsel %vm2615, %v2123, 0.0
          %v2808 = vsel %vm2616, %v2125, 0.0
          %v2809 = vsel %vm2617, %v2127, 0.0
          %v2810 = vsel %vm2618, %v2129, 0.0
          %v2811 = vsel %vm2619, %v2131, 0.0
          %v2812 = vsel %vm2620, %v2133, 0.0
          %v2813 = vsel %vm2621, %v2135, 0.0
          %v2814 = vsel %vm2622, %v2137, 0.0
          %v2815 = vsel %vm2623, %v2139, 0.0
          %v2816 = vsel %vm2624, %v2141, 0.0
          %v2817 = vsel %vm2625, %v2143, 0.0
          %v2818 = vsel %vm2626, %v2145, 0.0
          %v2819 = vsel %vm2627, %v2147, 0.0
          %v2820 = vsel %vm2628, %v2149, 0.0
          %v2821 = vsel %vm2629, %v2151, 0.0
          %v2822 = vsel %vm2630, %v2153, 0.0
          %v2823 = vsel %vm2631, %v2155, 0.0
          %v2824 = vsel %vm2632, %v2157, 0.0
          %v2825 = vsel %vm2633, %v2159, 0.0
          %v2826 = vsel %vm2634, %v2161, 0.0
          %v2827 = vsel %vm2635, %v2163, 0.0
          %v2828 = vsel %vm2636, %v2165, 0.0
          %v2829 = vsel %vm2637, %v2167, 0.0
          %v2830 = vsel %vm2638, %v2169, 0.0
          %v2831 = vsel %vm2639, %v2171, 0.0
          %v2832 = vsel %vm2640, %v2173, 0.0
          %v2833 = vsel %vm2641, %v2175, 0.0
          %v2834 = vsel %vm2642, %v2177, 0.0
          %v2835 = vsel %vm2643, %v2179, 0.0
          %v2836 = vsel %vm2644, %v2181, 0.0
          %v2837 = vsel %vm2645, %v2183, 0.0
          %v2838 = vsel %vm2646, %v2185, 0.0
          %v2839 = vsel %vm2647, %v2187, 0.0
          %v2840 = vsel %vm2648, %v2189, 0.0
          %v2841 = vsel %vm2649, %v2191, 0.0
          %v2842 = vsel %vm2650, %v2193, 0.0
          %v2843 = vsel %vm2651, %v2195, 0.0
          %v2844 = vsel %vm2652, %v2197, 0.0
          %v2845 = vsel %vm2653, %v2199, 0.0
          %v2846 = vsel %vm2654, %v2201, 0.0
          %v2847 = vsel %vm2655, %v2203, 0.0
          %v2848 = vsel %vm2656, %v2205, 0.0
          %v2849 = vsel %vm2657, %v2207, 0.0
          %v2850 = vsel %vm2658, %v2209, 0.0
          %v2851 = vsel %vm2659, %v2211, 0.0
          %v2852 = vsel %vm2660, %v2213, 0.0
          %v2853 = vsel %vm2661, %v2215, 0.0
          %v2854 = vsel %vm2662, %v2217, 0.0
          %v2855 = vsel %vm2663, %v2219, 0.0
          %v2856 = vsel %vm2664, %v2221, 0.0
          %v2857 = vsel %vm2665, %v2223, 0.0
          %v2858 = vsel %vm2666, %v2225, 0.0
          %v2859 = vsel %vm2667, %v2227, 0.0
          %v2860 = vsel %vm2668, %v2229, 0.0
          %v2861 = vsel %vm2669, %v2231, 0.0
          %v2862 = vsel %vm2670, %v2233, 0.0
          %v2863 = vsel %vm2671, %v2235, 0.0
          %v2864 = vsel %vm2672, %v2237, 0.0
          %v2865 = vsel %vm2673, %v2239, 0.0
          %v2866 = vsel %vm2674, %v2241, 0.0
          %v2867 = vsel %vm2675, %v2243, 0.0
          %v2868 = vsel %vm2676, %v2245, 0.0
          %v2869 = vsel %vm2677, %v2247, 0.0
          %v2870 = vsel %vm2678, %v2249, 0.0
          %v2871 = vsel %vm2679, %v2251, 0.0
          %v2872 = vsel %vm2680, %v2253, 0.0
          %v2873 = vsel %vm2681, %v2255, 0.0
          %v2874 = vsel %vm2682, %v2257, 0.0
          %v2875 = vsel %vm2683, %v2259, 0.0
          %v2876 = vsel %vm2684, %v2261, 0.0
          %v2877 = vsel %vm2685, %v2263, 0.0
          %v2878 = vsel %vm2686, %v2265, 0.0
          %v2879 = vsel %vm2687, %v2267, 0.0
          %v2880 = vsel %vm2688, %v2269, 0.0
          %v2881 = vsel %vm2689, %v2271, 0.0
          %v2882 = vsel %vm2690, %v2273, 0.0
          %v2883 = vsel %vm2691, %v2275, 0.0
          %v2884 = vsel %vm2692, %v2277, 0.0
          %v2885 = vsel %vm2693, %v2279, 0.0
          %v2886 = vsel %vm2694, %v2281, 0.0
          %v2887 = vsel %vm2695, %v2283, 0.0
          %v2888 = vsel %vm2696, %v2285, 0.0
          %v2889 = vsel %vm2697, %v2287, 0.0
          %v2890 = vsel %vm2698, %v2289, 0.0
          %v2891 = vsel %vm2699, %v2291, 0.0
          %v2892 = vsel %vm2700, %v2293, 0.0
          %v2893 = vsel %vm2701, %v2295, 0.0
          %v2894 = vsel %vm2702, %v2297, 0.0
          %v2895 = vsel %vm2703, %v2299, 0.0
          %v2896 = vsel %vm2704, %v2301, 0.0
          %v2897 = vsel %vm2705, %v2303, 0.0
          %v2898 = vsel %vm2706, %v2305, 0.0
          %v2899 = vsel %vm2707, %v2307, 0.0
          %v2900 = vsel %vm2708, %v2309, 0.0
          %v2901 = vsel %vm2709, %v2311, 0.0
          %v2902 = vsel %vm2710, %v2313, 0.0
          %v2903 = vsel %vm2711, %v2315, 0.0
          %v2904 = vsel %vm2712, %v2317, 0.0
          %v2905 = vsel %vm2713, %v2319, 0.0
          %v2906 = vsel %vm2714, %v2321, 0.0
          %v2907 = vsel %vm2715, %v2323, 0.0
          %v2908 = vsel %vm2716, %v2325, 0.0
          %v2909 = vsel %vm2717, %v2327, 0.0
          %v2910 = vadd.f32 %v2782, %v2783
          %v2911 = vadd.f32 %v2910, %v2784
          %v2912 = vadd.f32 %v2911, %v2785
          %2913 = vadd.xlane.f32.xlu0 %v2912
          %v2914 = vpop.xlane.xlu0 %2913
          %v2915 = vadd.f32 %v2786, %v2787
          %v2916 = vadd.f32 %v2915, %v2788
          %v2917 = vadd.f32 %v2916, %v2789
          %2918 = vadd.xlane.f32.xlu0 %v2917
          %v2919 = vpop.xlane.xlu0 %2918
          %v2920 = vadd.f32 %v2790, %v2791
          %v2921 = vadd.f32 %v2920, %v2792
          %v2922 = vadd.f32 %v2921, %v2793
          %2923 = vadd.xlane.f32.xlu0 %v2922
          %v2924 = vpop.xlane.xlu0 %2923
          %v2925 = vadd.f32 %v2794, %v2795
          %v2926 = vadd.f32 %v2925, %v2796
          %v2927 = vadd.f32 %v2926, %v2797
          %2928 = vadd.xlane.f32.xlu0 %v2927
          %v2929 = vpop.xlane.xlu0 %2928
          %v2930 = vadd.f32 %v2798, %v2799
          %v2931 = vadd.f32 %v2930, %v2800
          %v2932 = vadd.f32 %v2931, %v2801
          %2933 = vadd.xlane.f32.xlu0 %v2932
          %v2934 = vpop.xlane.xlu0 %2933
          %v2935 = vadd.f32 %v2802, %v2803
          %v2936 = vadd.f32 %v2935, %v2804
          %v2937 = vadd.f32 %v2936, %v2805
          %2938 = vadd.xlane.f32.xlu0 %v2937
          %v2939 = vpop.xlane.xlu0 %2938
          %v2940 = vadd.f32 %v2806, %v2807
          %v2941 = vadd.f32 %v2940, %v2808
          %v2942 = vadd.f32 %v2941, %v2809
          %2943 = vadd.xlane.f32.xlu0 %v2942
          %v2944 = vpop.xlane.xlu0 %2943
          %v2945 = vadd.f32 %v2810, %v2811
          %v2946 = vadd.f32 %v2945, %v2812
          %v2947 = vadd.f32 %v2946, %v2813
          %2948 = vadd.xlane.f32.xlu0 %v2947
          %v2949 = vpop.xlane.xlu0 %2948
          %v2950 = vadd.f32 %v2814, %v2815
          %v2951 = vadd.f32 %v2950, %v2816
          %v2952 = vadd.f32 %v2951, %v2817
          %2953 = vadd.xlane.f32.xlu0 %v2952
          %v2954 = vpop.xlane.xlu0 %2953
          %v2955 = vadd.f32 %v2818, %v2819
          %v2956 = vadd.f32 %v2955, %v2820
          %v2957 = vadd.f32 %v2956, %v2821
          %2958 = vadd.xlane.f32.xlu0 %v2957
          %v2959 = vpop.xlane.xlu0 %2958
          %v2960 = vadd.f32 %v2822, %v2823
          %v2961 = vadd.f32 %v2960, %v2824
          %v2962 = vadd.f32 %v2961, %v2825
          %2963 = vadd.xlane.f32.xlu0 %v2962
          %v2964 = vpop.xlane.xlu0 %2963
          %v2965 = vadd.f32 %v2826, %v2827
          %v2966 = vadd.f32 %v2965, %v2828
          %v2967 = vadd.f32 %v2966, %v2829
          %2968 = vadd.xlane.f32.xlu0 %v2967
          %v2969 = vpop.xlane.xlu0 %2968
          %v2970 = vadd.f32 %v2830, %v2831
          %v2971 = vadd.f32 %v2970, %v2832
          %v2972 = vadd.f32 %v2971, %v2833
          %2973 = vadd.xlane.f32.xlu0 %v2972
          %v2974 = vpop.xlane.xlu0 %2973
          %v2975 = vadd.f32 %v2834, %v2835
          %v2976 = vadd.f32 %v2975, %v2836
          %v2977 = vadd.f32 %v2976, %v2837
          %2978 = vadd.xlane.f32.xlu0 %v2977
          %v2979 = vpop.xlane.xlu0 %2978
          %v2980 = vadd.f32 %v2838, %v2839
          %v2981 = vadd.f32 %v2980, %v2840
          %v2982 = vadd.f32 %v2981, %v2841
          %2983 = vadd.xlane.f32.xlu0 %v2982
          %v2984 = vpop.xlane.xlu0 %2983
          %v2985 = vadd.f32 %v2842, %v2843
          %v2986 = vadd.f32 %v2985, %v2844
          %v2987 = vadd.f32 %v2986, %v2845
          %2988 = vadd.xlane.f32.xlu0 %v2987
          %v2989 = vpop.xlane.xlu0 %2988
          %v2990 = vadd.f32 %v2846, %v2847
          %v2991 = vadd.f32 %v2990, %v2848
          %v2992 = vadd.f32 %v2991, %v2849
          %2993 = vadd.xlane.f32.xlu0 %v2992
          %v2994 = vpop.xlane.xlu0 %2993
          %v2995 = vadd.f32 %v2850, %v2851
          %v2996 = vadd.f32 %v2995, %v2852
          %v2997 = vadd.f32 %v2996, %v2853
          %2998 = vadd.xlane.f32.xlu0 %v2997
          %v2999 = vpop.xlane.xlu0 %2998
          %v3000 = vadd.f32 %v2854, %v2855
          %v3001 = vadd.f32 %v3000, %v2856
          %v3002 = vadd.f32 %v3001, %v2857
          %3003 = vadd.xlane.f32.xlu0 %v3002
          %v3004 = vpop.xlane.xlu0 %3003
          %v3005 = vadd.f32 %v2858, %v2859
          %v3006 = vadd.f32 %v3005, %v2860
          %v3007 = vadd.f32 %v3006, %v2861
          %3008 = vadd.xlane.f32.xlu0 %v3007
          %v3009 = vpop.xlane.xlu0 %3008
          %v3010 = vadd.f32 %v2862, %v2863
          %v3011 = vadd.f32 %v3010, %v2864
          %v3012 = vadd.f32 %v3011, %v2865
          %3013 = vadd.xlane.f32.xlu0 %v3012
          %v3014 = vpop.xlane.xlu0 %3013
          %v3015 = vadd.f32 %v2866, %v2867
          %v3016 = vadd.f32 %v3015, %v2868
          %v3017 = vadd.f32 %v3016, %v2869
          %3018 = vadd.xlane.f32.xlu0 %v3017
          %v3019 = vpop.xlane.xlu0 %3018
          %v3020 = vadd.f32 %v2870, %v2871
          %v3021 = vadd.f32 %v3020, %v2872
          %v3022 = vadd.f32 %v3021, %v2873
          %3023 = vadd.xlane.f32.xlu0 %v3022
          %v3024 = vpop.xlane.xlu0 %3023
          %v3025 = vadd.f32 %v2874, %v2875
          %v3026 = vadd.f32 %v3025, %v2876
          %v3027 = vadd.f32 %v3026, %v2877
          %3028 = vadd.xlane.f32.xlu0 %v3027
          %v3029 = vpop.xlane.xlu0 %3028
          %v3030 = vadd.f32 %v2878, %v2879
          %v3031 = vadd.f32 %v3030, %v2880
          %v3032 = vadd.f32 %v3031, %v2881
          %3033 = vadd.xlane.f32.xlu0 %v3032
          %v3034 = vpop.xlane.xlu0 %3033
          %v3035 = vadd.f32 %v2882, %v2883
          %v3036 = vadd.f32 %v3035, %v2884
          %v3037 = vadd.f32 %v3036, %v2885
          %3038 = vadd.xlane.f32.xlu0 %v3037
          %v3039 = vpop.xlane.xlu0 %3038
          %v3040 = vadd.f32 %v2886, %v2887
          %v3041 = vadd.f32 %v3040, %v2888
          %v3042 = vadd.f32 %v3041, %v2889
          %3043 = vadd.xlane.f32.xlu0 %v3042
          %v3044 = vpop.xlane.xlu0 %3043
          %v3045 = vadd.f32 %v2890, %v2891
          %v3046 = vadd.f32 %v3045, %v2892
          %v3047 = vadd.f32 %v3046, %v2893
          %3048 = vadd.xlane.f32.xlu0 %v3047
          %v3049 = vpop.xlane.xlu0 %3048
          %v3050 = vadd.f32 %v2894, %v2895
          %v3051 = vadd.f32 %v3050, %v2896
          %v3052 = vadd.f32 %v3051, %v2897
          %3053 = vadd.xlane.f32.xlu0 %v3052
          %v3054 = vpop.xlane.xlu0 %3053
          %v3055 = vadd.f32 %v2898, %v2899
          %v3056 = vadd.f32 %v3055, %v2900
          %v3057 = vadd.f32 %v3056, %v2901
          %3058 = vadd.xlane.f32.xlu0 %v3057
          %v3059 = vpop.xlane.xlu0 %3058
          %v3060 = vadd.f32 %v2902, %v2903
          %v3061 = vadd.f32 %v3060, %v2904
          %v3062 = vadd.f32 %v3061, %v2905
          %3063 = vadd.xlane.f32.xlu0 %v3062
          %v3064 = vpop.xlane.xlu0 %3063
          %v3065 = vadd.f32 %v2906, %v2907
          %v3066 = vadd.f32 %v3065, %v2908
          %v3067 = vadd.f32 %v3066, %v2909
          %3068 = vadd.xlane.f32.xlu0 %v3067
          %v3069 = vpop.xlane.xlu0 %3068
          %v3070 = vadd.f32 %v2750, %v2914
          %v3071 = vadd.f32 %v2751, %v2919
          %v3072 = vadd.f32 %v2752, %v2924
          %v3073 = vadd.f32 %v2753, %v2929
          %v3074 = vadd.f32 %v2754, %v2934
          %v3075 = vadd.f32 %v2755, %v2939
          %v3076 = vadd.f32 %v2756, %v2944
          %v3077 = vadd.f32 %v2757, %v2949
          %v3078 = vadd.f32 %v2758, %v2954
          %v3079 = vadd.f32 %v2759, %v2959
          %v3080 = vadd.f32 %v2760, %v2964
          %v3081 = vadd.f32 %v2761, %v2969
          %v3082 = vadd.f32 %v2762, %v2974
          %v3083 = vadd.f32 %v2763, %v2979
          %v3084 = vadd.f32 %v2764, %v2984
          %v3085 = vadd.f32 %v2765, %v2989
          %v3086 = vadd.f32 %v2766, %v2994
          %v3087 = vadd.f32 %v2767, %v2999
          %v3088 = vadd.f32 %v2768, %v3004
          %v3089 = vadd.f32 %v2769, %v3009
          %v3090 = vadd.f32 %v2770, %v3014
          %v3091 = vadd.f32 %v2771, %v3019
          %v3092 = vadd.f32 %v2772, %v3024
          %v3093 = vadd.f32 %v2773, %v3029
          %v3094 = vadd.f32 %v2774, %v3034
          %v3095 = vadd.f32 %v2775, %v3039
          %v3096 = vadd.f32 %v2776, %v3044
          %v3097 = vadd.f32 %v2777, %v3049
          %v3098 = vadd.f32 %v2778, %v3054
          %v3099 = vadd.f32 %v2779, %v3059
          %v3100 = vadd.f32 %v2780, %v3064
          %v3101 = vadd.f32 %v2781, %v3069
          %3102 = vst.msk [vmem:[#allocation3] sm:$0xff] %vm2328, %v3070
          %3103 = vst.msk [vmem:[#allocation3 + $0x8] sm:$0xff] %vm2328, %v3071
          %3104 = vst.msk [vmem:[#allocation3 + $0x10] sm:$0xff] %vm2328, %v3072
          %3105 = vst.msk [vmem:[#allocation3 + $0x18] sm:$0xff] %vm2328, %v3073
          %3106 = vst.msk [vmem:[#allocation3 + $0x20] sm:$0xff] %vm2328, %v3074
          %3107 = vst.msk [vmem:[#allocation3 + $0x28] sm:$0xff] %vm2328, %v3075
          %3108 = vst.msk [vmem:[#allocation3 + $0x30] sm:$0xff] %vm2328, %v3076
          %3109 = vst.msk [vmem:[#allocation3 + $0x38] sm:$0xff] %vm2328, %v3077
          %3110 = vst.msk [vmem:[#allocation3 + $0x40] sm:$0xff] %vm2328, %v3078
          %3111 = vst.msk [vmem:[#allocation3 + $0x48] sm:$0xff] %vm2328, %v3079
          %3112 = vst.msk [vmem:[#allocation3 + $0x50] sm:$0xff] %vm2328, %v3080
          %3113 = vst.msk [vmem:[#allocation3 + $0x58] sm:$0xff] %vm2328, %v3081
          %3114 = vst.msk [vmem:[#allocation3 + $0x60] sm:$0xff] %vm2328, %v3082
          %3115 = vst.msk [vmem:[#allocation3 + $0x68] sm:$0xff] %vm2328, %v3083
          %3116 = vst.msk [vmem:[#allocation3 + $0x70] sm:$0xff] %vm2328, %v3084
          %3117 = vst.msk [vmem:[#allocation3 + $0x78] sm:$0xff] %vm2328, %v3085
          %3118 = vst.msk [vmem:[#allocation3 + $0x80] sm:$0xff] %vm2328, %v3086
          %3119 = vst.msk [vmem:[#allocation3 + $0x88] sm:$0xff] %vm2328, %v3087
          %3120 = vst.msk [vmem:[#allocation3 + $0x90] sm:$0xff] %vm2328, %v3088
          %3121 = vst.msk [vmem:[#allocation3 + $0x98] sm:$0xff] %vm2328, %v3089
          %3122 = vst.msk [vmem:[#allocation3 + $0xa0] sm:$0xff] %vm2328, %v3090
          %3123 = vst.msk [vmem:[#allocation3 + $0xa8] sm:$0xff] %vm2328, %v3091
          %3124 = vst.msk [vmem:[#allocation3 + $0xb0] sm:$0xff] %vm2328, %v3092
          %3125 = vst.msk [vmem:[#allocation3 + $0xb8] sm:$0xff] %vm2328, %v3093
          %3126 = vst.msk [vmem:[#allocation3 + $0xc0] sm:$0xff] %vm2328, %v3094
          %3127 = vst.msk [vmem:[#allocation3 + $0xc8] sm:$0xff] %vm2328, %v3095
          %3128 = vst.msk [vmem:[#allocation3 + $0xd0] sm:$0xff] %vm2328, %v3096
          %3129 = vst.msk [vmem:[#allocation3 + $0xd8] sm:$0xff] %vm2328, %v3097
          %3130 = vst.msk [vmem:[#allocation3 + $0xe0] sm:$0xff] %vm2328, %v3098
          %3131 = vst.msk [vmem:[#allocation3 + $0xe8] sm:$0xff] %vm2328, %v3099
          %3132 = vst.msk [vmem:[#allocation3 + $0xf0] sm:$0xff] %vm2328, %v3100
          %3133 = vst.msk [vmem:[#allocation3 + $0xf8] sm:$0xff] %vm2328, %v3101
          %v3134 = vld [vmem:[#allocation4] sm:$0xff]
          %v3135 = vld [vmem:[#allocation4 + $0x8] sm:$0xff]
          %v3136 = vld [vmem:[#allocation4 + $0x10] sm:$0xff]
          %v3137 = vld [vmem:[#allocation4 + $0x18] sm:$0xff]
          %v3138 = vld [vmem:[#allocation4 + $0x20] sm:$0xff]
          %v3139 = vld [vmem:[#allocation4 + $0x28] sm:$0xff]
          %v3140 = vld [vmem:[#allocation4 + $0x30] sm:$0xff]
          %v3141 = vld [vmem:[#allocation4 + $0x38] sm:$0xff]
          %v3142 = vld [vmem:[#allocation4 + $0x40] sm:$0xff]
          %v3143 = vld [vmem:[#allocation4 + $0x48] sm:$0xff]
          %v3144 = vld [vmem:[#allocation4 + $0x50] sm:$0xff]
          %v3145 = vld [vmem:[#allocation4 + $0x58] sm:$0xff]
          %v3146 = vld [vmem:[#allocation4 + $0x60] sm:$0xff]
          %v3147 = vld [vmem:[#allocation4 + $0x68] sm:$0xff]
          %v3148 = vld [vmem:[#allocation4 + $0x70] sm:$0xff]
          %v3149 = vld [vmem:[#allocation4 + $0x78] sm:$0xff]
          %v3150 = vld [vmem:[#allocation4 + $0x80] sm:$0xff]
          %v3151 = vld [vmem:[#allocation4 + $0x88] sm:$0xff]
          %v3152 = vld [vmem:[#allocation4 + $0x90] sm:$0xff]
          %v3153 = vld [vmem:[#allocation4 + $0x98] sm:$0xff]
          %v3154 = vld [vmem:[#allocation4 + $0xa0] sm:$0xff]
          %v3155 = vld [vmem:[#allocation4 + $0xa8] sm:$0xff]
          %v3156 = vld [vmem:[#allocation4 + $0xb0] sm:$0xff]
          %v3157 = vld [vmem:[#allocation4 + $0xb8] sm:$0xff]
          %v3158 = vld [vmem:[#allocation4 + $0xc0] sm:$0xff]
          %v3159 = vld [vmem:[#allocation4 + $0xc8] sm:$0xff]
          %v3160 = vld [vmem:[#allocation4 + $0xd0] sm:$0xff]
          %v3161 = vld [vmem:[#allocation4 + $0xd8] sm:$0xff]
          %v3162 = vld [vmem:[#allocation4 + $0xe0] sm:$0xff]
          %v3163 = vld [vmem:[#allocation4 + $0xe8] sm:$0xff]
          %v3164 = vld [vmem:[#allocation4 + $0xf0] sm:$0xff]
          %v3165 = vld [vmem:[#allocation4 + $0xf8] sm:$0xff]
          %vm3166 = vmand %vm1336, %vm2590
          %vm3167 = vmand %vm1337, %vm2591
          %vm3168 = vmand %vm1338, %vm2592
          %vm3169 = vmand %vm1339, %vm2593
          %vm3170 = vmand %vm1340, %vm2594
          %vm3171 = vmand %vm1341, %vm2595
          %vm3172 = vmand %vm1342, %vm2596
          %vm3173 = vmand %vm1343, %vm2597
          %vm3174 = vmand %vm1344, %vm2598
          %vm3175 = vmand %vm1345, %vm2599
          %vm3176 = vmand %vm1346, %vm2600
          %vm3177 = vmand %vm1347, %vm2601
          %vm3178 = vmand %vm1348, %vm2602
          %vm3179 = vmand %vm1349, %vm2603
          %vm3180 = vmand %vm1350, %vm2604
          %vm3181 = vmand %vm1351, %vm2605
          %vm3182 = vmand %vm1352, %vm2606
          %vm3183 = vmand %vm1353, %vm2607
          %vm3184 = vmand %vm1354, %vm2608
          %vm3185 = vmand %vm1355, %vm2609
          %vm3186 = vmand %vm1356, %vm2610
          %vm3187 = vmand %vm1357, %vm2611
          %vm3188 = vmand %vm1358, %vm2612
          %vm3189 = vmand %vm1359, %vm2613
          %vm3190 = vmand %vm1360, %vm2614
          %vm3191 = vmand %vm1361, %vm2615
          %vm3192 = vmand %vm1362, %vm2616
          %vm3193 = vmand %vm1363, %vm2617
          %vm3194 = vmand %vm1364, %vm2618
          %vm3195 = vmand %vm1365, %vm2619
          %vm3196 = vmand %vm1366, %vm2620
          %vm3197 = vmand %vm1367, %vm2621
          %vm3198 = vmand %vm1368, %vm2622
          %vm3199 = vmand %vm1369, %vm2623
          %vm3200 = vmand %vm1370, %vm2624
          %vm3201 = vmand %vm1371, %vm2625
          %vm3202 = vmand %vm1372, %vm2626
          %vm3203 = vmand %vm1373, %vm2627
          %vm3204 = vmand %vm1374, %vm2628
          %vm3205 = vmand %vm1375, %vm2629
          %vm3206 = vmand %vm1376, %vm2630
          %vm3207 = vmand %vm1377, %vm2631
          %vm3208 = vmand %vm1378, %vm2632
          %vm3209 = vmand %vm1379, %vm2633
          %vm3210 = vmand %vm1380, %vm2634
          %vm3211 = vmand %vm1381, %vm2635
          %vm3212 = vmand %vm1382, %vm2636
          %vm3213 = vmand %vm1383, %vm2637
          %vm3214 = vmand %vm1384, %vm2638
          %vm3215 = vmand %vm1385, %vm2639
          %vm3216 = vmand %vm1386, %vm2640
          %vm3217 = vmand %vm1387, %vm2641
          %vm3218 = vmand %vm1388, %vm2642
          %vm3219 = vmand %vm1389, %vm2643
          %vm3220 = vmand %vm1390, %vm2644
          %vm3221 = vmand %vm1391, %vm2645
          %vm3222 = vmand %vm1392, %vm2646
          %vm3223 = vmand %vm1393, %vm2647
          %vm3224 = vmand %vm1394, %vm2648
          %vm3225 = vmand %vm1395, %vm2649
          %vm3226 = vmand %vm1396, %vm2650
          %vm3227 = vmand %vm1397, %vm2651
          %vm3228 = vmand %vm1398, %vm2652
          %vm3229 = vmand %vm1399, %vm2653
          %vm3230 = vmand %vm1400, %vm2654
          %vm3231 = vmand %vm1401, %vm2655
          %vm3232 = vmand %vm1402, %vm2656
          %vm3233 = vmand %vm1403, %vm2657
          %vm3234 = vmand %vm1404, %vm2658
          %vm3235 = vmand %vm1405, %vm2659
          %vm3236 = vmand %vm1406, %vm2660
          %vm3237 = vmand %vm1407, %vm2661
          %vm3238 = vmand %vm1408, %vm2662
          %vm3239 = vmand %vm1409, %vm2663
          %vm3240 = vmand %vm1410, %vm2664
          %vm3241 = vmand %vm1411, %vm2665
          %vm3242 = vmand %vm1412, %vm2666
          %vm3243 = vmand %vm1413, %vm2667
          %vm3244 = vmand %vm1414, %vm2668
          %vm3245 = vmand %vm1415, %vm2669
          %vm3246 = vmand %vm1416, %vm2670
          %vm3247 = vmand %vm1417, %vm2671
          %vm3248 = vmand %vm1418, %vm2672
          %vm3249 = vmand %vm1419, %vm2673
          %vm3250 = vmand %vm1420, %vm2674
          %vm3251 = vmand %vm1421, %vm2675
          %vm3252 = vmand %vm1422, %vm2676
          %vm3253 = vmand %vm1423, %vm2677
          %vm3254 = vmand %vm1424, %vm2678
          %vm3255 = vmand %vm1425, %vm2679
          %vm3256 = vmand %vm1426, %vm2680
          %vm3257 = vmand %vm1427, %vm2681
          %vm3258 = vmand %vm1428, %vm2682
          %vm3259 = vmand %vm1429, %vm2683
          %vm3260 = vmand %vm1430, %vm2684
          %vm3261 = vmand %vm1431, %vm2685
          %vm3262 = vmand %vm1432, %vm2686
          %vm3263 = vmand %vm1433, %vm2687
          %vm3264 = vmand %vm1434, %vm2688
          %vm3265 = vmand %vm1435, %vm2689
          %vm3266 = vmand %vm1436, %vm2690
          %vm3267 = vmand %vm1437, %vm2691
          %vm3268 = vmand %vm1438, %vm2692
          %vm3269 = vmand %vm1439, %vm2693
          %vm3270 = vmand %vm1440, %vm2694
          %vm3271 = vmand %vm1441, %vm2695
          %vm3272 = vmand %vm1442, %vm2696
          %vm3273 = vmand %vm1443, %vm2697
          %vm3274 = vmand %vm1444, %vm2698
          %vm3275 = vmand %vm1445, %vm2699
          %vm3276 = vmand %vm1446, %vm2700
          %vm3277 = vmand %vm1447, %vm2701
          %vm3278 = vmand %vm1448, %vm2702
          %vm3279 = vmand %vm1449, %vm2703
          %vm3280 = vmand %vm1450, %vm2704
          %vm3281 = vmand %vm1451, %vm2705
          %vm3282 = vmand %vm1452, %vm2706
          %vm3283 = vmand %vm1453, %vm2707
          %vm3284 = vmand %vm1454, %vm2708
          %vm3285 = vmand %vm1455, %vm2709
          %vm3286 = vmand %vm1456, %vm2710
          %vm3287 = vmand %vm1457, %vm2711
          %vm3288 = vmand %vm1458, %vm2712
          %vm3289 = vmand %vm1459, %vm2713
          %vm3290 = vmand %vm1460, %vm2714
          %vm3291 = vmand %vm1461, %vm2715
          %vm3292 = vmand %vm1462, %vm2716
          %vm3293 = vmand %vm1463, %vm2717
          %v3294 = vsel %vm3166, %v1063, 0.0
          %v3295 = vsel %vm3167, %v1064, 0.0
          %v3296 = vsel %vm3168, %v1065, 0.0
          %v3297 = vsel %vm3169, %v1066, 0.0
          %v3298 = vsel %vm3170, %v1067, 0.0
          %v3299 = vsel %vm3171, %v1068, 0.0
          %v3300 = vsel %vm3172, %v1069, 0.0
          %v3301 = vsel %vm3173, %v1070, 0.0
          %v3302 = vsel %vm3174, %v1071, 0.0
          %v3303 = vsel %vm3175, %v1072, 0.0
          %v3304 = vsel %vm3176, %v1073, 0.0
          %v3305 = vsel %vm3177, %v1074, 0.0
          %v3306 = vsel %vm3178, %v1075, 0.0
          %v3307 = vsel %vm3179, %v1076, 0.0
          %v3308 = vsel %vm3180, %v1077, 0.0
          %v3309 = vsel %vm3181, %v1078, 0.0
          %v3310 = vsel %vm3182, %v1079, 0.0
          %v3311 = vsel %vm3183, %v1080, 0.0
          %v3312 = vsel %vm3184, %v1081, 0.0
          %v3313 = vsel %vm3185, %v1082, 0.0
          %v3314 = vsel %vm3186, %v1083, 0.0
          %v3315 = vsel %vm3187, %v1084, 0.0
          %v3316 = vsel %vm3188, %v1085, 0.0
          %v3317 = vsel %vm3189, %v1086, 0.0
          %v3318 = vsel %vm3190, %v1087, 0.0
          %v3319 = vsel %vm3191, %v1088, 0.0
          %v3320 = vsel %vm3192, %v1089, 0.0
          %v3321 = vsel %vm3193, %v1090, 0.0
          %v3322 = vsel %vm3194, %v1091, 0.0
          %v3323 = vsel %vm3195, %v1092, 0.0
          %v3324 = vsel %vm3196, %v1093, 0.0
          %v3325 = vsel %vm3197, %v1094, 0.0
          %v3326 = vsel %vm3198, %v1095, 0.0
          %v3327 = vsel %vm3199, %v1096, 0.0
          %v3328 = vsel %vm3200, %v1097, 0.0
          %v3329 = vsel %vm3201, %v1098, 0.0
          %v3330 = vsel %vm3202, %v1099, 0.0
          %v3331 = vsel %vm3203, %v1100, 0.0
          %v3332 = vsel %vm3204, %v1101, 0.0
          %v3333 = vsel %vm3205, %v1102, 0.0
          %v3334 = vsel %vm3206, %v1103, 0.0
          %v3335 = vsel %vm3207, %v1104, 0.0
          %v3336 = vsel %vm3208, %v1105, 0.0
          %v3337 = vsel %vm3209, %v1106, 0.0
          %v3338 = vsel %vm3210, %v1107, 0.0
          %v3339 = vsel %vm3211, %v1108, 0.0
          %v3340 = vsel %vm3212, %v1109, 0.0
          %v3341 = vsel %vm3213, %v1110, 0.0
          %v3342 = vsel %vm3214, %v1111, 0.0
          %v3343 = vsel %vm3215, %v1112, 0.0
          %v3344 = vsel %vm3216, %v1113, 0.0
          %v3345 = vsel %vm3217, %v1114, 0.0
          %v3346 = vsel %vm3218, %v1115, 0.0
          %v3347 = vsel %vm3219, %v1116, 0.0
          %v3348 = vsel %vm3220, %v1117, 0.0
          %v3349 = vsel %vm3221, %v1118, 0.0
          %v3350 = vsel %vm3222, %v1119, 0.0
          %v3351 = vsel %vm3223, %v1120, 0.0
          %v3352 = vsel %vm3224, %v1121, 0.0
          %v3353 = vsel %vm3225, %v1122, 0.0
          %v3354 = vsel %vm3226, %v1123, 0.0
          %v3355 = vsel %vm3227, %v1124, 0.0
          %v3356 = vsel %vm3228, %v1125, 0.0
          %v3357 = vsel %vm3229, %v1126, 0.0
          %v3358 = vsel %vm3230, %v1127, 0.0
          %v3359 = vsel %vm3231, %v1128, 0.0
          %v3360 = vsel %vm3232, %v1129, 0.0
          %v3361 = vsel %vm3233, %v1130, 0.0
          %v3362 = vsel %vm3234, %v1131, 0.0
          %v3363 = vsel %vm3235, %v1132, 0.0
          %v3364 = vsel %vm3236, %v1133, 0.0
          %v3365 = vsel %vm3237, %v1134, 0.0
          %v3366 = vsel %vm3238, %v1135, 0.0
          %v3367 = vsel %vm3239, %v1136, 0.0
          %v3368 = vsel %vm3240, %v1137, 0.0
          %v3369 = vsel %vm3241, %v1138, 0.0
          %v3370 = vsel %vm3242, %v1139, 0.0
          %v3371 = vsel %vm3243, %v1140, 0.0
          %v3372 = vsel %vm3244, %v1141, 0.0
          %v3373 = vsel %vm3245, %v1142, 0.0
          %v3374 = vsel %vm3246, %v1143, 0.0
          %v3375 = vsel %vm3247, %v1144, 0.0
          %v3376 = vsel %vm3248, %v1145, 0.0
          %v3377 = vsel %vm3249, %v1146, 0.0
          %v3378 = vsel %vm3250, %v1147, 0.0
          %v3379 = vsel %vm3251, %v1148, 0.0
          %v3380 = vsel %vm3252, %v1149, 0.0
          %v3381 = vsel %vm3253, %v1150, 0.0
          %v3382 = vsel %vm3254, %v1151, 0.0
          %v3383 = vsel %vm3255, %v1152, 0.0
          %v3384 = vsel %vm3256, %v1153, 0.0
          %v3385 = vsel %vm3257, %v1154, 0.0
          %v3386 = vsel %vm3258, %v1155, 0.0
          %v3387 = vsel %vm3259, %v1156, 0.0
          %v3388 = vsel %vm3260, %v1157, 0.0
          %v3389 = vsel %vm3261, %v1158, 0.0
          %v3390 = vsel %vm3262, %v1159, 0.0
          %v3391 = vsel %vm3263, %v1160, 0.0
          %v3392 = vsel %vm3264, %v1161, 0.0
          %v3393 = vsel %vm3265, %v1162, 0.0
          %v3394 = vsel %vm3266, %v1163, 0.0
          %v3395 = vsel %vm3267, %v1164, 0.0
          %v3396 = vsel %vm3268, %v1165, 0.0
          %v3397 = vsel %vm3269, %v1166, 0.0
          %v3398 = vsel %vm3270, %v1167, 0.0
          %v3399 = vsel %vm3271, %v1168, 0.0
          %v3400 = vsel %vm3272, %v1169, 0.0
          %v3401 = vsel %vm3273, %v1170, 0.0
          %v3402 = vsel %vm3274, %v1171, 0.0
          %v3403 = vsel %vm3275, %v1172, 0.0
          %v3404 = vsel %vm3276, %v1173, 0.0
          %v3405 = vsel %vm3277, %v1174, 0.0
          %v3406 = vsel %vm3278, %v1175, 0.0
          %v3407 = vsel %vm3279, %v1176, 0.0
          %v3408 = vsel %vm3280, %v1177, 0.0
          %v3409 = vsel %vm3281, %v1178, 0.0
          %v3410 = vsel %vm3282, %v1179, 0.0
          %v3411 = vsel %vm3283, %v1180, 0.0
          %v3412 = vsel %vm3284, %v1181, 0.0
          %v3413 = vsel %vm3285, %v1182, 0.0
          %v3414 = vsel %vm3286, %v1183, 0.0
          %v3415 = vsel %vm3287, %v1184, 0.0
          %v3416 = vsel %vm3288, %v1185, 0.0
          %v3417 = vsel %vm3289, %v1186, 0.0
          %v3418 = vsel %vm3290, %v1187, 0.0
          %v3419 = vsel %vm3291, %v1188, 0.0
          %v3420 = vsel %vm3292, %v1189, 0.0
          %v3421 = vsel %vm3293, %v1190, 0.0
          %v3422 = vadd.f32 %v3294, %v3295
          %v3423 = vadd.f32 %v3422, %v3296
          %v3424 = vadd.f32 %v3423, %v3297
          %3425 = vadd.xlane.f32.xlu0 %v3424
          %v3426 = vpop.xlane.xlu0 %3425
          %v3427 = vadd.f32 %v3298, %v3299
          %v3428 = vadd.f32 %v3427, %v3300
          %v3429 = vadd.f32 %v3428, %v3301
          %3430 = vadd.xlane.f32.xlu0 %v3429
          %v3431 = vpop.xlane.xlu0 %3430
          %v3432 = vadd.f32 %v3302, %v3303
          %v3433 = vadd.f32 %v3432, %v3304
          %v3434 = vadd.f32 %v3433, %v3305
          %3435 = vadd.xlane.f32.xlu0 %v3434
          %v3436 = vpop.xlane.xlu0 %3435
          %v3437 = vadd.f32 %v3306, %v3307
          %v3438 = vadd.f32 %v3437, %v3308
          %v3439 = vadd.f32 %v3438, %v3309
          %3440 = vadd.xlane.f32.xlu0 %v3439
          %v3441 = vpop.xlane.xlu0 %3440
          %v3442 = vadd.f32 %v3310, %v3311
          %v3443 = vadd.f32 %v3442, %v3312
          %v3444 = vadd.f32 %v3443, %v3313
          %3445 = vadd.xlane.f32.xlu0 %v3444
          %v3446 = vpop.xlane.xlu0 %3445
          %v3447 = vadd.f32 %v3314, %v3315
          %v3448 = vadd.f32 %v3447, %v3316
          %v3449 = vadd.f32 %v3448, %v3317
          %3450 = vadd.xlane.f32.xlu0 %v3449
          %v3451 = vpop.xlane.xlu0 %3450
          %v3452 = vadd.f32 %v3318, %v3319
          %v3453 = vadd.f32 %v3452, %v3320
          %v3454 = vadd.f32 %v3453, %v3321
          %3455 = vadd.xlane.f32.xlu0 %v3454
          %v3456 = vpop.xlane.xlu0 %3455
          %v3457 = vadd.f32 %v3322, %v3323
          %v3458 = vadd.f32 %v3457, %v3324
          %v3459 = vadd.f32 %v3458, %v3325
          %3460 = vadd.xlane.f32.xlu0 %v3459
          %v3461 = vpop.xlane.xlu0 %3460
          %v3462 = vadd.f32 %v3326, %v3327
          %v3463 = vadd.f32 %v3462, %v3328
          %v3464 = vadd.f32 %v3463, %v3329
          %3465 = vadd.xlane.f32.xlu0 %v3464
          %v3466 = vpop.xlane.xlu0 %3465
          %v3467 = vadd.f32 %v3330, %v3331
          %v3468 = vadd.f32 %v3467, %v3332
          %v3469 = vadd.f32 %v3468, %v3333
          %3470 = vadd.xlane.f32.xlu0 %v3469
          %v3471 = vpop.xlane.xlu0 %3470
          %v3472 = vadd.f32 %v3334, %v3335
          %v3473 = vadd.f32 %v3472, %v3336
          %v3474 = vadd.f32 %v3473, %v3337
          %3475 = vadd.xlane.f32.xlu0 %v3474
          %v3476 = vpop.xlane.xlu0 %3475
          %v3477 = vadd.f32 %v3338, %v3339
          %v3478 = vadd.f32 %v3477, %v3340
          %v3479 = vadd.f32 %v3478, %v3341
          %3480 = vadd.xlane.f32.xlu0 %v3479
          %v3481 = vpop.xlane.xlu0 %3480
          %v3482 = vadd.f32 %v3342, %v3343
          %v3483 = vadd.f32 %v3482, %v3344
          %v3484 = vadd.f32 %v3483, %v3345
          %3485 = vadd.xlane.f32.xlu0 %v3484
          %v3486 = vpop.xlane.xlu0 %3485
          %v3487 = vadd.f32 %v3346, %v3347
          %v3488 = vadd.f32 %v3487, %v3348
          %v3489 = vadd.f32 %v3488, %v3349
          %3490 = vadd.xlane.f32.xlu0 %v3489
          %v3491 = vpop.xlane.xlu0 %3490
          %v3492 = vadd.f32 %v3350, %v3351
          %v3493 = vadd.f32 %v3492, %v3352
          %v3494 = vadd.f32 %v3493, %v3353
          %3495 = vadd.xlane.f32.xlu0 %v3494
          %v3496 = vpop.xlane.xlu0 %3495
          %v3497 = vadd.f32 %v3354, %v3355
          %v3498 = vadd.f32 %v3497, %v3356
          %v3499 = vadd.f32 %v3498, %v3357
          %3500 = vadd.xlane.f32.xlu0 %v3499
          %v3501 = vpop.xlane.xlu0 %3500
          %v3502 = vadd.f32 %v3358, %v3359
          %v3503 = vadd.f32 %v3502, %v3360
          %v3504 = vadd.f32 %v3503, %v3361
          %3505 = vadd.xlane.f32.xlu0 %v3504
          %v3506 = vpop.xlane.xlu0 %3505
          %v3507 = vadd.f32 %v3362, %v3363
          %v3508 = vadd.f32 %v3507, %v3364
          %v3509 = vadd.f32 %v3508, %v3365
          %3510 = vadd.xlane.f32.xlu0 %v3509
          %v3511 = vpop.xlane.xlu0 %3510
          %v3512 = vadd.f32 %v3366, %v3367
          %v3513 = vadd.f32 %v3512, %v3368
          %v3514 = vadd.f32 %v3513, %v3369
          %3515 = vadd.xlane.f32.xlu0 %v3514
          %v3516 = vpop.xlane.xlu0 %3515
          %v3517 = vadd.f32 %v3370, %v3371
          %v3518 = vadd.f32 %v3517, %v3372
          %v3519 = vadd.f32 %v3518, %v3373
          %3520 = vadd.xlane.f32.xlu0 %v3519
          %v3521 = vpop.xlane.xlu0 %3520
          %v3522 = vadd.f32 %v3374, %v3375
          %v3523 = vadd.f32 %v3522, %v3376
          %v3524 = vadd.f32 %v3523, %v3377
          %3525 = vadd.xlane.f32.xlu0 %v3524
          %v3526 = vpop.xlane.xlu0 %3525
          %v3527 = vadd.f32 %v3378, %v3379
          %v3528 = vadd.f32 %v3527, %v3380
          %v3529 = vadd.f32 %v3528, %v3381
          %3530 = vadd.xlane.f32.xlu0 %v3529
          %v3531 = vpop.xlane.xlu0 %3530
          %v3532 = vadd.f32 %v3382, %v3383
          %v3533 = vadd.f32 %v3532, %v3384
          %v3534 = vadd.f32 %v3533, %v3385
          %3535 = vadd.xlane.f32.xlu0 %v3534
          %v3536 = vpop.xlane.xlu0 %3535
          %v3537 = vadd.f32 %v3386, %v3387
          %v3538 = vadd.f32 %v3537, %v3388
          %v3539 = vadd.f32 %v3538, %v3389
          %3540 = vadd.xlane.f32.xlu0 %v3539
          %v3541 = vpop.xlane.xlu0 %3540
          %v3542 = vadd.f32 %v3390, %v3391
          %v3543 = vadd.f32 %v3542, %v3392
          %v3544 = vadd.f32 %v3543, %v3393
          %3545 = vadd.xlane.f32.xlu0 %v3544
          %v3546 = vpop.xlane.xlu0 %3545
          %v3547 = vadd.f32 %v3394, %v3395
          %v3548 = vadd.f32 %v3547, %v3396
          %v3549 = vadd.f32 %v3548, %v3397
          %3550 = vadd.xlane.f32.xlu0 %v3549
          %v3551 = vpop.xlane.xlu0 %3550
          %v3552 = vadd.f32 %v3398, %v3399
          %v3553 = vadd.f32 %v3552, %v3400
          %v3554 = vadd.f32 %v3553, %v3401
          %3555 = vadd.xlane.f32.xlu0 %v3554
          %v3556 = vpop.xlane.xlu0 %3555
          %v3557 = vadd.f32 %v3402, %v3403
          %v3558 = vadd.f32 %v3557, %v3404
          %v3559 = vadd.f32 %v3558, %v3405
          %3560 = vadd.xlane.f32.xlu0 %v3559
          %v3561 = vpop.xlane.xlu0 %3560
          %v3562 = vadd.f32 %v3406, %v3407
          %v3563 = vadd.f32 %v3562, %v3408
          %v3564 = vadd.f32 %v3563, %v3409
          %3565 = vadd.xlane.f32.xlu0 %v3564
          %v3566 = vpop.xlane.xlu0 %3565
          %v3567 = vadd.f32 %v3410, %v3411
          %v3568 = vadd.f32 %v3567, %v3412
          %v3569 = vadd.f32 %v3568, %v3413
          %3570 = vadd.xlane.f32.xlu0 %v3569
          %v3571 = vpop.xlane.xlu0 %3570
          %v3572 = vadd.f32 %v3414, %v3415
          %v3573 = vadd.f32 %v3572, %v3416
          %v3574 = vadd.f32 %v3573, %v3417
          %3575 = vadd.xlane.f32.xlu0 %v3574
          %v3576 = vpop.xlane.xlu0 %3575
          %v3577 = vadd.f32 %v3418, %v3419
          %v3578 = vadd.f32 %v3577, %v3420
          %v3579 = vadd.f32 %v3578, %v3421
          %3580 = vadd.xlane.f32.xlu0 %v3579
          %v3581 = vpop.xlane.xlu0 %3580
          %v3582 = vadd.f32 %v3134, %v3426
          %v3583 = vadd.f32 %v3135, %v3431
          %v3584 = vadd.f32 %v3136, %v3436
          %v3585 = vadd.f32 %v3137, %v3441
          %v3586 = vadd.f32 %v3138, %v3446
          %v3587 = vadd.f32 %v3139, %v3451
          %v3588 = vadd.f32 %v3140, %v3456
          %v3589 = vadd.f32 %v3141, %v3461
          %v3590 = vadd.f32 %v3142, %v3466
          %v3591 = vadd.f32 %v3143, %v3471
          %v3592 = vadd.f32 %v3144, %v3476
          %v3593 = vadd.f32 %v3145, %v3481
          %v3594 = vadd.f32 %v3146, %v3486
          %v3595 = vadd.f32 %v3147, %v3491
          %v3596 = vadd.f32 %v3148, %v3496
          %v3597 = vadd.f32 %v3149, %v3501
          %v3598 = vadd.f32 %v3150, %v3506
          %v3599 = vadd.f32 %v3151, %v3511
          %v3600 = vadd.f32 %v3152, %v3516
          %v3601 = vadd.f32 %v3153, %v3521
          %v3602 = vadd.f32 %v3154, %v3526
          %v3603 = vadd.f32 %v3155, %v3531
          %v3604 = vadd.f32 %v3156, %v3536
          %v3605 = vadd.f32 %v3157, %v3541
          %v3606 = vadd.f32 %v3158, %v3546
          %v3607 = vadd.f32 %v3159, %v3551
          %v3608 = vadd.f32 %v3160, %v3556
          %v3609 = vadd.f32 %v3161, %v3561
          %v3610 = vadd.f32 %v3162, %v3566
          %v3611 = vadd.f32 %v3163, %v3571
          %v3612 = vadd.f32 %v3164, %v3576
          %v3613 = vadd.f32 %v3165, %v3581
          %3614 = vst.msk [vmem:[#allocation4] sm:$0xff] %vm2328, %v3582
          %3615 = vst.msk [vmem:[#allocation4 + $0x8] sm:$0xff] %vm2328, %v3583
          %3616 = vst.msk [vmem:[#allocation4 + $0x10] sm:$0xff] %vm2328, %v3584
          %3617 = vst.msk [vmem:[#allocation4 + $0x18] sm:$0xff] %vm2328, %v3585
          %3618 = vst.msk [vmem:[#allocation4 + $0x20] sm:$0xff] %vm2328, %v3586
          %3619 = vst.msk [vmem:[#allocation4 + $0x28] sm:$0xff] %vm2328, %v3587
          %3620 = vst.msk [vmem:[#allocation4 + $0x30] sm:$0xff] %vm2328, %v3588
          %3621 = vst.msk [vmem:[#allocation4 + $0x38] sm:$0xff] %vm2328, %v3589
          %3622 = vst.msk [vmem:[#allocation4 + $0x40] sm:$0xff] %vm2328, %v3590
          %3623 = vst.msk [vmem:[#allocation4 + $0x48] sm:$0xff] %vm2328, %v3591
          %3624 = vst.msk [vmem:[#allocation4 + $0x50] sm:$0xff] %vm2328, %v3592
          %3625 = vst.msk [vmem:[#allocation4 + $0x58] sm:$0xff] %vm2328, %v3593
          %3626 = vst.msk [vmem:[#allocation4 + $0x60] sm:$0xff] %vm2328, %v3594
          %3627 = vst.msk [vmem:[#allocation4 + $0x68] sm:$0xff] %vm2328, %v3595
          %3628 = vst.msk [vmem:[#allocation4 + $0x70] sm:$0xff] %vm2328, %v3596
          %3629 = vst.msk [vmem:[#allocation4 + $0x78] sm:$0xff] %vm2328, %v3597
          %3630 = vst.msk [vmem:[#allocation4 + $0x80] sm:$0xff] %vm2328, %v3598
          %3631 = vst.msk [vmem:[#allocation4 + $0x88] sm:$0xff] %vm2328, %v3599
          %3632 = vst.msk [vmem:[#allocation4 + $0x90] sm:$0xff] %vm2328, %v3600
          %3633 = vst.msk [vmem:[#allocation4 + $0x98] sm:$0xff] %vm2328, %v3601
          %3634 = vst.msk [vmem:[#allocation4 + $0xa0] sm:$0xff] %vm2328, %v3602
          %3635 = vst.msk [vmem:[#allocation4 + $0xa8] sm:$0xff] %vm2328, %v3603
          %3636 = vst.msk [vmem:[#allocation4 + $0xb0] sm:$0xff] %vm2328, %v3604
          %3637 = vst.msk [vmem:[#allocation4 + $0xb8] sm:$0xff] %vm2328, %v3605
          %3638 = vst.msk [vmem:[#allocation4 + $0xc0] sm:$0xff] %vm2328, %v3606
          %3639 = vst.msk [vmem:[#allocation4 + $0xc8] sm:$0xff] %vm2328, %v3607
          %3640 = vst.msk [vmem:[#allocation4 + $0xd0] sm:$0xff] %vm2328, %v3608
          %3641 = vst.msk [vmem:[#allocation4 + $0xd8] sm:$0xff] %vm2328, %v3609
          %3642 = vst.msk [vmem:[#allocation4 + $0xe0] sm:$0xff] %vm2328, %v3610
          %3643 = vst.msk [vmem:[#allocation4 + $0xe8] sm:$0xff] %vm2328, %v3611
          %3644 = vst.msk [vmem:[#allocation4 + $0xf0] sm:$0xff] %vm2328, %v3612
          %3645 = vst.msk [vmem:[#allocation4 + $0xf8] sm:$0xff] %vm2328, %v3613
        $region60: #{tpu_custom_call.1} parent=35 // pred_fallthru
          _
        %p3646 = pneg %p2370
        // Predicated region
        $region61: #{tpu_custom_call.1} parent=35 // pred_check
          _
        $region62: #{tpu_custom_call.1} parent=35 // pred_check_branch
          %3648 = sbr.rel (%p2370) target = $region64
        $region63: #{tpu_custom_call.1} parent=35 // pred_region
          %v3649 = vld [vmem:[#allocation3] sm:$0xff]
          %v3650 = vld [vmem:[#allocation3 + $0x8] sm:$0xff]
          %v3651 = vld [vmem:[#allocation3 + $0x10] sm:$0xff]
          %v3652 = vld [vmem:[#allocation3 + $0x18] sm:$0xff]
          %v3653 = vld [vmem:[#allocation3 + $0x20] sm:$0xff]
          %v3654 = vld [vmem:[#allocation3 + $0x28] sm:$0xff]
          %v3655 = vld [vmem:[#allocation3 + $0x30] sm:$0xff]
          %v3656 = vld [vmem:[#allocation3 + $0x38] sm:$0xff]
          %v3657 = vld [vmem:[#allocation3 + $0x40] sm:$0xff]
          %v3658 = vld [vmem:[#allocation3 + $0x48] sm:$0xff]
          %v3659 = vld [vmem:[#allocation3 + $0x50] sm:$0xff]
          %v3660 = vld [vmem:[#allocation3 + $0x58] sm:$0xff]
          %v3661 = vld [vmem:[#allocation3 + $0x60] sm:$0xff]
          %v3662 = vld [vmem:[#allocation3 + $0x68] sm:$0xff]
          %v3663 = vld [vmem:[#allocation3 + $0x70] sm:$0xff]
          %v3664 = vld [vmem:[#allocation3 + $0x78] sm:$0xff]
          %v3665 = vld [vmem:[#allocation3 + $0x80] sm:$0xff]
          %v3666 = vld [vmem:[#allocation3 + $0x88] sm:$0xff]
          %v3667 = vld [vmem:[#allocation3 + $0x90] sm:$0xff]
          %v3668 = vld [vmem:[#allocation3 + $0x98] sm:$0xff]
          %v3669 = vld [vmem:[#allocation3 + $0xa0] sm:$0xff]
          %v3670 = vld [vmem:[#allocation3 + $0xa8] sm:$0xff]
          %v3671 = vld [vmem:[#allocation3 + $0xb0] sm:$0xff]
          %v3672 = vld [vmem:[#allocation3 + $0xb8] sm:$0xff]
          %v3673 = vld [vmem:[#allocation3 + $0xc0] sm:$0xff]
          %v3674 = vld [vmem:[#allocation3 + $0xc8] sm:$0xff]
          %v3675 = vld [vmem:[#allocation3 + $0xd0] sm:$0xff]
          %v3676 = vld [vmem:[#allocation3 + $0xd8] sm:$0xff]
          %v3677 = vld [vmem:[#allocation3 + $0xe0] sm:$0xff]
          %v3678 = vld [vmem:[#allocation3 + $0xe8] sm:$0xff]
          %v3679 = vld [vmem:[#allocation3 + $0xf0] sm:$0xff]
          %v3680 = vld [vmem:[#allocation3 + $0xf8] sm:$0xff]
          %v3681 = vmul.f32 %v1721, %v3649
          %v3682 = vmul.f32 %v1723, %v3650
          %v3683 = vmul.f32 %v1725, %v3651
          %v3684 = vmul.f32 %v1727, %v3652
          %v3685 = vmul.f32 %v1729, %v3653
          %v3686 = vmul.f32 %v1731, %v3654
          %v3687 = vmul.f32 %v1733, %v3655
          %v3688 = vmul.f32 %v1735, %v3656
          %v3689 = vmul.f32 %v1737, %v3657
          %v3690 = vmul.f32 %v1739, %v3658
          %v3691 = vmul.f32 %v1741, %v3659
          %v3692 = vmul.f32 %v1743, %v3660
          %v3693 = vmul.f32 %v1745, %v3661
          %v3694 = vmul.f32 %v1747, %v3662
          %v3695 = vmul.f32 %v1749, %v3663
          %v3696 = vmul.f32 %v1751, %v3664
          %v3697 = vmul.f32 %v1753, %v3665
          %v3698 = vmul.f32 %v1755, %v3666
          %v3699 = vmul.f32 %v1757, %v3667
          %v3700 = vmul.f32 %v1759, %v3668
          %v3701 = vmul.f32 %v1761, %v3669
          %v3702 = vmul.f32 %v1763, %v3670
          %v3703 = vmul.f32 %v1765, %v3671
          %v3704 = vmul.f32 %v1767, %v3672
          %v3705 = vmul.f32 %v1769, %v3673
          %v3706 = vmul.f32 %v1771, %v3674
          %v3707 = vmul.f32 %v1773, %v3675
          %v3708 = vmul.f32 %v1775, %v3676
          %v3709 = vmul.f32 %v1777, %v3677
          %v3710 = vmul.f32 %v1779, %v3678
          %v3711 = vmul.f32 %v1781, %v3679
          %v3712 = vmul.f32 %v1783, %v3680
          %v3713 = vadd.f32 %v2073, %v2075
          %v3714 = vadd.f32 %v3713, %v2077
          %v3715 = vadd.f32 %v3714, %v2079
          %3716 = vadd.xlane.f32.xlu0 %v3715
          %v3717 = vpop.xlane.xlu0 %3716
          %v3718 = vadd.f32 %v2081, %v2083
          %v3719 = vadd.f32 %v3718, %v2085
          %v3720 = vadd.f32 %v3719, %v2087
          %3721 = vadd.xlane.f32.xlu0 %v3720
          %v3722 = vpop.xlane.xlu0 %3721
          %v3723 = vadd.f32 %v2089, %v2091
          %v3724 = vadd.f32 %v3723, %v2093
          %v3725 = vadd.f32 %v3724, %v2095
          %3726 = vadd.xlane.f32.xlu0 %v3725
          %v3727 = vpop.xlane.xlu0 %3726
          %v3728 = vadd.f32 %v2097, %v2099
          %v3729 = vadd.f32 %v3728, %v2101
          %v3730 = vadd.f32 %v3729, %v2103
          %3731 = vadd.xlane.f32.xlu0 %v3730
          %v3732 = vpop.xlane.xlu0 %3731
          %v3733 = vadd.f32 %v2105, %v2107
          %v3734 = vadd.f32 %v3733, %v2109
          %v3735 = vadd.f32 %v3734, %v2111
          %3736 = vadd.xlane.f32.xlu0 %v3735
          %v3737 = vpop.xlane.xlu0 %3736
          %v3738 = vadd.f32 %v2113, %v2115
          %v3739 = vadd.f32 %v3738, %v2117
          %v3740 = vadd.f32 %v3739, %v2119
          %3741 = vadd.xlane.f32.xlu0 %v3740
          %v3742 = vpop.xlane.xlu0 %3741
          %v3743 = vadd.f32 %v2121, %v2123
          %v3744 = vadd.f32 %v3743, %v2125
          %v3745 = vadd.f32 %v3744, %v2127
          %3746 = vadd.xlane.f32.xlu0 %v3745
          %v3747 = vpop.xlane.xlu0 %3746
          %v3748 = vadd.f32 %v2129, %v2131
          %v3749 = vadd.f32 %v3748, %v2133
          %v3750 = vadd.f32 %v3749, %v2135
          %3751 = vadd.xlane.f32.xlu0 %v3750
          %v3752 = vpop.xlane.xlu0 %3751
          %v3753 = vadd.f32 %v2137, %v2139
          %v3754 = vadd.f32 %v3753, %v2141
          %v3755 = vadd.f32 %v3754, %v2143
          %3756 = vadd.xlane.f32.xlu0 %v3755
          %v3757 = vpop.xlane.xlu0 %3756
          %v3758 = vadd.f32 %v2145, %v2147
          %v3759 = vadd.f32 %v3758, %v2149
          %v3760 = vadd.f32 %v3759, %v2151
          %3761 = vadd.xlane.f32.xlu0 %v3760
          %v3762 = vpop.xlane.xlu0 %3761
          %v3763 = vadd.f32 %v2153, %v2155
          %v3764 = vadd.f32 %v3763, %v2157
          %v3765 = vadd.f32 %v3764, %v2159
          %3766 = vadd.xlane.f32.xlu0 %v3765
          %v3767 = vpop.xlane.xlu0 %3766
          %v3768 = vadd.f32 %v2161, %v2163
          %v3769 = vadd.f32 %v3768, %v2165
          %v3770 = vadd.f32 %v3769, %v2167
          %3771 = vadd.xlane.f32.xlu0 %v3770
          %v3772 = vpop.xlane.xlu0 %3771
          %v3773 = vadd.f32 %v2169, %v2171
          %v3774 = vadd.f32 %v3773, %v2173
          %v3775 = vadd.f32 %v3774, %v2175
          %3776 = vadd.xlane.f32.xlu0 %v3775
          %v3777 = vpop.xlane.xlu0 %3776
          %v3778 = vadd.f32 %v2177, %v2179
          %v3779 = vadd.f32 %v3778, %v2181
          %v3780 = vadd.f32 %v3779, %v2183
          %3781 = vadd.xlane.f32.xlu0 %v3780
          %v3782 = vpop.xlane.xlu0 %3781
          %v3783 = vadd.f32 %v2185, %v2187
          %v3784 = vadd.f32 %v3783, %v2189
          %v3785 = vadd.f32 %v3784, %v2191
          %3786 = vadd.xlane.f32.xlu0 %v3785
          %v3787 = vpop.xlane.xlu0 %3786
          %v3788 = vadd.f32 %v2193, %v2195
          %v3789 = vadd.f32 %v3788, %v2197
          %v3790 = vadd.f32 %v3789, %v2199
          %3791 = vadd.xlane.f32.xlu0 %v3790
          %v3792 = vpop.xlane.xlu0 %3791
          %v3793 = vadd.f32 %v2201, %v2203
          %v3794 = vadd.f32 %v3793, %v2205
          %v3795 = vadd.f32 %v3794, %v2207
          %3796 = vadd.xlane.f32.xlu0 %v3795
          %v3797 = vpop.xlane.xlu0 %3796
          %v3798 = vadd.f32 %v2209, %v2211
          %v3799 = vadd.f32 %v3798, %v2213
          %v3800 = vadd.f32 %v3799, %v2215
          %3801 = vadd.xlane.f32.xlu0 %v3800
          %v3802 = vpop.xlane.xlu0 %3801
          %v3803 = vadd.f32 %v2217, %v2219
          %v3804 = vadd.f32 %v3803, %v2221
          %v3805 = vadd.f32 %v3804, %v2223
          %3806 = vadd.xlane.f32.xlu0 %v3805
          %v3807 = vpop.xlane.xlu0 %3806
          %v3808 = vadd.f32 %v2225, %v2227
          %v3809 = vadd.f32 %v3808, %v2229
          %v3810 = vadd.f32 %v3809, %v2231
          %3811 = vadd.xlane.f32.xlu0 %v3810
          %v3812 = vpop.xlane.xlu0 %3811
          %v3813 = vadd.f32 %v2233, %v2235
          %v3814 = vadd.f32 %v3813, %v2237
          %v3815 = vadd.f32 %v3814, %v2239
          %3816 = vadd.xlane.f32.xlu0 %v3815
          %v3817 = vpop.xlane.xlu0 %3816
          %v3818 = vadd.f32 %v2241, %v2243
          %v3819 = vadd.f32 %v3818, %v2245
          %v3820 = vadd.f32 %v3819, %v2247
          %3821 = vadd.xlane.f32.xlu0 %v3820
          %v3822 = vpop.xlane.xlu0 %3821
          %v3823 = vadd.f32 %v2249, %v2251
          %v3824 = vadd.f32 %v3823, %v2253
          %v3825 = vadd.f32 %v3824, %v2255
          %3826 = vadd.xlane.f32.xlu0 %v3825
          %v3827 = vpop.xlane.xlu0 %3826
          %v3828 = vadd.f32 %v2257, %v2259
          %v3829 = vadd.f32 %v3828, %v2261
          %v3830 = vadd.f32 %v3829, %v2263
          %3831 = vadd.xlane.f32.xlu0 %v3830
          %v3832 = vpop.xlane.xlu0 %3831
          %v3833 = vadd.f32 %v2265, %v2267
          %v3834 = vadd.f32 %v3833, %v2269
          %v3835 = vadd.f32 %v3834, %v2271
          %3836 = vadd.xlane.f32.xlu0 %v3835
          %v3837 = vpop.xlane.xlu0 %3836
          %v3838 = vadd.f32 %v2273, %v2275
          %v3839 = vadd.f32 %v3838, %v2277
          %v3840 = vadd.f32 %v3839, %v2279
          %3841 = vadd.xlane.f32.xlu0 %v3840
          %v3842 = vpop.xlane.xlu0 %3841
          %v3843 = vadd.f32 %v2281, %v2283
          %v3844 = vadd.f32 %v3843, %v2285
          %v3845 = vadd.f32 %v3844, %v2287
          %3846 = vadd.xlane.f32.xlu0 %v3845
          %v3847 = vpop.xlane.xlu0 %3846
          %v3848 = vadd.f32 %v2289, %v2291
          %v3849 = vadd.f32 %v3848, %v2293
          %v3850 = vadd.f32 %v3849, %v2295
          %3851 = vadd.xlane.f32.xlu0 %v3850
          %v3852 = vpop.xlane.xlu0 %3851
          %v3853 = vadd.f32 %v2297, %v2299
          %v3854 = vadd.f32 %v3853, %v2301
          %v3855 = vadd.f32 %v3854, %v2303
          %3856 = vadd.xlane.f32.xlu0 %v3855
          %v3857 = vpop.xlane.xlu0 %3856
          %v3858 = vadd.f32 %v2305, %v2307
          %v3859 = vadd.f32 %v3858, %v2309
          %v3860 = vadd.f32 %v3859, %v2311
          %3861 = vadd.xlane.f32.xlu0 %v3860
          %v3862 = vpop.xlane.xlu0 %3861
          %v3863 = vadd.f32 %v2313, %v2315
          %v3864 = vadd.f32 %v3863, %v2317
          %v3865 = vadd.f32 %v3864, %v2319
          %3866 = vadd.xlane.f32.xlu0 %v3865
          %v3867 = vpop.xlane.xlu0 %3866
          %v3868 = vadd.f32 %v2321, %v2323
          %v3869 = vadd.f32 %v3868, %v2325
          %v3870 = vadd.f32 %v3869, %v2327
          %3871 = vadd.xlane.f32.xlu0 %v3870
          %v3872 = vpop.xlane.xlu0 %3871
          %v3873 = vadd.f32 %v3681, %v3717
          %v3874 = vadd.f32 %v3682, %v3722
          %v3875 = vadd.f32 %v3683, %v3727
          %v3876 = vadd.f32 %v3684, %v3732
          %v3877 = vadd.f32 %v3685, %v3737
          %v3878 = vadd.f32 %v3686, %v3742
          %v3879 = vadd.f32 %v3687, %v3747
          %v3880 = vadd.f32 %v3688, %v3752
          %v3881 = vadd.f32 %v3689, %v3757
          %v3882 = vadd.f32 %v3690, %v3762
          %v3883 = vadd.f32 %v3691, %v3767
          %v3884 = vadd.f32 %v3692, %v3772
          %v3885 = vadd.f32 %v3693, %v3777
          %v3886 = vadd.f32 %v3694, %v3782
          %v3887 = vadd.f32 %v3695, %v3787
          %v3888 = vadd.f32 %v3696, %v3792
          %v3889 = vadd.f32 %v3697, %v3797
          %v3890 = vadd.f32 %v3698, %v3802
          %v3891 = vadd.f32 %v3699, %v3807
          %v3892 = vadd.f32 %v3700, %v3812
          %v3893 = vadd.f32 %v3701, %v3817
          %v3894 = vadd.f32 %v3702, %v3822
          %v3895 = vadd.f32 %v3703, %v3827
          %v3896 = vadd.f32 %v3704, %v3832
          %v3897 = vadd.f32 %v3705, %v3837
          %v3898 = vadd.f32 %v3706, %v3842
          %v3899 = vadd.f32 %v3707, %v3847
          %v3900 = vadd.f32 %v3708, %v3852
          %v3901 = vadd.f32 %v3709, %v3857
          %v3902 = vadd.f32 %v3710, %v3862
          %v3903 = vadd.f32 %v3711, %v3867
          %v3904 = vadd.f32 %v3712, %v3872
          %3905 = vst.msk [vmem:[#allocation3] sm:$0xff] %vm2328, %v3873
          %3906 = vst.msk [vmem:[#allocation3 + $0x8] sm:$0xff] %vm2328, %v3874
          %3907 = vst.msk [vmem:[#allocation3 + $0x10] sm:$0xff] %vm2328, %v3875
          %3908 = vst.msk [vmem:[#allocation3 + $0x18] sm:$0xff] %vm2328, %v3876
          %3909 = vst.msk [vmem:[#allocation3 + $0x20] sm:$0xff] %vm2328, %v3877
          %3910 = vst.msk [vmem:[#allocation3 + $0x28] sm:$0xff] %vm2328, %v3878
          %3911 = vst.msk [vmem:[#allocation3 + $0x30] sm:$0xff] %vm2328, %v3879
          %3912 = vst.msk [vmem:[#allocation3 + $0x38] sm:$0xff] %vm2328, %v3880
          %3913 = vst.msk [vmem:[#allocation3 + $0x40] sm:$0xff] %vm2328, %v3881
          %3914 = vst.msk [vmem:[#allocation3 + $0x48] sm:$0xff] %vm2328, %v3882
          %3915 = vst.msk [vmem:[#allocation3 + $0x50] sm:$0xff] %vm2328, %v3883
          %3916 = vst.msk [vmem:[#allocation3 + $0x58] sm:$0xff] %vm2328, %v3884
          %3917 = vst.msk [vmem:[#allocation3 + $0x60] sm:$0xff] %vm2328, %v3885
          %3918 = vst.msk [vmem:[#allocation3 + $0x68] sm:$0xff] %vm2328, %v3886
          %3919 = vst.msk [vmem:[#allocation3 + $0x70] sm:$0xff] %vm2328, %v3887
          %3920 = vst.msk [vmem:[#allocation3 + $0x78] sm:$0xff] %vm2328, %v3888
          %3921 = vst.msk [vmem:[#allocation3 + $0x80] sm:$0xff] %vm2328, %v3889
          %3922 = vst.msk [vmem:[#allocation3 + $0x88] sm:$0xff] %vm2328, %v3890
          %3923 = vst.msk [vmem:[#allocation3 + $0x90] sm:$0xff] %vm2328, %v3891
          %3924 = vst.msk [vmem:[#allocation3 + $0x98] sm:$0xff] %vm2328, %v3892
          %3925 = vst.msk [vmem:[#allocation3 + $0xa0] sm:$0xff] %vm2328, %v3893
          %3926 = vst.msk [vmem:[#allocation3 + $0xa8] sm:$0xff] %vm2328, %v3894
          %3927 = vst.msk [vmem:[#allocation3 + $0xb0] sm:$0xff] %vm2328, %v3895
          %3928 = vst.msk [vmem:[#allocation3 + $0xb8] sm:$0xff] %vm2328, %v3896
          %3929 = vst.msk [vmem:[#allocation3 + $0xc0] sm:$0xff] %vm2328, %v3897
          %3930 = vst.msk [vmem:[#allocation3 + $0xc8] sm:$0xff] %vm2328, %v3898
          %3931 = vst.msk [vmem:[#allocation3 + $0xd0] sm:$0xff] %vm2328, %v3899
          %3932 = vst.msk [vmem:[#allocation3 + $0xd8] sm:$0xff] %vm2328, %v3900
          %3933 = vst.msk [vmem:[#allocation3 + $0xe0] sm:$0xff] %vm2328, %v3901
          %3934 = vst.msk [vmem:[#allocation3 + $0xe8] sm:$0xff] %vm2328, %v3902
          %3935 = vst.msk [vmem:[#allocation3 + $0xf0] sm:$0xff] %vm2328, %v3903
          %3936 = vst.msk [vmem:[#allocation3 + $0xf8] sm:$0xff] %vm2328, %v3904
          %v3937 = vld [vmem:[#allocation4] sm:$0xff]
          %v3938 = vld [vmem:[#allocation4 + $0x8] sm:$0xff]
          %v3939 = vld [vmem:[#allocation4 + $0x10] sm:$0xff]
          %v3940 = vld [vmem:[#allocation4 + $0x18] sm:$0xff]
          %v3941 = vld [vmem:[#allocation4 + $0x20] sm:$0xff]
          %v3942 = vld [vmem:[#allocation4 + $0x28] sm:$0xff]
          %v3943 = vld [vmem:[#allocation4 + $0x30] sm:$0xff]
          %v3944 = vld [vmem:[#allocation4 + $0x38] sm:$0xff]
          %v3945 = vld [vmem:[#allocation4 + $0x40] sm:$0xff]
          %v3946 = vld [vmem:[#allocation4 + $0x48] sm:$0xff]
          %v3947 = vld [vmem:[#allocation4 + $0x50] sm:$0xff]
          %v3948 = vld [vmem:[#allocation4 + $0x58] sm:$0xff]
          %v3949 = vld [vmem:[#allocation4 + $0x60] sm:$0xff]
          %v3950 = vld [vmem:[#allocation4 + $0x68] sm:$0xff]
          %v3951 = vld [vmem:[#allocation4 + $0x70] sm:$0xff]
          %v3952 = vld [vmem:[#allocation4 + $0x78] sm:$0xff]
          %v3953 = vld [vmem:[#allocation4 + $0x80] sm:$0xff]
          %v3954 = vld [vmem:[#allocation4 + $0x88] sm:$0xff]
          %v3955 = vld [vmem:[#allocation4 + $0x90] sm:$0xff]
          %v3956 = vld [vmem:[#allocation4 + $0x98] sm:$0xff]
          %v3957 = vld [vmem:[#allocation4 + $0xa0] sm:$0xff]
          %v3958 = vld [vmem:[#allocation4 + $0xa8] sm:$0xff]
          %v3959 = vld [vmem:[#allocation4 + $0xb0] sm:$0xff]
          %v3960 = vld [vmem:[#allocation4 + $0xb8] sm:$0xff]
          %v3961 = vld [vmem:[#allocation4 + $0xc0] sm:$0xff]
          %v3962 = vld [vmem:[#allocation4 + $0xc8] sm:$0xff]
          %v3963 = vld [vmem:[#allocation4 + $0xd0] sm:$0xff]
          %v3964 = vld [vmem:[#allocation4 + $0xd8] sm:$0xff]
          %v3965 = vld [vmem:[#allocation4 + $0xe0] sm:$0xff]
          %v3966 = vld [vmem:[#allocation4 + $0xe8] sm:$0xff]
          %v3967 = vld [vmem:[#allocation4 + $0xf0] sm:$0xff]
          %v3968 = vld [vmem:[#allocation4 + $0xf8] sm:$0xff]
          %v3969 = vsel %vm1336, %v1063, 0.0
          %v3970 = vsel %vm1337, %v1064, 0.0
          %v3971 = vsel %vm1338, %v1065, 0.0
          %v3972 = vsel %vm1339, %v1066, 0.0
          %v3973 = vsel %vm1340, %v1067, 0.0
          %v3974 = vsel %vm1341, %v1068, 0.0
          %v3975 = vsel %vm1342, %v1069, 0.0
          %v3976 = vsel %vm1343, %v1070, 0.0
          %v3977 = vsel %vm1344, %v1071, 0.0
          %v3978 = vsel %vm1345, %v1072, 0.0
          %v3979 = vsel %vm1346, %v1073, 0.0
          %v3980 = vsel %vm1347, %v1074, 0.0
          %v3981 = vsel %vm1348, %v1075, 0.0
          %v3982 = vsel %vm1349, %v1076, 0.0
          %v3983 = vsel %vm1350, %v1077, 0.0
          %v3984 = vsel %vm1351, %v1078, 0.0
          %v3985 = vsel %vm1352, %v1079, 0.0
          %v3986 = vsel %vm1353, %v1080, 0.0
          %v3987 = vsel %vm1354, %v1081, 0.0
          %v3988 = vsel %vm1355, %v1082, 0.0
          %v3989 = vsel %vm1356, %v1083, 0.0
          %v3990 = vsel %vm1357, %v1084, 0.0
          %v3991 = vsel %vm1358, %v1085, 0.0
          %v3992 = vsel %vm1359, %v1086, 0.0
          %v3993 = vsel %vm1360, %v1087, 0.0
          %v3994 = vsel %vm1361, %v1088, 0.0
          %v3995 = vsel %vm1362, %v1089, 0.0
          %v3996 = vsel %vm1363, %v1090, 0.0
          %v3997 = vsel %vm1364, %v1091, 0.0
          %v3998 = vsel %vm1365, %v1092, 0.0
          %v3999 = vsel %vm1366, %v1093, 0.0
          %v4000 = vsel %vm1367, %v1094, 0.0
          %v4001 = vsel %vm1368, %v1095, 0.0
          %v4002 = vsel %vm1369, %v1096, 0.0
          %v4003 = vsel %vm1370, %v1097, 0.0
          %v4004 = vsel %vm1371, %v1098, 0.0
          %v4005 = vsel %vm1372, %v1099, 0.0
          %v4006 = vsel %vm1373, %v1100, 0.0
          %v4007 = vsel %vm1374, %v1101, 0.0
          %v4008 = vsel %vm1375, %v1102, 0.0
          %v4009 = vsel %vm1376, %v1103, 0.0
          %v4010 = vsel %vm1377, %v1104, 0.0
          %v4011 = vsel %vm1378, %v1105, 0.0
          %v4012 = vsel %vm1379, %v1106, 0.0
          %v4013 = vsel %vm1380, %v1107, 0.0
          %v4014 = vsel %vm1381, %v1108, 0.0
          %v4015 = vsel %vm1382, %v1109, 0.0
          %v4016 = vsel %vm1383, %v1110, 0.0
          %v4017 = vsel %vm1384, %v1111, 0.0
          %v4018 = vsel %vm1385, %v1112, 0.0
          %v4019 = vsel %vm1386, %v1113, 0.0
          %v4020 = vsel %vm1387, %v1114, 0.0
          %v4021 = vsel %vm1388, %v1115, 0.0
          %v4022 = vsel %vm1389, %v1116, 0.0
          %v4023 = vsel %vm1390, %v1117, 0.0
          %v4024 = vsel %vm1391, %v1118, 0.0
          %v4025 = vsel %vm1392, %v1119, 0.0
          %v4026 = vsel %vm1393, %v1120, 0.0
          %v4027 = vsel %vm1394, %v1121, 0.0
          %v4028 = vsel %vm1395, %v1122, 0.0
          %v4029 = vsel %vm1396, %v1123, 0.0
          %v4030 = vsel %vm1397, %v1124, 0.0
          %v4031 = vsel %vm1398, %v1125, 0.0
          %v4032 = vsel %vm1399, %v1126, 0.0
          %v4033 = vsel %vm1400, %v1127, 0.0
          %v4034 = vsel %vm1401, %v1128, 0.0
          %v4035 = vsel %vm1402, %v1129, 0.0
          %v4036 = vsel %vm1403, %v1130, 0.0
          %v4037 = vsel %vm1404, %v1131, 0.0
          %v4038 = vsel %vm1405, %v1132, 0.0
          %v4039 = vsel %vm1406, %v1133, 0.0
          %v4040 = vsel %vm1407, %v1134, 0.0
          %v4041 = vsel %vm1408, %v1135, 0.0
          %v4042 = vsel %vm1409, %v1136, 0.0
          %v4043 = vsel %vm1410, %v1137, 0.0
          %v4044 = vsel %vm1411, %v1138, 0.0
          %v4045 = vsel %vm1412, %v1139, 0.0
          %v4046 = vsel %vm1413, %v1140, 0.0
          %v4047 = vsel %vm1414, %v1141, 0.0
          %v4048 = vsel %vm1415, %v1142, 0.0
          %v4049 = vsel %vm1416, %v1143, 0.0
          %v4050 = vsel %vm1417, %v1144, 0.0
          %v4051 = vsel %vm1418, %v1145, 0.0
          %v4052 = vsel %vm1419, %v1146, 0.0
          %v4053 = vsel %vm1420, %v1147, 0.0
          %v4054 = vsel %vm1421, %v1148, 0.0
          %v4055 = vsel %vm1422, %v1149, 0.0
          %v4056 = vsel %vm1423, %v1150, 0.0
          %v4057 = vsel %vm1424, %v1151, 0.0
          %v4058 = vsel %vm1425, %v1152, 0.0
          %v4059 = vsel %vm1426, %v1153, 0.0
          %v4060 = vsel %vm1427, %v1154, 0.0
          %v4061 = vsel %vm1428, %v1155, 0.0
          %v4062 = vsel %vm1429, %v1156, 0.0
          %v4063 = vsel %vm1430, %v1157, 0.0
          %v4064 = vsel %vm1431, %v1158, 0.0
          %v4065 = vsel %vm1432, %v1159, 0.0
          %v4066 = vsel %vm1433, %v1160, 0.0
          %v4067 = vsel %vm1434, %v1161, 0.0
          %v4068 = vsel %vm1435, %v1162, 0.0
          %v4069 = vsel %vm1436, %v1163, 0.0
          %v4070 = vsel %vm1437, %v1164, 0.0
          %v4071 = vsel %vm1438, %v1165, 0.0
          %v4072 = vsel %vm1439, %v1166, 0.0
          %v4073 = vsel %vm1440, %v1167, 0.0
          %v4074 = vsel %vm1441, %v1168, 0.0
          %v4075 = vsel %vm1442, %v1169, 0.0
          %v4076 = vsel %vm1443, %v1170, 0.0
          %v4077 = vsel %vm1444, %v1171, 0.0
          %v4078 = vsel %vm1445, %v1172, 0.0
          %v4079 = vsel %vm1446, %v1173, 0.0
          %v4080 = vsel %vm1447, %v1174, 0.0
          %v4081 = vsel %vm1448, %v1175, 0.0
          %v4082 = vsel %vm1449, %v1176, 0.0
          %v4083 = vsel %vm1450, %v1177, 0.0
          %v4084 = vsel %vm1451, %v1178, 0.0
          %v4085 = vsel %vm1452, %v1179, 0.0
          %v4086 = vsel %vm1453, %v1180, 0.0
          %v4087 = vsel %vm1454, %v1181, 0.0
          %v4088 = vsel %vm1455, %v1182, 0.0
          %v4089 = vsel %vm1456, %v1183, 0.0
          %v4090 = vsel %vm1457, %v1184, 0.0
          %v4091 = vsel %vm1458, %v1185, 0.0
          %v4092 = vsel %vm1459, %v1186, 0.0
          %v4093 = vsel %vm1460, %v1187, 0.0
          %v4094 = vsel %vm1461, %v1188, 0.0
          %v4095 = vsel %vm1462, %v1189, 0.0
          %v4096 = vsel %vm1463, %v1190, 0.0
          %v4097 = vadd.f32 %v3969, %v3970
          %v4098 = vadd.f32 %v4097, %v3971
          %v4099 = vadd.f32 %v4098, %v3972
          %4100 = vadd.xlane.f32.xlu0 %v4099
          %v4101 = vpop.xlane.xlu0 %4100
          %v4102 = vadd.f32 %v3973, %v3974
          %v4103 = vadd.f32 %v4102, %v3975
          %v4104 = vadd.f32 %v4103, %v3976
          %4105 = vadd.xlane.f32.xlu0 %v4104
          %v4106 = vpop.xlane.xlu0 %4105
          %v4107 = vadd.f32 %v3977, %v3978
          %v4108 = vadd.f32 %v4107, %v3979
          %v4109 = vadd.f32 %v4108, %v3980
          %4110 = vadd.xlane.f32.xlu0 %v4109
          %v4111 = vpop.xlane.xlu0 %4110
          %v4112 = vadd.f32 %v3981, %v3982
          %v4113 = vadd.f32 %v4112, %v3983
          %v4114 = vadd.f32 %v4113, %v3984
          %4115 = vadd.xlane.f32.xlu0 %v4114
          %v4116 = vpop.xlane.xlu0 %4115
          %v4117 = vadd.f32 %v3985, %v3986
          %v4118 = vadd.f32 %v4117, %v3987
          %v4119 = vadd.f32 %v4118, %v3988
          %4120 = vadd.xlane.f32.xlu0 %v4119
          %v4121 = vpop.xlane.xlu0 %4120
          %v4122 = vadd.f32 %v3989, %v3990
          %v4123 = vadd.f32 %v4122, %v3991
          %v4124 = vadd.f32 %v4123, %v3992
          %4125 = vadd.xlane.f32.xlu0 %v4124
          %v4126 = vpop.xlane.xlu0 %4125
          %v4127 = vadd.f32 %v3993, %v3994
          %v4128 = vadd.f32 %v4127, %v3995
          %v4129 = vadd.f32 %v4128, %v3996
          %4130 = vadd.xlane.f32.xlu0 %v4129
          %v4131 = vpop.xlane.xlu0 %4130
          %v4132 = vadd.f32 %v3997, %v3998
          %v4133 = vadd.f32 %v4132, %v3999
          %v4134 = vadd.f32 %v4133, %v4000
          %4135 = vadd.xlane.f32.xlu0 %v4134
          %v4136 = vpop.xlane.xlu0 %4135
          %v4137 = vadd.f32 %v4001, %v4002
          %v4138 = vadd.f32 %v4137, %v4003
          %v4139 = vadd.f32 %v4138, %v4004
          %4140 = vadd.xlane.f32.xlu0 %v4139
          %v4141 = vpop.xlane.xlu0 %4140
          %v4142 = vadd.f32 %v4005, %v4006
          %v4143 = vadd.f32 %v4142, %v4007
          %v4144 = vadd.f32 %v4143, %v4008
          %4145 = vadd.xlane.f32.xlu0 %v4144
          %v4146 = vpop.xlane.xlu0 %4145
          %v4147 = vadd.f32 %v4009, %v4010
          %v4148 = vadd.f32 %v4147, %v4011
          %v4149 = vadd.f32 %v4148, %v4012
          %4150 = vadd.xlane.f32.xlu0 %v4149
          %v4151 = vpop.xlane.xlu0 %4150
          %v4152 = vadd.f32 %v4013, %v4014
          %v4153 = vadd.f32 %v4152, %v4015
          %v4154 = vadd.f32 %v4153, %v4016
          %4155 = vadd.xlane.f32.xlu0 %v4154
          %v4156 = vpop.xlane.xlu0 %4155
          %v4157 = vadd.f32 %v4017, %v4018
          %v4158 = vadd.f32 %v4157, %v4019
          %v4159 = vadd.f32 %v4158, %v4020
          %4160 = vadd.xlane.f32.xlu0 %v4159
          %v4161 = vpop.xlane.xlu0 %4160
          %v4162 = vadd.f32 %v4021, %v4022
          %v4163 = vadd.f32 %v4162, %v4023
          %v4164 = vadd.f32 %v4163, %v4024
          %4165 = vadd.xlane.f32.xlu0 %v4164
          %v4166 = vpop.xlane.xlu0 %4165
          %v4167 = vadd.f32 %v4025, %v4026
          %v4168 = vadd.f32 %v4167, %v4027
          %v4169 = vadd.f32 %v4168, %v4028
          %4170 = vadd.xlane.f32.xlu0 %v4169
          %v4171 = vpop.xlane.xlu0 %4170
          %v4172 = vadd.f32 %v4029, %v4030
          %v4173 = vadd.f32 %v4172, %v4031
          %v4174 = vadd.f32 %v4173, %v4032
          %4175 = vadd.xlane.f32.xlu0 %v4174
          %v4176 = vpop.xlane.xlu0 %4175
          %v4177 = vadd.f32 %v4033, %v4034
          %v4178 = vadd.f32 %v4177, %v4035
          %v4179 = vadd.f32 %v4178, %v4036
          %4180 = vadd.xlane.f32.xlu0 %v4179
          %v4181 = vpop.xlane.xlu0 %4180
          %v4182 = vadd.f32 %v4037, %v4038
          %v4183 = vadd.f32 %v4182, %v4039
          %v4184 = vadd.f32 %v4183, %v4040
          %4185 = vadd.xlane.f32.xlu0 %v4184
          %v4186 = vpop.xlane.xlu0 %4185
          %v4187 = vadd.f32 %v4041, %v4042
          %v4188 = vadd.f32 %v4187, %v4043
          %v4189 = vadd.f32 %v4188, %v4044
          %4190 = vadd.xlane.f32.xlu0 %v4189
          %v4191 = vpop.xlane.xlu0 %4190
          %v4192 = vadd.f32 %v4045, %v4046
          %v4193 = vadd.f32 %v4192, %v4047
          %v4194 = vadd.f32 %v4193, %v4048
          %4195 = vadd.xlane.f32.xlu0 %v4194
          %v4196 = vpop.xlane.xlu0 %4195
          %v4197 = vadd.f32 %v4049, %v4050
          %v4198 = vadd.f32 %v4197, %v4051
          %v4199 = vadd.f32 %v4198, %v4052
          %4200 = vadd.xlane.f32.xlu0 %v4199
          %v4201 = vpop.xlane.xlu0 %4200
          %v4202 = vadd.f32 %v4053, %v4054
          %v4203 = vadd.f32 %v4202, %v4055
          %v4204 = vadd.f32 %v4203, %v4056
          %4205 = vadd.xlane.f32.xlu0 %v4204
          %v4206 = vpop.xlane.xlu0 %4205
          %v4207 = vadd.f32 %v4057, %v4058
          %v4208 = vadd.f32 %v4207, %v4059
          %v4209 = vadd.f32 %v4208, %v4060
          %4210 = vadd.xlane.f32.xlu0 %v4209
          %v4211 = vpop.xlane.xlu0 %4210
          %v4212 = vadd.f32 %v4061, %v4062
          %v4213 = vadd.f32 %v4212, %v4063
          %v4214 = vadd.f32 %v4213, %v4064
          %4215 = vadd.xlane.f32.xlu0 %v4214
          %v4216 = vpop.xlane.xlu0 %4215
          %v4217 = vadd.f32 %v4065, %v4066
          %v4218 = vadd.f32 %v4217, %v4067
          %v4219 = vadd.f32 %v4218, %v4068
          %4220 = vadd.xlane.f32.xlu0 %v4219
          %v4221 = vpop.xlane.xlu0 %4220
          %v4222 = vadd.f32 %v4069, %v4070
          %v4223 = vadd.f32 %v4222, %v4071
          %v4224 = vadd.f32 %v4223, %v4072
          %4225 = vadd.xlane.f32.xlu0 %v4224
          %v4226 = vpop.xlane.xlu0 %4225
          %v4227 = vadd.f32 %v4073, %v4074
          %v4228 = vadd.f32 %v4227, %v4075
          %v4229 = vadd.f32 %v4228, %v4076
          %4230 = vadd.xlane.f32.xlu0 %v4229
          %v4231 = vpop.xlane.xlu0 %4230
          %v4232 = vadd.f32 %v4077, %v4078
          %v4233 = vadd.f32 %v4232, %v4079
          %v4234 = vadd.f32 %v4233, %v4080
          %4235 = vadd.xlane.f32.xlu0 %v4234
          %v4236 = vpop.xlane.xlu0 %4235
          %v4237 = vadd.f32 %v4081, %v4082
          %v4238 = vadd.f32 %v4237, %v4083
          %v4239 = vadd.f32 %v4238, %v4084
          %4240 = vadd.xlane.f32.xlu0 %v4239
          %v4241 = vpop.xlane.xlu0 %4240
          %v4242 = vadd.f32 %v4085, %v4086
          %v4243 = vadd.f32 %v4242, %v4087
          %v4244 = vadd.f32 %v4243, %v4088
          %4245 = vadd.xlane.f32.xlu0 %v4244
          %v4246 = vpop.xlane.xlu0 %4245
          %v4247 = vadd.f32 %v4089, %v4090
          %v4248 = vadd.f32 %v4247, %v4091
          %v4249 = vadd.f32 %v4248, %v4092
          %4250 = vadd.xlane.f32.xlu0 %v4249
          %v4251 = vpop.xlane.xlu0 %4250
          %v4252 = vadd.f32 %v4093, %v4094
          %v4253 = vadd.f32 %v4252, %v4095
          %v4254 = vadd.f32 %v4253, %v4096
          %4255 = vadd.xlane.f32.xlu0 %v4254
          %v4256 = vpop.xlane.xlu0 %4255
          %v4257 = vadd.f32 %v3937, %v4101
          %v4258 = vadd.f32 %v3938, %v4106
          %v4259 = vadd.f32 %v3939, %v4111
          %v4260 = vadd.f32 %v3940, %v4116
          %v4261 = vadd.f32 %v3941, %v4121
          %v4262 = vadd.f32 %v3942, %v4126
          %v4263 = vadd.f32 %v3943, %v4131
          %v4264 = vadd.f32 %v3944, %v4136
          %v4265 = vadd.f32 %v3945, %v4141
          %v4266 = vadd.f32 %v3946, %v4146
          %v4267 = vadd.f32 %v3947, %v4151
          %v4268 = vadd.f32 %v3948, %v4156
          %v4269 = vadd.f32 %v3949, %v4161
          %v4270 = vadd.f32 %v3950, %v4166
          %v4271 = vadd.f32 %v3951, %v4171
          %v4272 = vadd.f32 %v3952, %v4176
          %v4273 = vadd.f32 %v3953, %v4181
          %v4274 = vadd.f32 %v3954, %v4186
          %v4275 = vadd.f32 %v3955, %v4191
          %v4276 = vadd.f32 %v3956, %v4196
          %v4277 = vadd.f32 %v3957, %v4201
          %v4278 = vadd.f32 %v3958, %v4206
          %v4279 = vadd.f32 %v3959, %v4211
          %v4280 = vadd.f32 %v3960, %v4216
          %v4281 = vadd.f32 %v3961, %v4221
          %v4282 = vadd.f32 %v3962, %v4226
          %v4283 = vadd.f32 %v3963, %v4231
          %v4284 = vadd.f32 %v3964, %v4236
          %v4285 = vadd.f32 %v3965, %v4241
          %v4286 = vadd.f32 %v3966, %v4246
          %v4287 = vadd.f32 %v3967, %v4251
          %v4288 = vadd.f32 %v3968, %v4256
          %4289 = vst.msk [vmem:[#allocation4] sm:$0xff] %vm2328, %v4257
          %4290 = vst.msk [vmem:[#allocation4 + $0x8] sm:$0xff] %vm2328, %v4258
          %4291 = vst.msk [vmem:[#allocation4 + $0x10] sm:$0xff] %vm2328, %v4259
          %4292 = vst.msk [vmem:[#allocation4 + $0x18] sm:$0xff] %vm2328, %v4260
          %4293 = vst.msk [vmem:[#allocation4 + $0x20] sm:$0xff] %vm2328, %v4261
          %4294 = vst.msk [vmem:[#allocation4 + $0x28] sm:$0xff] %vm2328, %v4262
          %4295 = vst.msk [vmem:[#allocation4 + $0x30] sm:$0xff] %vm2328, %v4263
          %4296 = vst.msk [vmem:[#allocation4 + $0x38] sm:$0xff] %vm2328, %v4264
          %4297 = vst.msk [vmem:[#allocation4 + $0x40] sm:$0xff] %vm2328, %v4265
          %4298 = vst.msk [vmem:[#allocation4 + $0x48] sm:$0xff] %vm2328, %v4266
          %4299 = vst.msk [vmem:[#allocation4 + $0x50] sm:$0xff] %vm2328, %v4267
          %4300 = vst.msk [vmem:[#allocation4 + $0x58] sm:$0xff] %vm2328, %v4268
          %4301 = vst.msk [vmem:[#allocation4 + $0x60] sm:$0xff] %vm2328, %v4269
          %4302 = vst.msk [vmem:[#allocation4 + $0x68] sm:$0xff] %vm2328, %v4270
          %4303 = vst.msk [vmem:[#allocation4 + $0x70] sm:$0xff] %vm2328, %v4271
          %4304 = vst.msk [vmem:[#allocation4 + $0x78] sm:$0xff] %vm2328, %v4272
          %4305 = vst.msk [vmem:[#allocation4 + $0x80] sm:$0xff] %vm2328, %v4273
          %4306 = vst.msk [vmem:[#allocation4 + $0x88] sm:$0xff] %vm2328, %v4274
          %4307 = vst.msk [vmem:[#allocation4 + $0x90] sm:$0xff] %vm2328, %v4275
          %4308 = vst.msk [vmem:[#allocation4 + $0x98] sm:$0xff] %vm2328, %v4276
          %4309 = vst.msk [vmem:[#allocation4 + $0xa0] sm:$0xff] %vm2328, %v4277
          %4310 = vst.msk [vmem:[#allocation4 + $0xa8] sm:$0xff] %vm2328, %v4278
          %4311 = vst.msk [vmem:[#allocation4 + $0xb0] sm:$0xff] %vm2328, %v4279
          %4312 = vst.msk [vmem:[#allocation4 + $0xb8] sm:$0xff] %vm2328, %v4280
          %4313 = vst.msk [vmem:[#allocation4 + $0xc0] sm:$0xff] %vm2328, %v4281
          %4314 = vst.msk [vmem:[#allocation4 + $0xc8] sm:$0xff] %vm2328, %v4282
          %4315 = vst.msk [vmem:[#allocation4 + $0xd0] sm:$0xff] %vm2328, %v4283
          %4316 = vst.msk [vmem:[#allocation4 + $0xd8] sm:$0xff] %vm2328, %v4284
          %4317 = vst.msk [vmem:[#allocation4 + $0xe0] sm:$0xff] %vm2328, %v4285
          %4318 = vst.msk [vmem:[#allocation4 + $0xe8] sm:$0xff] %vm2328, %v4286
          %4319 = vst.msk [vmem:[#allocation4 + $0xf0] sm:$0xff] %vm2328, %v4287
          %4320 = vst.msk [vmem:[#allocation4 + $0xf8] sm:$0xff] %vm2328, %v4288
        $region64: #{tpu_custom_call.1} parent=35 // pred_fallthru
          _
        // Predicated region
        $region65: #{tpu_custom_call.1} parent=35 // pred_check
          %p4321 = pneg %p352
        $region66: #{tpu_custom_call.1} parent=35 // pred_check_branch
          %4323 = sbr.rel (%p4321) target = $region68
        $region67: #{tpu_custom_call.1} parent=35 // pred_region
          %v4324 = vld [vmem:[#allocation2] sm:$0xff]
          %v4325 = vld [vmem:[#allocation2 + $0x8] sm:$0xff]
          %v4326 = vld [vmem:[#allocation2 + $0x10] sm:$0xff]
          %v4327 = vld [vmem:[#allocation2 + $0x18] sm:$0xff]
          %v4328 = vld [vmem:[#allocation2 + $0x20] sm:$0xff]
          %v4329 = vld [vmem:[#allocation2 + $0x28] sm:$0xff]
          %v4330 = vld [vmem:[#allocation2 + $0x30] sm:$0xff]
          %v4331 = vld [vmem:[#allocation2 + $0x38] sm:$0xff]
          %v4332 = vld [vmem:[#allocation2 + $0x40] sm:$0xff]
          %v4333 = vld [vmem:[#allocation2 + $0x48] sm:$0xff]
          %v4334 = vld [vmem:[#allocation2 + $0x50] sm:$0xff]
          %v4335 = vld [vmem:[#allocation2 + $0x58] sm:$0xff]
          %v4336 = vld [vmem:[#allocation2 + $0x60] sm:$0xff]
          %v4337 = vld [vmem:[#allocation2 + $0x68] sm:$0xff]
          %v4338 = vld [vmem:[#allocation2 + $0x70] sm:$0xff]
          %v4339 = vld [vmem:[#allocation2 + $0x78] sm:$0xff]
          %v4340 = vld [vmem:[#allocation2 + $0x80] sm:$0xff]
          %v4341 = vld [vmem:[#allocation2 + $0x88] sm:$0xff]
          %v4342 = vld [vmem:[#allocation2 + $0x90] sm:$0xff]
          %v4343 = vld [vmem:[#allocation2 + $0x98] sm:$0xff]
          %v4344 = vld [vmem:[#allocation2 + $0xa0] sm:$0xff]
          %v4345 = vld [vmem:[#allocation2 + $0xa8] sm:$0xff]
          %v4346 = vld [vmem:[#allocation2 + $0xb0] sm:$0xff]
          %v4347 = vld [vmem:[#allocation2 + $0xb8] sm:$0xff]
          %v4348 = vld [vmem:[#allocation2 + $0xc0] sm:$0xff]
          %v4349 = vld [vmem:[#allocation2 + $0xc8] sm:$0xff]
          %v4350 = vld [vmem:[#allocation2 + $0xd0] sm:$0xff]
          %v4351 = vld [vmem:[#allocation2 + $0xd8] sm:$0xff]
          %v4352 = vld [vmem:[#allocation2 + $0xe0] sm:$0xff]
          %v4353 = vld [vmem:[#allocation2 + $0xe8] sm:$0xff]
          %v4354 = vld [vmem:[#allocation2 + $0xf0] sm:$0xff]
          %v4355 = vld [vmem:[#allocation2 + $0xf8] sm:$0xff]
          %v4356 = vld [vmem:[#allocation3] sm:$0xff]
          %v4357 = vld [vmem:[#allocation3 + $0x8] sm:$0xff]
          %v4358 = vld [vmem:[#allocation3 + $0x10] sm:$0xff]
          %v4359 = vld [vmem:[#allocation3 + $0x18] sm:$0xff]
          %v4360 = vld [vmem:[#allocation3 + $0x20] sm:$0xff]
          %v4361 = vld [vmem:[#allocation3 + $0x28] sm:$0xff]
          %v4362 = vld [vmem:[#allocation3 + $0x30] sm:$0xff]
          %v4363 = vld [vmem:[#allocation3 + $0x38] sm:$0xff]
          %v4364 = vld [vmem:[#allocation3 + $0x40] sm:$0xff]
          %v4365 = vld [vmem:[#allocation3 + $0x48] sm:$0xff]
          %v4366 = vld [vmem:[#allocation3 + $0x50] sm:$0xff]
          %v4367 = vld [vmem:[#allocation3 + $0x58] sm:$0xff]
          %v4368 = vld [vmem:[#allocation3 + $0x60] sm:$0xff]
          %v4369 = vld [vmem:[#allocation3 + $0x68] sm:$0xff]
          %v4370 = vld [vmem:[#allocation3 + $0x70] sm:$0xff]
          %v4371 = vld [vmem:[#allocation3 + $0x78] sm:$0xff]
          %v4372 = vld [vmem:[#allocation3 + $0x80] sm:$0xff]
          %v4373 = vld [vmem:[#allocation3 + $0x88] sm:$0xff]
          %v4374 = vld [vmem:[#allocation3 + $0x90] sm:$0xff]
          %v4375 = vld [vmem:[#allocation3 + $0x98] sm:$0xff]
          %v4376 = vld [vmem:[#allocation3 + $0xa0] sm:$0xff]
          %v4377 = vld [vmem:[#allocation3 + $0xa8] sm:$0xff]
          %v4378 = vld [vmem:[#allocation3 + $0xb0] sm:$0xff]
          %v4379 = vld [vmem:[#allocation3 + $0xb8] sm:$0xff]
          %v4380 = vld [vmem:[#allocation3 + $0xc0] sm:$0xff]
          %v4381 = vld [vmem:[#allocation3 + $0xc8] sm:$0xff]
          %v4382 = vld [vmem:[#allocation3 + $0xd0] sm:$0xff]
          %v4383 = vld [vmem:[#allocation3 + $0xd8] sm:$0xff]
          %v4384 = vld [vmem:[#allocation3 + $0xe0] sm:$0xff]
          %v4385 = vld [vmem:[#allocation3 + $0xe8] sm:$0xff]
          %v4386 = vld [vmem:[#allocation3 + $0xf0] sm:$0xff]
          %v4387 = vld [vmem:[#allocation3 + $0xf8] sm:$0xff]
          %v4388 = vlog2.pop %v4356
          %v4389 = vmul.f32 %v4388, 0.6931472
          %v4390 = vlog2.pop %v4357
          %v4391 = vmul.f32 %v4390, 0.6931472
          %v4392 = vlog2.pop %v4358
          %v4393 = vmul.f32 %v4392, 0.6931472
          %v4394 = vlog2.pop %v4359
          %v4395 = vmul.f32 %v4394, 0.6931472
          %v4396 = vlog2.pop %v4360
          %v4397 = vmul.f32 %v4396, 0.6931472
          %v4398 = vlog2.pop %v4361
          %v4399 = vmul.f32 %v4398, 0.6931472
          %v4400 = vlog2.pop %v4362
          %v4401 = vmul.f32 %v4400, 0.6931472
          %v4402 = vlog2.pop %v4363
          %v4403 = vmul.f32 %v4402, 0.6931472
          %v4404 = vlog2.pop %v4364
          %v4405 = vmul.f32 %v4404, 0.6931472
          %v4406 = vlog2.pop %v4365
          %v4407 = vmul.f32 %v4406, 0.6931472
          %v4408 = vlog2.pop %v4366
          %v4409 = vmul.f32 %v4408, 0.6931472
          %v4410 = vlog2.pop %v4367
          %v4411 = vmul.f32 %v4410, 0.6931472
          %v4412 = vlog2.pop %v4368
          %v4413 = vmul.f32 %v4412, 0.6931472
          %v4414 = vlog2.pop %v4369
          %v4415 = vmul.f32 %v4414, 0.6931472
          %v4416 = vlog2.pop %v4370
          %v4417 = vmul.f32 %v4416, 0.6931472
          %v4418 = vlog2.pop %v4371
          %v4419 = vmul.f32 %v4418, 0.6931472
          %v4420 = vlog2.pop %v4372
          %v4421 = vmul.f32 %v4420, 0.6931472
          %v4422 = vlog2.pop %v4373
          %v4423 = vmul.f32 %v4422, 0.6931472
          %v4424 = vlog2.pop %v4374
          %v4425 = vmul.f32 %v4424, 0.6931472
          %v4426 = vlog2.pop %v4375
          %v4427 = vmul.f32 %v4426, 0.6931472
          %v4428 = vlog2.pop %v4376
          %v4429 = vmul.f32 %v4428, 0.6931472
          %v4430 = vlog2.pop %v4377
          %v4431 = vmul.f32 %v4430, 0.6931472
          %v4432 = vlog2.pop %v4378
          %v4433 = vmul.f32 %v4432, 0.6931472
          %v4434 = vlog2.pop %v4379
          %v4435 = vmul.f32 %v4434, 0.6931472
          %v4436 = vlog2.pop %v4380
          %v4437 = vmul.f32 %v4436, 0.6931472
          %v4438 = vlog2.pop %v4381
          %v4439 = vmul.f32 %v4438, 0.6931472
          %v4440 = vlog2.pop %v4382
          %v4441 = vmul.f32 %v4440, 0.6931472
          %v4442 = vlog2.pop %v4383
          %v4443 = vmul.f32 %v4442, 0.6931472
          %v4444 = vlog2.pop %v4384
          %v4445 = vmul.f32 %v4444, 0.6931472
          %v4446 = vlog2.pop %v4385
          %v4447 = vmul.f32 %v4446, 0.6931472
          %v4448 = vlog2.pop %v4386
          %v4449 = vmul.f32 %v4448, 0.6931472
          %v4450 = vlog2.pop %v4387
          %v4451 = vmul.f32 %v4450, 0.6931472
          %v4452 = vadd.f32 %v4324, %v4389
          %v4453 = vadd.f32 %v4325, %v4391
          %v4454 = vadd.f32 %v4326, %v4393
          %v4455 = vadd.f32 %v4327, %v4395
          %v4456 = vadd.f32 %v4328, %v4397
          %v4457 = vadd.f32 %v4329, %v4399
          %v4458 = vadd.f32 %v4330, %v4401
          %v4459 = vadd.f32 %v4331, %v4403
          %v4460 = vadd.f32 %v4332, %v4405
          %v4461 = vadd.f32 %v4333, %v4407
          %v4462 = vadd.f32 %v4334, %v4409
          %v4463 = vadd.f32 %v4335, %v4411
          %v4464 = vadd.f32 %v4336, %v4413
          %v4465 = vadd.f32 %v4337, %v4415
          %v4466 = vadd.f32 %v4338, %v4417
          %v4467 = vadd.f32 %v4339, %v4419
          %v4468 = vadd.f32 %v4340, %v4421
          %v4469 = vadd.f32 %v4341, %v4423
          %v4470 = vadd.f32 %v4342, %v4425
          %v4471 = vadd.f32 %v4343, %v4427
          %v4472 = vadd.f32 %v4344, %v4429
          %v4473 = vadd.f32 %v4345, %v4431
          %v4474 = vadd.f32 %v4346, %v4433
          %v4475 = vadd.f32 %v4347, %v4435
          %v4476 = vadd.f32 %v4348, %v4437
          %v4477 = vadd.f32 %v4349, %v4439
          %v4478 = vadd.f32 %v4350, %v4441
          %v4479 = vadd.f32 %v4351, %v4443
          %v4480 = vadd.f32 %v4352, %v4445
          %v4481 = vadd.f32 %v4353, %v4447
          %v4482 = vadd.f32 %v4354, %v4449
          %v4483 = vadd.f32 %v4355, %v4451
          %v4484 = vld [vmem:[#allocation4] sm:$0xff]
          %v4485 = vld [vmem:[#allocation4 + $0x8] sm:$0xff]
          %v4486 = vld [vmem:[#allocation4 + $0x10] sm:$0xff]
          %v4487 = vld [vmem:[#allocation4 + $0x18] sm:$0xff]
          %v4488 = vld [vmem:[#allocation4 + $0x20] sm:$0xff]
          %v4489 = vld [vmem:[#allocation4 + $0x28] sm:$0xff]
          %v4490 = vld [vmem:[#allocation4 + $0x30] sm:$0xff]
          %v4491 = vld [vmem:[#allocation4 + $0x38] sm:$0xff]
          %v4492 = vld [vmem:[#allocation4 + $0x40] sm:$0xff]
          %v4493 = vld [vmem:[#allocation4 + $0x48] sm:$0xff]
          %v4494 = vld [vmem:[#allocation4 + $0x50] sm:$0xff]
          %v4495 = vld [vmem:[#allocation4 + $0x58] sm:$0xff]
          %v4496 = vld [vmem:[#allocation4 + $0x60] sm:$0xff]
          %v4497 = vld [vmem:[#allocation4 + $0x68] sm:$0xff]
          %v4498 = vld [vmem:[#allocation4 + $0x70] sm:$0xff]
          %v4499 = vld [vmem:[#allocation4 + $0x78] sm:$0xff]
          %v4500 = vld [vmem:[#allocation4 + $0x80] sm:$0xff]
          %v4501 = vld [vmem:[#allocation4 + $0x88] sm:$0xff]
          %v4502 = vld [vmem:[#allocation4 + $0x90] sm:$0xff]
          %v4503 = vld [vmem:[#allocation4 + $0x98] sm:$0xff]
          %v4504 = vld [vmem:[#allocation4 + $0xa0] sm:$0xff]
          %v4505 = vld [vmem:[#allocation4 + $0xa8] sm:$0xff]
          %v4506 = vld [vmem:[#allocation4 + $0xb0] sm:$0xff]
          %v4507 = vld [vmem:[#allocation4 + $0xb8] sm:$0xff]
          %v4508 = vld [vmem:[#allocation4 + $0xc0] sm:$0xff]
          %v4509 = vld [vmem:[#allocation4 + $0xc8] sm:$0xff]
          %v4510 = vld [vmem:[#allocation4 + $0xd0] sm:$0xff]
          %v4511 = vld [vmem:[#allocation4 + $0xd8] sm:$0xff]
          %v4512 = vld [vmem:[#allocation4 + $0xe0] sm:$0xff]
          %v4513 = vld [vmem:[#allocation4 + $0xe8] sm:$0xff]
          %v4514 = vld [vmem:[#allocation4 + $0xf0] sm:$0xff]
          %v4515 = vld [vmem:[#allocation4 + $0xf8] sm:$0xff]
          %4517 = vset.pattern.permute.xlu0 0
          %4518 = vperm.xlu0 %4517, %v4484
          %v4519 = vpop.permute.xlu0 %4518
          %4522 = vset.pattern.permute.xlu0 0
          %4523 = vperm.xlu0 %4522, %v4485
          %v4524 = vpop.permute.xlu0 %4523
          %4527 = vset.pattern.permute.xlu0 0
          %4528 = vperm.xlu0 %4527, %v4486
          %v4529 = vpop.permute.xlu0 %4528
          %4532 = vset.pattern.permute.xlu0 0
          %4533 = vperm.xlu0 %4532, %v4487
          %v4534 = vpop.permute.xlu0 %4533
          %4537 = vset.pattern.permute.xlu0 0
          %4538 = vperm.xlu0 %4537, %v4488
          %v4539 = vpop.permute.xlu0 %4538
          %4542 = vset.pattern.permute.xlu0 0
          %4543 = vperm.xlu0 %4542, %v4489
          %v4544 = vpop.permute.xlu0 %4543
          %4547 = vset.pattern.permute.xlu0 0
          %4548 = vperm.xlu0 %4547, %v4490
          %v4549 = vpop.permute.xlu0 %4548
          %4552 = vset.pattern.permute.xlu0 0
          %4553 = vperm.xlu0 %4552, %v4491
          %v4554 = vpop.permute.xlu0 %4553
          %4557 = vset.pattern.permute.xlu0 0
          %4558 = vperm.xlu0 %4557, %v4492
          %v4559 = vpop.permute.xlu0 %4558
          %4562 = vset.pattern.permute.xlu0 0
          %4563 = vperm.xlu0 %4562, %v4493
          %v4564 = vpop.permute.xlu0 %4563
          %4567 = vset.pattern.permute.xlu0 0
          %4568 = vperm.xlu0 %4567, %v4494
          %v4569 = vpop.permute.xlu0 %4568
          %4572 = vset.pattern.permute.xlu0 0
          %4573 = vperm.xlu0 %4572, %v4495
          %v4574 = vpop.permute.xlu0 %4573
          %4577 = vset.pattern.permute.xlu0 0
          %4578 = vperm.xlu0 %4577, %v4496
          %v4579 = vpop.permute.xlu0 %4578
          %4582 = vset.pattern.permute.xlu0 0
          %4583 = vperm.xlu0 %4582, %v4497
          %v4584 = vpop.permute.xlu0 %4583
          %4587 = vset.pattern.permute.xlu0 0
          %4588 = vperm.xlu0 %4587, %v4498
          %v4589 = vpop.permute.xlu0 %4588
          %4592 = vset.pattern.permute.xlu0 0
          %4593 = vperm.xlu0 %4592, %v4499
          %v4594 = vpop.permute.xlu0 %4593
          %4597 = vset.pattern.permute.xlu0 0
          %4598 = vperm.xlu0 %4597, %v4500
          %v4599 = vpop.permute.xlu0 %4598
          %4602 = vset.pattern.permute.xlu0 0
          %4603 = vperm.xlu0 %4602, %v4501
          %v4604 = vpop.permute.xlu0 %4603
          %4607 = vset.pattern.permute.xlu0 0
          %4608 = vperm.xlu0 %4607, %v4502
          %v4609 = vpop.permute.xlu0 %4608
          %4612 = vset.pattern.permute.xlu0 0
          %4613 = vperm.xlu0 %4612, %v4503
          %v4614 = vpop.permute.xlu0 %4613
          %4617 = vset.pattern.permute.xlu0 0
          %4618 = vperm.xlu0 %4617, %v4504
          %v4619 = vpop.permute.xlu0 %4618
          %4622 = vset.pattern.permute.xlu0 0
          %4623 = vperm.xlu0 %4622, %v4505
          %v4624 = vpop.permute.xlu0 %4623
          %4627 = vset.pattern.permute.xlu0 0
          %4628 = vperm.xlu0 %4627, %v4506
          %v4629 = vpop.permute.xlu0 %4628
          %4632 = vset.pattern.permute.xlu0 0
          %4633 = vperm.xlu0 %4632, %v4507
          %v4634 = vpop.permute.xlu0 %4633
          %4637 = vset.pattern.permute.xlu0 0
          %4638 = vperm.xlu0 %4637, %v4508
          %v4639 = vpop.permute.xlu0 %4638
          %4642 = vset.pattern.permute.xlu0 0
          %4643 = vperm.xlu0 %4642, %v4509
          %v4644 = vpop.permute.xlu0 %4643
          %4647 = vset.pattern.permute.xlu0 0
          %4648 = vperm.xlu0 %4647, %v4510
          %v4649 = vpop.permute.xlu0 %4648
          %4652 = vset.pattern.permute.xlu0 0
          %4653 = vperm.xlu0 %4652, %v4511
          %v4654 = vpop.permute.xlu0 %4653
          %4657 = vset.pattern.permute.xlu0 0
          %4658 = vperm.xlu0 %4657, %v4512
          %v4659 = vpop.permute.xlu0 %4658
          %4662 = vset.pattern.permute.xlu0 0
          %4663 = vperm.xlu0 %4662, %v4513
          %v4664 = vpop.permute.xlu0 %4663
          %4667 = vset.pattern.permute.xlu0 0
          %4668 = vperm.xlu0 %4667, %v4514
          %v4669 = vpop.permute.xlu0 %4668
          %4672 = vset.pattern.permute.xlu0 0
          %4673 = vperm.xlu0 %4672, %v4515
          %v4674 = vpop.permute.xlu0 %4673
          %4676 = vst [vmem:[%s338] sm:$0xff] %v4519
          %4677 = vst [vmem:[%s338 + $0x8] sm:$0xff] %v4524
          %4678 = vst [vmem:[%s338 + $0x10] sm:$0xff] %v4529
          %4679 = vst [vmem:[%s338 + $0x18] sm:$0xff] %v4534
          %4680 = vst [vmem:[%s338 + $0x20] sm:$0xff] %v4539
          %4681 = vst [vmem:[%s338 + $0x28] sm:$0xff] %v4544
          %4682 = vst [vmem:[%s338 + $0x30] sm:$0xff] %v4549
          %4683 = vst [vmem:[%s338 + $0x38] sm:$0xff] %v4554
          %4684 = vst [vmem:[%s338 + $0x40] sm:$0xff] %v4559
          %4685 = vst [vmem:[%s338 + $0x48] sm:$0xff] %v4564
          %4686 = vst [vmem:[%s338 + $0x50] sm:$0xff] %v4569
          %4687 = vst [vmem:[%s338 + $0x58] sm:$0xff] %v4574
          %4688 = vst [vmem:[%s338 + $0x60] sm:$0xff] %v4579
          %4689 = vst [vmem:[%s338 + $0x68] sm:$0xff] %v4584
          %4690 = vst [vmem:[%s338 + $0x70] sm:$0xff] %v4589
          %4691 = vst [vmem:[%s338 + $0x78] sm:$0xff] %v4594
          %4692 = vst [vmem:[%s338 + $0x80] sm:$0xff] %v4599
          %4693 = vst [vmem:[%s338 + $0x88] sm:$0xff] %v4604
          %4694 = vst [vmem:[%s338 + $0x90] sm:$0xff] %v4609
          %4695 = vst [vmem:[%s338 + $0x98] sm:$0xff] %v4614
          %4696 = vst [vmem:[%s338 + $0xa0] sm:$0xff] %v4619
          %4697 = vst [vmem:[%s338 + $0xa8] sm:$0xff] %v4624
          %4698 = vst [vmem:[%s338 + $0xb0] sm:$0xff] %v4629
          %4699 = vst [vmem:[%s338 + $0xb8] sm:$0xff] %v4634
          %4700 = vst [vmem:[%s338 + $0xc0] sm:$0xff] %v4639
          %4701 = vst [vmem:[%s338 + $0xc8] sm:$0xff] %v4644
          %4702 = vst [vmem:[%s338 + $0xd0] sm:$0xff] %v4649
          %4703 = vst [vmem:[%s338 + $0xd8] sm:$0xff] %v4654
          %4704 = vst [vmem:[%s338 + $0xe0] sm:$0xff] %v4659
          %4705 = vst [vmem:[%s338 + $0xe8] sm:$0xff] %v4664
          %4706 = vst [vmem:[%s338 + $0xf0] sm:$0xff] %v4669
          %4707 = vst [vmem:[%s338 + $0xf8] sm:$0xff] %v4674
          %4709 = vset.pattern.permute.xlu0 0
          %4710 = vperm.xlu0 %4709, %v4452
          %v4711 = vpop.permute.xlu0 %4710
          %4714 = vset.pattern.permute.xlu0 0
          %4715 = vperm.xlu0 %4714, %v4453
          %v4716 = vpop.permute.xlu0 %4715
          %4719 = vset.pattern.permute.xlu0 0
          %4720 = vperm.xlu0 %4719, %v4454
          %v4721 = vpop.permute.xlu0 %4720
          %4724 = vset.pattern.permute.xlu0 0
          %4725 = vperm.xlu0 %4724, %v4455
          %v4726 = vpop.permute.xlu0 %4725
          %4729 = vset.pattern.permute.xlu0 0
          %4730 = vperm.xlu0 %4729, %v4456
          %v4731 = vpop.permute.xlu0 %4730
          %4734 = vset.pattern.permute.xlu0 0
          %4735 = vperm.xlu0 %4734, %v4457
          %v4736 = vpop.permute.xlu0 %4735
          %4739 = vset.pattern.permute.xlu0 0
          %4740 = vperm.xlu0 %4739, %v4458
          %v4741 = vpop.permute.xlu0 %4740
          %4744 = vset.pattern.permute.xlu0 0
          %4745 = vperm.xlu0 %4744, %v4459
          %v4746 = vpop.permute.xlu0 %4745
          %4749 = vset.pattern.permute.xlu0 0
          %4750 = vperm.xlu0 %4749, %v4460
          %v4751 = vpop.permute.xlu0 %4750
          %4754 = vset.pattern.permute.xlu0 0
          %4755 = vperm.xlu0 %4754, %v4461
          %v4756 = vpop.permute.xlu0 %4755
          %4759 = vset.pattern.permute.xlu0 0
          %4760 = vperm.xlu0 %4759, %v4462
          %v4761 = vpop.permute.xlu0 %4760
          %4764 = vset.pattern.permute.xlu0 0
          %4765 = vperm.xlu0 %4764, %v4463
          %v4766 = vpop.permute.xlu0 %4765
          %4769 = vset.pattern.permute.xlu0 0
          %4770 = vperm.xlu0 %4769, %v4464
          %v4771 = vpop.permute.xlu0 %4770
          %4774 = vset.pattern.permute.xlu0 0
          %4775 = vperm.xlu0 %4774, %v4465
          %v4776 = vpop.permute.xlu0 %4775
          %4779 = vset.pattern.permute.xlu0 0
          %4780 = vperm.xlu0 %4779, %v4466
          %v4781 = vpop.permute.xlu0 %4780
          %4784 = vset.pattern.permute.xlu0 0
          %4785 = vperm.xlu0 %4784, %v4467
          %v4786 = vpop.permute.xlu0 %4785
          %4789 = vset.pattern.permute.xlu0 0
          %4790 = vperm.xlu0 %4789, %v4468
          %v4791 = vpop.permute.xlu0 %4790
          %4794 = vset.pattern.permute.xlu0 0
          %4795 = vperm.xlu0 %4794, %v4469
          %v4796 = vpop.permute.xlu0 %4795
          %4799 = vset.pattern.permute.xlu0 0
          %4800 = vperm.xlu0 %4799, %v4470
          %v4801 = vpop.permute.xlu0 %4800
          %4804 = vset.pattern.permute.xlu0 0
          %4805 = vperm.xlu0 %4804, %v4471
          %v4806 = vpop.permute.xlu0 %4805
          %4809 = vset.pattern.permute.xlu0 0
          %4810 = vperm.xlu0 %4809, %v4472
          %v4811 = vpop.permute.xlu0 %4810
          %4814 = vset.pattern.permute.xlu0 0
          %4815 = vperm.xlu0 %4814, %v4473
          %v4816 = vpop.permute.xlu0 %4815
          %4819 = vset.pattern.permute.xlu0 0
          %4820 = vperm.xlu0 %4819, %v4474
          %v4821 = vpop.permute.xlu0 %4820
          %4824 = vset.pattern.permute.xlu0 0
          %4825 = vperm.xlu0 %4824, %v4475
          %v4826 = vpop.permute.xlu0 %4825
          %4829 = vset.pattern.permute.xlu0 0
          %4830 = vperm.xlu0 %4829, %v4476
          %v4831 = vpop.permute.xlu0 %4830
          %4834 = vset.pattern.permute.xlu0 0
          %4835 = vperm.xlu0 %4834, %v4477
          %v4836 = vpop.permute.xlu0 %4835
          %4839 = vset.pattern.permute.xlu0 0
          %4840 = vperm.xlu0 %4839, %v4478
          %v4841 = vpop.permute.xlu0 %4840
          %4844 = vset.pattern.permute.xlu0 0
          %4845 = vperm.xlu0 %4844, %v4479
          %v4846 = vpop.permute.xlu0 %4845
          %4849 = vset.pattern.permute.xlu0 0
          %4850 = vperm.xlu0 %4849, %v4480
          %v4851 = vpop.permute.xlu0 %4850
          %4854 = vset.pattern.permute.xlu0 0
          %4855 = vperm.xlu0 %4854, %v4481
          %v4856 = vpop.permute.xlu0 %4855
          %4859 = vset.pattern.permute.xlu0 0
          %4860 = vperm.xlu0 %4859, %v4482
          %v4861 = vpop.permute.xlu0 %4860
          %4864 = vset.pattern.permute.xlu0 0
          %4865 = vperm.xlu0 %4864, %v4483
          %v4866 = vpop.permute.xlu0 %4865
          %4868 = vst [vmem:[%s345] sm:$0xff] %v4711
          %4869 = vst [vmem:[%s345 + $0x8] sm:$0xff] %v4716
          %4870 = vst [vmem:[%s345 + $0x10] sm:$0xff] %v4721
          %4871 = vst [vmem:[%s345 + $0x18] sm:$0xff] %v4726
          %4872 = vst [vmem:[%s345 + $0x20] sm:$0xff] %v4731
          %4873 = vst [vmem:[%s345 + $0x28] sm:$0xff] %v4736
          %4874 = vst [vmem:[%s345 + $0x30] sm:$0xff] %v4741
          %4875 = vst [vmem:[%s345 + $0x38] sm:$0xff] %v4746
          %4876 = vst [vmem:[%s345 + $0x40] sm:$0xff] %v4751
          %4877 = vst [vmem:[%s345 + $0x48] sm:$0xff] %v4756
          %4878 = vst [vmem:[%s345 + $0x50] sm:$0xff] %v4761
          %4879 = vst [vmem:[%s345 + $0x58] sm:$0xff] %v4766
          %4880 = vst [vmem:[%s345 + $0x60] sm:$0xff] %v4771
          %4881 = vst [vmem:[%s345 + $0x68] sm:$0xff] %v4776
          %4882 = vst [vmem:[%s345 + $0x70] sm:$0xff] %v4781
          %4883 = vst [vmem:[%s345 + $0x78] sm:$0xff] %v4786
          %4884 = vst [vmem:[%s345 + $0x80] sm:$0xff] %v4791
          %4885 = vst [vmem:[%s345 + $0x88] sm:$0xff] %v4796
          %4886 = vst [vmem:[%s345 + $0x90] sm:$0xff] %v4801
          %4887 = vst [vmem:[%s345 + $0x98] sm:$0xff] %v4806
          %4888 = vst [vmem:[%s345 + $0xa0] sm:$0xff] %v4811
          %4889 = vst [vmem:[%s345 + $0xa8] sm:$0xff] %v4816
          %4890 = vst [vmem:[%s345 + $0xb0] sm:$0xff] %v4821
          %4891 = vst [vmem:[%s345 + $0xb8] sm:$0xff] %v4826
          %4892 = vst [vmem:[%s345 + $0xc0] sm:$0xff] %v4831
          %4893 = vst [vmem:[%s345 + $0xc8] sm:$0xff] %v4836
          %4894 = vst [vmem:[%s345 + $0xd0] sm:$0xff] %v4841
          %4895 = vst [vmem:[%s345 + $0xd8] sm:$0xff] %v4846
          %4896 = vst [vmem:[%s345 + $0xe0] sm:$0xff] %v4851
          %4897 = vst [vmem:[%s345 + $0xe8] sm:$0xff] %v4856
          %4898 = vst [vmem:[%s345 + $0xf0] sm:$0xff] %v4861
          %4899 = vst [vmem:[%s345 + $0xf8] sm:$0xff] %v4866
        $region68: #{tpu_custom_call.1} parent=35 // pred_fallthru
          _
        %s4900 = sand.u32 %s151, 1
        %s4901 = scalar_lea.sflag [#allocation7], %s4900
        %s4902 = sand.u32 %s151, 1
        %s4903 = smul.addr %s4902, 256
        %s4904 = scalar_lea.vmem [#allocation12], %s4903
        %s4905 = sand.u32 %s177, 1
        %s4906 = scalar_lea.sflag [#allocation14], %s4905
        %s4907 = sand.u32 %s177, 1
        %s4908 = smul.addr %s4907, 256
        %s4909 = scalar_lea.vmem [#allocation13], %s4908
        // Predicated region
        $region69: #{tpu_custom_call.1} parent=35 // pred_check
          %p4910 = pneg %p161
        $region70: #{tpu_custom_call.1} parent=35 // pred_check_branch
          %4912 = sbr.rel (%p4910) target = $region72
        $region71: #{tpu_custom_call.1} parent=35 // pred_region
          %s4913 = smul.u32 32, %s31
          %s4915 = ssub.s32 4096, 4096
          %4916 = vsyncadd %s4901, %s4915
          %s4917 = smul.addr %s4913, 128
          %s4918 = scalar_lea.hbm %s4, %s4917
          %s4919 = sshll.u32 %s4904, 4
          %s4920 = int_to_ptr.vmem [resolvable:$true] %s4919
          %4925 = dma.vmem_to_hbm [thread:$0]  %s4920, 4096, %s4918, %s4901, 128, 128, 8
        $region72: #{tpu_custom_call.1} parent=35 // pred_fallthru
          _
        // Predicated region
        $region73: #{tpu_custom_call.1} parent=35 // pred_check
          %p4926 = pneg %p187
        $region74: #{tpu_custom_call.1} parent=35 // pred_check_branch
          %4928 = sbr.rel (%p4926) target = $region76
        $region75: #{tpu_custom_call.1} parent=35 // pred_region
          %s4929 = smul.u32 32, %s31
          %s4931 = ssub.s32 4096, 4096
          %4932 = vsyncadd %s4906, %s4931
          %s4933 = smul.addr %s4929, 128
          %s4934 = scalar_lea.hbm %s5, %s4933
          %s4935 = sshll.u32 %s4909, 4
          %s4936 = int_to_ptr.vmem [resolvable:$true] %s4935
          %4941 = dma.vmem_to_hbm [thread:$0]  %s4936, 4096, %s4934, %s4906, 128, 128, 8
        $region76: #{tpu_custom_call.1} parent=35 // pred_fallthru
          _
      $region36: #{tpu_custom_call.1} parent=5 // pred_fallthru
        _
      %p4942 = scmp.le.s32.totalorder 2, %s22
      // Predicated region
      $region77: #{tpu_custom_call.1} parent=5 // pred_check
        %p4943 = pneg %p4942
      $region78: #{tpu_custom_call.1} parent=5 // pred_check_branch
        %4945 = sbr.rel (%p4943) target = $region80
      $region79: #{tpu_custom_call.1} parent=5 // pred_region
        %s4946 = ssub.s32 %s22, 2
        // Predicated region
        $region81: #{tpu_custom_call.1} parent=79 // pred_check
          %p4947 = pneg %p167
        $region82: #{tpu_custom_call.1} parent=79 // pred_check_branch
          %4949 = sbr.rel (%p4947) target = $region84
        $region83: #{tpu_custom_call.1} parent=79 // pred_region
          %s4950 = sand.u32 %s152, 1
          %s4951 = scalar_lea.sflag [#allocation7], %s4950
          %s4952 = sand.u32 %s152, 1
          %s4953 = smul.addr %s4952, 256
          %s4954 = scalar_lea.vmem [#allocation12], %s4953
          %4955 = dma.done %s4951, 4096
        $region84: #{tpu_custom_call.1} parent=79 // pred_fallthru
          _
        // Predicated region
        $region85: #{tpu_custom_call.1} parent=79 // pred_check
          %p4956 = pneg %p193
        $region86: #{tpu_custom_call.1} parent=79 // pred_check_branch
          %4958 = sbr.rel (%p4956) target = $region88
        $region87: #{tpu_custom_call.1} parent=79 // pred_region
          %s4959 = sand.u32 %s178, 1
          %s4960 = scalar_lea.sflag [#allocation14], %s4959
          %s4961 = sand.u32 %s178, 1
          %s4962 = smul.addr %s4961, 256
          %s4963 = scalar_lea.vmem [#allocation13], %s4962
          %4964 = dma.done %s4960, 4096
        $region88: #{tpu_custom_call.1} parent=79 // pred_fallthru
          _
      $region80: #{tpu_custom_call.1} parent=5 // pred_fallthru
        _
    $region6: #{tpu_custom_call.1} parent=1 // loop_footer
      %s26 = sadd.s32 1, %s22
    $region7: #{tpu_custom_call.1} parent=1 // loop_footer_branch
      %21 = sbr.rel target = $region3
    $region8: #{tpu_custom_call.1} parent=1 // loop_exit
      _
    %4965 = vsyncpa [#allocation6], 1
    %s4966 = scalar_lea.sflag [#allocation6], 1
    %4967 = vsyncpa %s4966, 1
    %4968 = vsyncpa [#allocation9], 1
    %4969 = vsyncpa [#allocation7], 1
    %s4970 = scalar_lea.sflag [#allocation7], 1
    %4971 = vsyncpa %s4970, 1
    %4972 = vsyncpa [#allocation14], 1
    %s4973 = scalar_lea.sflag [#allocation14], 1
    %4974 = vsyncpa %s4973, 1

</llo_original>
